<compile_context>
chip_gen: v6e
topology: v6e:2x2x1
jax: 0.10.0
libtpu: 0.0.40
codegen_flags: <defaults>
</compile_context>

<pallas_src>
import functools

import numpy as np
import jax
import jax.numpy as jnp
from jax.experimental import pallas as pl
from jax.experimental.pallas import tpu as pltpu


# ----------------------------- Pallas kernel ------------------------------- #

def _encoder_kernel(p1_ref, w1_ref, b1_ref, sel_ref, w2_ref, b2_ref,
                    out_ref, p2_ref, *, nb, hw1p, lanes, c1, n_pairs):
    """One grid step = `nb` batch elements.

    p1_ref : (1, K1P, nb*HW1P)   bf16  layer-1 im2col patches (batch-blocked)
    w1_ref : (C1, K1P)           bf16  conv1 weight, BN1 folded, zero-padded
    b1_ref : (C1, 1)             f32   folded BN1 bias
    sel_ref: (HW1P, NTP*LANES)   bf16  one-hot, tap-padded im2col selection
    w2_ref : (C2, NTP*C1)        bf16  conv2 weight, BN2 folded, tap-major
    b2_ref : (C2, 1)             f32   folded BN2 bias
    out_ref: (1, C2, nb*LANES)   f32
    p2_ref : (NTP*C1, nb*LANES)  bf16  scratch: layer-2 patch slab
    """
    f32, bf16 = jnp.float32, jnp.bfloat16

    # ---- layer 1: 5x5 / stride-3 conv (+folded BN) + ReLU ------------------
    # ONE MXU matmul covering all nb batch elements of this grid step.
    y1 = jnp.dot(w1_ref[...], p1_ref[0], preferred_element_type=f32)
    y1 = jnp.maximum(y1 + b1_ref[...], 0.0).astype(bf16)       # (C1, nb*HW1P)

    # ---- layer-2 im2col: gather-as-matmul + pair-packed bf16 restack -------
    # sel's tap blocks are 128-lane padded, so every tap slice of g is a full
    # lane-aligned (C1, LANES) tile; tap pairs pack into full (16, LANES) bf16
    # tiles -> unmasked stores, no zero-fill, no f32 round trip through VMEM.
    sel = sel_ref[...]
    for bb in range(nb):                                        # static unroll
        g = jnp.dot(y1[:, bb * hw1p:(bb + 1) * hw1p], sel,
                    preferred_element_type=f32)                 # (C1, NTP*LANES)
        for p in range(n_pairs):
            lo = g[:, (2 * p) * lanes:(2 * p + 1) * lanes]      # (C1, LANES)
            hi = g[:, (2 * p + 1) * lanes:(2 * p + 2) * lanes]  # (C1, LANES)
            p2_ref[2 * p * c1:(2 * p + 2) * c1,
                   bb * lanes:(bb + 1) * lanes] = (
                jnp.concatenate([lo, hi], axis=0).astype(bf16))

    # ---- layer 2: 3x3 / stride-3 conv (+folded BN) + ReLU ------------------
    # ONE wide MXU matmul over all nb batch elements.
    y2 = jnp.dot(w2_ref[...], p2_ref[...], preferred_element_type=f32)
    out_ref[0] = jnp.maximum(y2 + b2_ref[...], 0.0).astype(out_ref.dtype)


# ------------------------------- wrapper ----------------------------------- #

def _conv_out(size, k, stride, pad):
    return (size + 2 * pad - k) // stride + 1


def _im2col_nchw(x, k, stride, pad, h_out, w_out):
    """(B, C, H, W) -> (B, C*k*k, h_out*w_out); row index = ci*k*k + ky*k + kx."""
    B, C = x.shape[:2]
    xp = jnp.pad(x, ((0, 0), (0, 0), (pad, pad), (pad, pad)))
    cols = [xp[:, :, ky:ky + stride * h_out:stride, kx:kx + stride * w_out:stride]
            for ky in range(k) for kx in range(k)]
    patches = jnp.stack(cols, axis=2)               # (B, C, k*k, h_out, w_out)
    return patches.reshape(B, C * k * k, h_out * w_out)


def _conv2_selection(h1, w1, h2, w2, k, stride, pad, hw1p, n_taps_p, lanes):
    """One-hot (hw1p, n_taps_p*lanes): column t*lanes+q picks the y1 pixel that
    feeds tap t of output position q; all-zero columns for padded taps /
    padded output positions / out-of-bounds (conv padding) pixels."""
    sel = np.zeros((hw1p, n_taps_p * lanes), np.float32)
    for ky in range(k):
        for kx in range(k):
            t = ky * k + kx
            for oh in range(h2):
                for ow in range(w2):
                    ih = stride * oh + ky - pad
                    iw = stride * ow + kx - pad
                    if 0 <= ih < h1 and 0 <= iw < w1:
                        sel[ih * w1 + iw, t * lanes + oh * w2 + ow] = 1.0
    return sel


def _pick_batch_block(batch):
    """Largest nb <= 8 dividing `batch` while keeping >= 2 grid steps (v7x)."""
    for cand in range(min(batch, 8), 0, -1):
        if batch % cand == 0 and batch // cand >= 2:
            return cand
    return batch            # batch == 1: single grid step, unavoidable


def encoder_forward(x, params, eps=1e-5, batch_block=None):
    """x: (B, Cin, H, W) float32 NCHW. Returns (B, 32, H2, W2) float32."""
    B, Cin, H, W = x.shape
    K1, S1, PD1 = 5, 3, 2
    K2, S2, PD2 = 3, 3, 1
    C1, C2 = params["w1"].shape[0], params["w2"].shape[0]
    H1, W1 = _conv_out(H, K1, S1, PD1), _conv_out(W, K1, S1, PD1)
    H2, W2 = _conv_out(H1, K2, S2, PD2), _conv_out(W1, K2, S2, PD2)
    HW1, HW2 = H1 * W1, H2 * W2

    LANES = pl.cdiv(HW2, 128) * 128     # per-element output lane block
    HW1P = pl.cdiv(HW1, 128) * 128      # per-element layer-1 lane block
    K1K = Cin * K1 * K1
    K1P = pl.cdiv(K1K, 16) * 16         # layer-1 contraction padded (bf16 pack)
    NT = K2 * K2
    NTP = NT + (NT % 2)                 # even tap count -> (16, LANES) pair tiles
    NPAIR = NTP // 2

    nb = batch_block if batch_block is not None else _pick_batch_block(B)
    assert B % nb == 0, (B, nb)
    nblk = B // nb

    f32, bf16 = jnp.float32, jnp.bfloat16

    # ---- fold inference BatchNorm into the conv weights (wrapper glue) ----
    s1 = params["gamma1"] / jnp.sqrt(params["var1"] + eps)
    w1f = (params["w1"] * s1[:, None, None, None]).reshape(C1, K1K)
    w1f = jnp.pad(w1f, ((0, 0), (0, K1P - K1K))).astype(bf16)
    b1f = (params["beta1"] - params["mean1"] * s1).reshape(C1, 1).astype(f32)

    s2 = params["gamma2"] / jnp.sqrt(params["var2"] + eps)
    # conv2 weight in tap-major (ky, kx, ci) column order, padded to NTP taps.
    w2f = (params["w2"] * s2[:, None, None, None]).transpose(0, 2, 3, 1)
    w2f = w2f.reshape(C2, NT * C1)
    w2f = jnp.pad(w2f, ((0, 0), (0, (NTP - NT) * C1))).astype(bf16)
    b2f = (params["beta2"] - params["mean2"] * s2).reshape(C2, 1).astype(f32)

    # ---- layout plumbing: batch-blocked layer-1 im2col + conv2 selection ----
    # TODO(synk): for much larger spatial sizes, form layer-1 patches in-kernel
    # instead of shipping a 25x-expanded im2col stream through HBM.
    p1 = _im2col_nchw(x, K1, S1, PD1, H1, W1)                  # (B, K1K, HW1)
    p1 = jnp.pad(p1, ((0, 0), (0, K1P - K1K), (0, HW1P - HW1)))
    p1 = (p1.reshape(nblk, nb, K1P, HW1P).transpose(0, 2, 1, 3)
            .reshape(nblk, K1P, nb * HW1P).astype(bf16))

    sel = jnp.asarray(
        _conv2_selection(H1, W1, H2, W2, K2, S2, PD2, HW1P, NTP, LANES), bf16)

    kernel = functools.partial(_encoder_kernel, nb=nb, hw1p=HW1P,
                               lanes=LANES, c1=C1, n_pairs=NPAIR)
    vmem_full = pl.BlockSpec(memory_space=pltpu.MemorySpace.VMEM)

    out = pl.pallas_call(
        kernel,
        out_shape=jax.ShapeDtypeStruct((nblk, C2, nb * LANES), f32),
        grid=(nblk,),
        in_specs=[
            pl.BlockSpec((1, K1P, nb * HW1P), lambda g: (g, 0, 0)),  # p1
            vmem_full,   # w1f
            vmem_full,   # b1f
            vmem_full,   # sel
            vmem_full,   # w2f
            vmem_full,   # b2f
        ],
        out_specs=pl.BlockSpec((1, C2, nb * LANES), lambda g: (g, 0, 0)),
        scratch_shapes=[pltpu.VMEM((NTP * C1, nb * LANES), bf16)],
        compiler_params=pltpu.CompilerParams(dimension_semantics=("parallel",)),
    )(p1, w1f, b1f, sel, w2f, b2f)

    # Padded output lanes (q >= HW2) hold relu(b2); slice them off here.
    out = (out.reshape(nblk, C2, nb, LANES).transpose(0, 2, 1, 3)
              .reshape(B, C2, LANES))[:, :, :HW2]
    return out.reshape(B, C2, H2, W2)


# ------------------------- params + JAX reference --------------------------- #

def make_params(key, input_channels=2):
    ks = iter(jax.random.split(key, 10))
    w1 = jax.random.normal(next(ks), (8, input_channels, 5, 5), jnp.float32)
    w1 = w1 / np.sqrt(input_channels * 25)
    gamma1 = 1.0 + 0.1 * jax.random.normal(next(ks), (8,), jnp.float32)
    beta1 = 0.1 * jax.random.normal(next(ks), (8,), jnp.float32)
    mean1 = 0.1 * jax.random.normal(next(ks), (8,), jnp.float32)
    var1 = jax.random.uniform(next(ks), (8,), jnp.float32, minval=0.5, maxval=1.5)
    w2 = jax.random.normal(next(ks), (32, 8, 3, 3), jnp.float32) / np.sqrt(8 * 9)
    gamma2 = 1.0 + 0.1 * jax.random.normal(next(ks), (32,), jnp.float32)
    beta2 = 0.1 * jax.random.normal(next(ks), (32,), jnp.float32)
    mean2 = 0.1 * jax.random.normal(next(ks), (32,), jnp.float32)
    var2 = jax.random.uniform(next(ks), (32,), jnp.float32, minval=0.5, maxval=1.5)
    return dict(w1=w1, gamma1=gamma1, beta1=beta1, mean1=mean1, var1=var1,
                w2=w2, gamma2=gamma2, beta2=beta2, mean2=mean2, var2=var2)


def reference_encoder(x, p, eps=1e-5):
    """Pure-JAX reference of the PyTorch Encoder forward (eval-mode BatchNorm)."""
    def bn(y, g, b, m, v):
        return (y - m[None, :, None, None]) * (
            g[None, :, None, None] / jnp.sqrt(v[None, :, None, None] + eps)
        ) + b[None, :, None, None]

    y = jax.lax.conv_general_dilated(
        x, p["w1"], window_strides=(3, 3), padding=[(2, 2), (2, 2)],
        dimension_numbers=("NCHW", "OIHW", "NCHW"))
    y = jax.nn.relu(bn(y, p["gamma1"], p["beta1"], p["mean1"], p["var1"]))
    y = jax.lax.conv_general_dilated(
        y, p["w2"], window_strides=(3, 3), padding=[(1, 1), (1, 1)],
        dimension_numbers=("NCHW", "OIHW", "NCHW"))
    y = jax.nn.relu(bn(y, p["gamma2"], p["beta2"], p["mean2"], p["var2"]))
    return y


# --------------------------------- main ------------------------------------- #

if __name__ == "__main__":
    # conv1 -> (B, 8, 16, 16), conv2 -> (B, 32, 6, 6); nb=4 -> grid=(2,)
    B, Cin, H, W = 8, 2, 48, 48
    key = jax.random.PRNGKey(0)
    kp, kx = jax.random.split(key)
    params = make_params(kp, input_channels=Cin)
    x = jax.random.normal(kx, (B, Cin, H, W), jnp.float32)

    out = encoder_forward(x, params)
    out = jax.block_until_ready(out)

    ref = reference_encoder(x, params)
    assert out.shape == ref.shape == (B, 32, 6, 6), (out.shape, ref.shape)
    # bf16 MXU operands (f32 accumulate) through two chained convs -> loosened tol.
    np.testing.assert_allclose(np.asarray(out), np.asarray(ref), rtol=2e-2, atol=2e-2)

    print("KERNEL_OK")
</pallas_src>

<mosaic_0001>
module attributes {stable_mosaic.version = 11 : i64} {
  func.func @_encoder_kernel(%arg0: i32, %arg1: memref<1x64x1024xbf16, #tpu.memory_space<vmem>>, %arg2: memref<8x64xbf16, #tpu.memory_space<vmem>>, %arg3: memref<8x1xf32, #tpu.memory_space<vmem>>, %arg4: memref<256x1280xbf16, #tpu.memory_space<vmem>>, %arg5: memref<32x80xbf16, #tpu.memory_space<vmem>>, %arg6: memref<32x1xf32, #tpu.memory_space<vmem>>, %arg7: memref<1x32x512xf32, #tpu.memory_space<vmem>>, %arg8: memref<80x512xbf16, #tpu.memory_space<vmem>>) attributes {dimension_semantics = [#tpu.dimension_semantics<parallel>], iteration_bounds = array<i64: 2>, scalar_prefetch = 0 : i64, scratch_operands = 1 : i64, tpu.core_type = #tpu.core_type<tc>, window_params = [{transform_indices = @transform_0, window_bounds = array<i64: 1, 64, 1024>}, {pipeline_mode = #tpu.pipeline_mode<synchronous>, transform_indices = @transform_1, window_bounds = array<i64: 8, 64>}, {pipeline_mode = #tpu.pipeline_mode<synchronous>, transform_indices = @transform_2, window_bounds = array<i64: 8, 1>}, {pipeline_mode = #tpu.pipeline_mode<synchronous>, transform_indices = @transform_3, window_bounds = array<i64: 256, 1280>}, {pipeline_mode = #tpu.pipeline_mode<synchronous>, transform_indices = @transform_4, window_bounds = array<i64: 32, 80>}, {pipeline_mode = #tpu.pipeline_mode<synchronous>, transform_indices = @transform_5, window_bounds = array<i64: 32, 1>}, {transform_indices = @transform_6, window_bounds = array<i64: 1, 32, 512>}]} {
    %c0 = arith.constant 0 : index
    %c0_0 = arith.constant 0 : index
    %0 = vector.load %arg2[%c0, %c0_0] : memref<8x64xbf16, #tpu.memory_space<vmem>>, vector<8x64xbf16>
    %c0_1 = arith.constant 0 : index
    %c0_2 = arith.constant 0 : index
    %c0_3 = arith.constant 0 : index
    %1 = vector.load %arg1[%c0_1, %c0_2, %c0_3] : memref<1x64x1024xbf16, #tpu.memory_space<vmem>>, vector<1x64x1024xbf16>
    %2 = vector.shape_cast %1 : vector<1x64x1024xbf16> to vector<64x1024xbf16>
    %cst = arith.constant dense<0.000000e+00> : vector<8x1024xf32>
    %3 = tpu.matmul %0, %2, %cst {dimension_numbers = #tpu.dot_dimension_numbers<[1], [0], [0], [1], [0, 0, 1, 1], [], []>} : vector<8x64xbf16>, vector<64x1024xbf16>, vector<8x1024xf32> -> vector<8x1024xf32>
    %c0_4 = arith.constant 0 : index
    %c0_5 = arith.constant 0 : index
    %4 = vector.load %arg3[%c0_4, %c0_5] : memref<8x1xf32, #tpu.memory_space<vmem>>, vector<8x1xf32>
    %5 = vector.broadcast %4 : vector<8x1xf32> to vector<8x1024xf32>
    %6 = arith.addf %3, %5 : vector<8x1024xf32>
    %cst_6 = arith.constant 0.000000e+00 : f32
    %7 = vector.broadcast %cst_6 : f32 to vector<8x1024xf32>
    %8 = arith.maximumf %6, %7 : vector<8x1024xf32>
    %9 = arith.truncf %8 : vector<8x1024xf32> to vector<8x1024xbf16>
    %c0_7 = arith.constant 0 : index
    %c0_8 = arith.constant 0 : index
    %10 = vector.load %arg4[%c0_7, %c0_8] : memref<256x1280xbf16, #tpu.memory_space<vmem>>, vector<256x1280xbf16>
    %11 = vector.extract_strided_slice %9 {offsets = [0, 0], sizes = [8, 256], strides = [1, 1]} : vector<8x1024xbf16> to vector<8x256xbf16>
    %cst_9 = arith.constant dense<0.000000e+00> : vector<8x1280xf32>
    %12 = tpu.matmul %11, %10, %cst_9 {dimension_numbers = #tpu.dot_dimension_numbers<[1], [0], [0], [1], [0, 0, 1, 1], [], []>} : vector<8x256xbf16>, vector<256x1280xbf16>, vector<8x1280xf32> -> vector<8x1280xf32>
    %13 = vector.extract_strided_slice %12 {offsets = [0, 0], sizes = [8, 128], strides = [1, 1]} : vector<8x1280xf32> to vector<8x128xf32>
    %14 = vector.extract_strided_slice %12 {offsets = [0, 128], sizes = [8, 128], strides = [1, 1]} : vector<8x1280xf32> to vector<8x128xf32>
    %15 = tpu.concatenate %13, %14 in 0 : vector<8x128xf32>, vector<8x128xf32> -> vector<16x128xf32>
    %16 = arith.truncf %15 : vector<16x128xf32> to vector<16x128xbf16>
    %c0_10 = arith.constant 0 : index
    %c0_11 = arith.constant 0 : index
    %17 = vector.load %arg8[%c0_10, %c0_11] : memref<80x512xbf16, #tpu.memory_space<vmem>>, vector<16x128xbf16>
    tpu.vector_store %arg8[%c0_10, %c0_11], %16 {strides = array<i32>} : memref<80x512xbf16, #tpu.memory_space<vmem>>, vector<16x128xbf16>,
    %18 = vector.extract_strided_slice %12 {offsets = [0, 256], sizes = [8, 128], strides = [1, 1]} : vector<8x1280xf32> to vector<8x128xf32>
    %19 = vector.extract_strided_slice %12 {offsets = [0, 384], sizes = [8, 128], strides = [1, 1]} : vector<8x1280xf32> to vector<8x128xf32>
    %20 = tpu.concatenate %18, %19 in 0 : vector<8x128xf32>, vector<8x128xf32> -> vector<16x128xf32>
    %21 = arith.truncf %20 : vector<16x128xf32> to vector<16x128xbf16>
    %c16 = arith.constant 16 : index
    %c0_12 = arith.constant 0 : index
    %22 = vector.load %arg8[%c16, %c0_12] : memref<80x512xbf16, #tpu.memory_space<vmem>>, vector<16x128xbf16>
    tpu.vector_store %arg8[%c16, %c0_12], %21 {strides = array<i32>} : memref<80x512xbf16, #tpu.memory_space<vmem>>, vector<16x128xbf16>,
    %23 = vector.extract_strided_slice %12 {offsets = [0, 512], sizes = [8, 128], strides = [1, 1]} : vector<8x1280xf32> to vector<8x128xf32>
    %24 = vector.extract_strided_slice %12 {offsets = [0, 640], sizes = [8, 128], strides = [1, 1]} : vector<8x1280xf32> to vector<8x128xf32>
    %25 = tpu.concatenate %23, %24 in 0 : vector<8x128xf32>, vector<8x128xf32> -> vector<16x128xf32>
    %26 = arith.truncf %25 : vector<16x128xf32> to vector<16x128xbf16>
    %c32 = arith.constant 32 : index
    %c0_13 = arith.constant 0 : index
    %27 = vector.load %arg8[%c32, %c0_13] : memref<80x512xbf16, #tpu.memory_space<vmem>>, vector<16x128xbf16>
    tpu.vector_store %arg8[%c32, %c0_13], %26 {strides = array<i32>} : memref<80x512xbf16, #tpu.memory_space<vmem>>, vector<16x128xbf16>,
    %28 = vector.extract_strided_slice %12 {offsets = [0, 768], sizes = [8, 128], strides = [1, 1]} : vector<8x1280xf32> to vector<8x128xf32>
    %29 = vector.extract_strided_slice %12 {offsets = [0, 896], sizes = [8, 128], strides = [1, 1]} : vector<8x1280xf32> to vector<8x128xf32>
    %30 = tpu.concatenate %28, %29 in 0 : vector<8x128xf32>, vector<8x128xf32> -> vector<16x128xf32>
    %31 = arith.truncf %30 : vector<16x128xf32> to vector<16x128xbf16>
    %c48 = arith.constant 48 : index
    %c0_14 = arith.constant 0 : index
    %32 = vector.load %arg8[%c48, %c0_14] : memref<80x512xbf16, #tpu.memory_space<vmem>>, vector<16x128xbf16>
    tpu.vector_store %arg8[%c48, %c0_14], %31 {strides = array<i32>} : memref<80x512xbf16, #tpu.memory_space<vmem>>, vector<16x128xbf16>,
    %33 = vector.extract_strided_slice %12 {offsets = [0, 1024], sizes = [8, 128], strides = [1, 1]} : vector<8x1280xf32> to vector<8x128xf32>
    %34 = vector.extract_strided_slice %12 {offsets = [0, 1152], sizes = [8, 128], strides = [1, 1]} : vector<8x1280xf32> to vector<8x128xf32>
    %35 = tpu.concatenate %33, %34 in 0 : vector<8x128xf32>, vector<8x128xf32> -> vector<16x128xf32>
    %36 = arith.truncf %35 : vector<16x128xf32> to vector<16x128xbf16>
    %c64 = arith.constant 64 : index
    %c0_15 = arith.constant 0 : index
    %37 = vector.load %arg8[%c64, %c0_15] : memref<80x512xbf16, #tpu.memory_space<vmem>>, vector<16x128xbf16>
    tpu.vector_store %arg8[%c64, %c0_15], %36 {strides = array<i32>} : memref<80x512xbf16, #tpu.memory_space<vmem>>, vector<16x128xbf16>,
    %38 = vector.extract_strided_slice %9 {offsets = [0, 256], sizes = [8, 256], strides = [1, 1]} : vector<8x1024xbf16> to vector<8x256xbf16>
    %cst_16 = arith.constant dense<0.000000e+00> : vector<8x1280xf32>
    %39 = tpu.matmul %38, %10, %cst_16 {dimension_numbers = #tpu.dot_dimension_numbers<[1], [0], [0], [1], [0, 0, 1, 1], [], []>} : vector<8x256xbf16>, vector<256x1280xbf16>, vector<8x1280xf32> -> vector<8x1280xf32>
    %40 = vector.extract_strided_slice %39 {offsets = [0, 0], sizes = [8, 128], strides = [1, 1]} : vector<8x1280xf32> to vector<8x128xf32>
    %41 = vector.extract_strided_slice %39 {offsets = [0, 128], sizes = [8, 128], strides = [1, 1]} : vector<8x1280xf32> to vector<8x128xf32>
    %42 = tpu.concatenate %40, %41 in 0 : vector<8x128xf32>, vector<8x128xf32> -> vector<16x128xf32>
    %43 = arith.truncf %42 : vector<16x128xf32> to vector<16x128xbf16>
    %c0_17 = arith.constant 0 : index
    %c128 = arith.constant 128 : index
    %44 = vector.load %arg8[%c0_17, %c128] : memref<80x512xbf16, #tpu.memory_space<vmem>>, vector<16x128xbf16>
    tpu.vector_store %arg8[%c0_17, %c128], %43 {strides = array<i32>} : memref<80x512xbf16, #tpu.memory_space<vmem>>, vector<16x128xbf16>,
    %45 = vector.extract_strided_slice %39 {offsets = [0, 256], sizes = [8, 128], strides = [1, 1]} : vector<8x1280xf32> to vector<8x128xf32>
    %46 = vector.extract_strided_slice %39 {offsets = [0, 384], sizes = [8, 128], strides = [1, 1]} : vector<8x1280xf32> to vector<8x128xf32>
    %47 = tpu.concatenate %45, %46 in 0 : vector<8x128xf32>, vector<8x128xf32> -> vector<16x128xf32>
    %48 = arith.truncf %47 : vector<16x128xf32> to vector<16x128xbf16>
    %c16_18 = arith.constant 16 : index
    %c128_19 = arith.constant 128 : index
    %49 = vector.load %arg8[%c16_18, %c128_19] : memref<80x512xbf16, #tpu.memory_space<vmem>>, vector<16x128xbf16>
    tpu.vector_store %arg8[%c16_18, %c128_19], %48 {strides = array<i32>} : memref<80x512xbf16, #tpu.memory_space<vmem>>, vector<16x128xbf16>,
    %50 = vector.extract_strided_slice %39 {offsets = [0, 512], sizes = [8, 128], strides = [1, 1]} : vector<8x1280xf32> to vector<8x128xf32>
    %51 = vector.extract_strided_slice %39 {offsets = [0, 640], sizes = [8, 128], strides = [1, 1]} : vector<8x1280xf32> to vector<8x128xf32>
    %52 = tpu.concatenate %50, %51 in 0 : vector<8x128xf32>, vector<8x128xf32> -> vector<16x128xf32>
    %53 = arith.truncf %52 : vector<16x128xf32> to vector<16x128xbf16>
    %c32_20 = arith.constant 32 : index
    %c128_21 = arith.constant 128 : index
    %54 = vector.load %arg8[%c32_20, %c128_21] : memref<80x512xbf16, #tpu.memory_space<vmem>>, vector<16x128xbf16>
    tpu.vector_store %arg8[%c32_20, %c128_21], %53 {strides = array<i32>} : memref<80x512xbf16, #tpu.memory_space<vmem>>, vector<16x128xbf16>,
    %55 = vector.extract_strided_slice %39 {offsets = [0, 768], sizes = [8, 128], strides = [1, 1]} : vector<8x1280xf32> to vector<8x128xf32>
    %56 = vector.extract_strided_slice %39 {offsets = [0, 896], sizes = [8, 128], strides = [1, 1]} : vector<8x1280xf32> to vector<8x128xf32>
    %57 = tpu.concatenate %55, %56 in 0 : vector<8x128xf32>, vector<8x128xf32> -> vector<16x128xf32>
    %58 = arith.truncf %57 : vector<16x128xf32> to vector<16x128xbf16>
    %c48_22 = arith.constant 48 : index
    %c128_23 = arith.constant 128 : index
    %59 = vector.load %arg8[%c48_22, %c128_23] : memref<80x512xbf16, #tpu.memory_space<vmem>>, vector<16x128xbf16>
    tpu.vector_store %arg8[%c48_22, %c128_23], %58 {strides = array<i32>} : memref<80x512xbf16, #tpu.memory_space<vmem>>, vector<16x128xbf16>,
    %60 = vector.extract_strided_slice %39 {offsets = [0, 1024], sizes = [8, 128], strides = [1, 1]} : vector<8x1280xf32> to vector<8x128xf32>
    %61 = vector.extract_strided_slice %39 {offsets = [0, 1152], sizes = [8, 128], strides = [1, 1]} : vector<8x1280xf32> to vector<8x128xf32>
    %62 = tpu.concatenate %60, %61 in 0 : vector<8x128xf32>, vector<8x128xf32> -> vector<16x128xf32>
    %63 = arith.truncf %62 : vector<16x128xf32> to vector<16x128xbf16>
    %c64_24 = arith.constant 64 : index
    %c128_25 = arith.constant 128 : index
    %64 = vector.load %arg8[%c64_24, %c128_25] : memref<80x512xbf16, #tpu.memory_space<vmem>>, vector<16x128xbf16>
    tpu.vector_store %arg8[%c64_24, %c128_25], %63 {strides = array<i32>} : memref<80x512xbf16, #tpu.memory_space<vmem>>, vector<16x128xbf16>,
    %65 = vector.extract_strided_slice %9 {offsets = [0, 512], sizes = [8, 256], strides = [1, 1]} : vector<8x1024xbf16> to vector<8x256xbf16>
    %cst_26 = arith.constant dense<0.000000e+00> : vector<8x1280xf32>
    %66 = tpu.matmul %65, %10, %cst_26 {dimension_numbers = #tpu.dot_dimension_numbers<[1], [0], [0], [1], [0, 0, 1, 1], [], []>} : vector<8x256xbf16>, vector<256x1280xbf16>, vector<8x1280xf32> -> vector<8x1280xf32>
    %67 = vector.extract_strided_slice %66 {offsets = [0, 0], sizes = [8, 128], strides = [1, 1]} : vector<8x1280xf32> to vector<8x128xf32>
    %68 = vector.extract_strided_slice %66 {offsets = [0, 128], sizes = [8, 128], strides = [1, 1]} : vector<8x1280xf32> to vector<8x128xf32>
    %69 = tpu.concatenate %67, %68 in 0 : vector<8x128xf32>, vector<8x128xf32> -> vector<16x128xf32>
    %70 = arith.truncf %69 : vector<16x128xf32> to vector<16x128xbf16>
    %c0_27 = arith.constant 0 : index
    %c256 = arith.constant 256 : index
    %71 = vector.load %arg8[%c0_27, %c256] : memref<80x512xbf16, #tpu.memory_space<vmem>>, vector<16x128xbf16>
    tpu.vector_store %arg8[%c0_27, %c256], %70 {strides = array<i32>} : memref<80x512xbf16, #tpu.memory_space<vmem>>, vector<16x128xbf16>,
    %72 = vector.extract_strided_slice %66 {offsets = [0, 256], sizes = [8, 128], strides = [1, 1]} : vector<8x1280xf32> to vector<8x128xf32>
    %73 = vector.extract_strided_slice %66 {offsets = [0, 384], sizes = [8, 128], strides = [1, 1]} : vector<8x1280xf32> to vector<8x128xf32>
    %74 = tpu.concatenate %72, %73 in 0 : vector<8x128xf32>, vector<8x128xf32> -> vector<16x128xf32>
    %75 = arith.truncf %74 : vector<16x128xf32> to vector<16x128xbf16>
    %c16_28 = arith.constant 16 : index
    %c256_29 = arith.constant 256 : index
    %76 = vector.load %arg8[%c16_28, %c256_29] : memref<80x512xbf16, #tpu.memory_space<vmem>>, vector<16x128xbf16>
    tpu.vector_store %arg8[%c16_28, %c256_29], %75 {strides = array<i32>} : memref<80x512xbf16, #tpu.memory_space<vmem>>, vector<16x128xbf16>,
    %77 = vector.extract_strided_slice %66 {offsets = [0, 512], sizes = [8, 128], strides = [1, 1]} : vector<8x1280xf32> to vector<8x128xf32>
    %78 = vector.extract_strided_slice %66 {offsets = [0, 640], sizes = [8, 128], strides = [1, 1]} : vector<8x1280xf32> to vector<8x128xf32>
    %79 = tpu.concatenate %77, %78 in 0 : vector<8x128xf32>, vector<8x128xf32> -> vector<16x128xf32>
    %80 = arith.truncf %79 : vector<16x128xf32> to vector<16x128xbf16>
    %c32_30 = arith.constant 32 : index
    %c256_31 = arith.constant 256 : index
    %81 = vector.load %arg8[%c32_30, %c256_31] : memref<80x512xbf16, #tpu.memory_space<vmem>>, vector<16x128xbf16>
    tpu.vector_store %arg8[%c32_30, %c256_31], %80 {strides = array<i32>} : memref<80x512xbf16, #tpu.memory_space<vmem>>, vector<16x128xbf16>,
    %82 = vector.extract_strided_slice %66 {offsets = [0, 768], sizes = [8, 128], strides = [1, 1]} : vector<8x1280xf32> to vector<8x128xf32>
    %83 = vector.extract_strided_slice %66 {offsets = [0, 896], sizes = [8, 128], strides = [1, 1]} : vector<8x1280xf32> to vector<8x128xf32>
    %84 = tpu.concatenate %82, %83 in 0 : vector<8x128xf32>, vector<8x128xf32> -> vector<16x128xf32>
    %85 = arith.truncf %84 : vector<16x128xf32> to vector<16x128xbf16>
    %c48_32 = arith.constant 48 : index
    %c256_33 = arith.constant 256 : index
    %86 = vector.load %arg8[%c48_32, %c256_33] : memref<80x512xbf16, #tpu.memory_space<vmem>>, vector<16x128xbf16>
    tpu.vector_store %arg8[%c48_32, %c256_33], %85 {strides = array<i32>} : memref<80x512xbf16, #tpu.memory_space<vmem>>, vector<16x128xbf16>,
    %87 = vector.extract_strided_slice %66 {offsets = [0, 1024], sizes = [8, 128], strides = [1, 1]} : vector<8x1280xf32> to vector<8x128xf32>
    %88 = vector.extract_strided_slice %66 {offsets = [0, 1152], sizes = [8, 128], strides = [1, 1]} : vector<8x1280xf32> to vector<8x128xf32>
    %89 = tpu.concatenate %87, %88 in 0 : vector<8x128xf32>, vector<8x128xf32> -> vector<16x128xf32>
    %90 = arith.truncf %89 : vector<16x128xf32> to vector<16x128xbf16>
    %c64_34 = arith.constant 64 : index
    %c256_35 = arith.constant 256 : index
    %91 = vector.load %arg8[%c64_34, %c256_35] : memref<80x512xbf16, #tpu.memory_space<vmem>>, vector<16x128xbf16>
    tpu.vector_store %arg8[%c64_34, %c256_35], %90 {strides = array<i32>} : memref<80x512xbf16, #tpu.memory_space<vmem>>, vector<16x128xbf16>,
    %92 = vector.extract_strided_slice %9 {offsets = [0, 768], sizes = [8, 256], strides = [1, 1]} : vector<8x1024xbf16> to vector<8x256xbf16>
    %cst_36 = arith.constant dense<0.000000e+00> : vector<8x1280xf32>
    %93 = tpu.matmul %92, %10, %cst_36 {dimension_numbers = #tpu.dot_dimension_numbers<[1], [0], [0], [1], [0, 0, 1, 1], [], []>} : vector<8x256xbf16>, vector<256x1280xbf16>, vector<8x1280xf32> -> vector<8x1280xf32>
    %94 = vector.extract_strided_slice %93 {offsets = [0, 0], sizes = [8, 128], strides = [1, 1]} : vector<8x1280xf32> to vector<8x128xf32>
    %95 = vector.extract_strided_slice %93 {offsets = [0, 128], sizes = [8, 128], strides = [1, 1]} : vector<8x1280xf32> to vector<8x128xf32>
    %96 = tpu.concatenate %94, %95 in 0 : vector<8x128xf32>, vector<8x128xf32> -> vector<16x128xf32>
    %97 = arith.truncf %96 : vector<16x128xf32> to vector<16x128xbf16>
    %c0_37 = arith.constant 0 : index
    %c384 = arith.constant 384 : index
    %98 = vector.load %arg8[%c0_37, %c384] : memref<80x512xbf16, #tpu.memory_space<vmem>>, vector<16x128xbf16>
    tpu.vector_store %arg8[%c0_37, %c384], %97 {strides = array<i32>} : memref<80x512xbf16, #tpu.memory_space<vmem>>, vector<16x128xbf16>,
    %99 = vector.extract_strided_slice %93 {offsets = [0, 256], sizes = [8, 128], strides = [1, 1]} : vector<8x1280xf32> to vector<8x128xf32>
    %100 = vector.extract_strided_slice %93 {offsets = [0, 384], sizes = [8, 128], strides = [1, 1]} : vector<8x1280xf32> to vector<8x128xf32>
    %101 = tpu.concatenate %99, %100 in 0 : vector<8x128xf32>, vector<8x128xf32> -> vector<16x128xf32>
    %102 = arith.truncf %101 : vector<16x128xf32> to vector<16x128xbf16>
    %c16_38 = arith.constant 16 : index
    %c384_39 = arith.constant 384 : index
    %103 = vector.load %arg8[%c16_38, %c384_39] : memref<80x512xbf16, #tpu.memory_space<vmem>>, vector<16x128xbf16>
    tpu.vector_store %arg8[%c16_38, %c384_39], %102 {strides = array<i32>} : memref<80x512xbf16, #tpu.memory_space<vmem>>, vector<16x128xbf16>,
    %104 = vector.extract_strided_slice %93 {offsets = [0, 512], sizes = [8, 128], strides = [1, 1]} : vector<8x1280xf32> to vector<8x128xf32>
    %105 = vector.extract_strided_slice %93 {offsets = [0, 640], sizes = [8, 128], strides = [1, 1]} : vector<8x1280xf32> to vector<8x128xf32>
    %106 = tpu.concatenate %104, %105 in 0 : vector<8x128xf32>, vector<8x128xf32> -> vector<16x128xf32>
    %107 = arith.truncf %106 : vector<16x128xf32> to vector<16x128xbf16>
    %c32_40 = arith.constant 32 : index
    %c384_41 = arith.constant 384 : index
    %108 = vector.load %arg8[%c32_40, %c384_41] : memref<80x512xbf16, #tpu.memory_space<vmem>>, vector<16x128xbf16>
    tpu.vector_store %arg8[%c32_40, %c384_41], %107 {strides = array<i32>} : memref<80x512xbf16, #tpu.memory_space<vmem>>, vector<16x128xbf16>,
    %109 = vector.extract_strided_slice %93 {offsets = [0, 768], sizes = [8, 128], strides = [1, 1]} : vector<8x1280xf32> to vector<8x128xf32>
    %110 = vector.extract_strided_slice %93 {offsets = [0, 896], sizes = [8, 128], strides = [1, 1]} : vector<8x1280xf32> to vector<8x128xf32>
    %111 = tpu.concatenate %109, %110 in 0 : vector<8x128xf32>, vector<8x128xf32> -> vector<16x128xf32>
    %112 = arith.truncf %111 : vector<16x128xf32> to vector<16x128xbf16>
    %c48_42 = arith.constant 48 : index
    %c384_43 = arith.constant 384 : index
    %113 = vector.load %arg8[%c48_42, %c384_43] : memref<80x512xbf16, #tpu.memory_space<vmem>>, vector<16x128xbf16>
    tpu.vector_store %arg8[%c48_42, %c384_43], %112 {strides = array<i32>} : memref<80x512xbf16, #tpu.memory_space<vmem>>, vector<16x128xbf16>,
    %114 = vector.extract_strided_slice %93 {offsets = [0, 1024], sizes = [8, 128], strides = [1, 1]} : vector<8x1280xf32> to vector<8x128xf32>
    %115 = vector.extract_strided_slice %93 {offsets = [0, 1152], sizes = [8, 128], strides = [1, 1]} : vector<8x1280xf32> to vector<8x128xf32>
    %116 = tpu.concatenate %114, %115 in 0 : vector<8x128xf32>, vector<8x128xf32> -> vector<16x128xf32>
    %117 = arith.truncf %116 : vector<16x128xf32> to vector<16x128xbf16>
    %c64_44 = arith.constant 64 : index
    %c384_45 = arith.constant 384 : index
    %118 = vector.load %arg8[%c64_44, %c384_45] : memref<80x512xbf16, #tpu.memory_space<vmem>>, vector<16x128xbf16>
    tpu.vector_store %arg8[%c64_44, %c384_45], %117 {strides = array<i32>} : memref<80x512xbf16, #tpu.memory_space<vmem>>, vector<16x128xbf16>,
    %c0_46 = arith.constant 0 : index
    %c0_47 = arith.constant 0 : index
    %119 = vector.load %arg5[%c0_46, %c0_47] : memref<32x80xbf16, #tpu.memory_space<vmem>>, vector<32x80xbf16>
    %c0_48 = arith.constant 0 : index
    %c0_49 = arith.constant 0 : index
    %120 = vector.load %arg8[%c0_48, %c0_49] : memref<80x512xbf16, #tpu.memory_space<vmem>>, vector<80x512xbf16>
    %cst_50 = arith.constant dense<0.000000e+00> : vector<32x512xf32>
    %121 = tpu.matmul %119, %120, %cst_50 {dimension_numbers = #tpu.dot_dimension_numbers<[1], [0], [0], [1], [0, 0, 1, 1], [], []>} : vector<32x80xbf16>, vector<80x512xbf16>, vector<32x512xf32> -> vector<32x512xf32>
    %c0_51 = arith.constant 0 : index
    %c0_52 = arith.constant 0 : index
    %122 = vector.load %arg6[%c0_51, %c0_52] : memref<32x1xf32, #tpu.memory_space<vmem>>, vector<32x1xf32>
    %123 = vector.broadcast %122 : vector<32x1xf32> to vector<32x512xf32>
    %124 = arith.addf %121, %123 : vector<32x512xf32>
    %cst_53 = arith.constant 0.000000e+00 : f32
    %125 = vector.broadcast %cst_53 : f32 to vector<32x512xf32>
    %126 = arith.maximumf %124, %125 : vector<32x512xf32>
    %c0_54 = arith.constant 0 : index
    %c0_55 = arith.constant 0 : index
    %c0_56 = arith.constant 0 : index
    %127 = vector.load %arg7[%c0_54, %c0_55, %c0_56] : memref<1x32x512xf32, #tpu.memory_space<vmem>>, vector<1x32x512xf32>
    %128 = vector.shape_cast %127 : vector<1x32x512xf32> to vector<32x512xf32>
    %129 = vector.shape_cast %126 : vector<32x512xf32> to vector<1x32x512xf32>
    tpu.vector_store %arg7[%c0_54, %c0_55, %c0_56], %129 {strides = array<i32>} : memref<1x32x512xf32, #tpu.memory_space<vmem>>, vector<1x32x512xf32>,
    return
  }
  func.func @transform_0(%arg0: i32) -> (i32, i32, i32) {
    %c0_i32 = arith.constant 0 : i32
    %c0_i32_0 = arith.constant 0 : i32
    %c0_i32_1 = arith.constant 0 : i32
    return %arg0, %c0_i32, %c0_i32_0 : i32, i32, i32
  }
  func.func @transform_1(%arg0: i32) -> (i32, i32) {
    %c0_i32 = arith.constant 0 : i32
    %c0_i32_0 = arith.constant 0 : i32
    %c0_i32_1 = arith.constant 0 : i32
    return %c0_i32, %c0_i32_0 : i32, i32
  }
  func.func @transform_2(%arg0: i32) -> (i32, i32) {
    %c0_i32 = arith.constant 0 : i32
    %c0_i32_0 = arith.constant 0 : i32
    %c0_i32_1 = arith.constant 0 : i32
    return %c0_i32, %c0_i32_0 : i32, i32
  }
  func.func @transform_3(%arg0: i32) -> (i32, i32) {
    %c0_i32 = arith.constant 0 : i32
    %c0_i32_0 = arith.constant 0 : i32
    %c0_i32_1 = arith.constant 0 : i32
    return %c0_i32, %c0_i32_0 : i32, i32
  }
  func.func @transform_4(%arg0: i32) -> (i32, i32) {
    %c0_i32 = arith.constant 0 : i32
    %c0_i32_0 = arith.constant 0 : i32
    %c0_i32_1 = arith.constant 0 : i32
    return %c0_i32, %c0_i32_0 : i32, i32
  }
  func.func @transform_5(%arg0: i32) -> (i32, i32) {
    %c0_i32 = arith.constant 0 : i32
    %c0_i32_0 = arith.constant 0 : i32
    %c0_i32_1 = arith.constant 0 : i32
    return %c0_i32, %c0_i32_0 : i32, i32
  }
  func.func @transform_6(%arg0: i32) -> (i32, i32, i32) {
    %c0_i32 = arith.constant 0 : i32
    %c0_i32_0 = arith.constant 0 : i32
    %c0_i32_1 = arith.constant 0 : i32
    return %arg0, %c0_i32, %c0_i32_0 : i32, i32, i32
  }
}

</mosaic_0001>

<llo_original>
// kernel: tpu_custom_call.1
$region0: #{tpu_custom_call.1}
  #allocation0 [shape = 'u32[]', space=smem, size = 0x4, offset = 0x4, fixed_abs, tag = 'smem constant byte address 0x4 - core index']
  #allocation1 [shape = 'u32[144,128]{1,0:T(1,128)}', space=vmem, size = 0x12000, scoped, tag = 'internal scratch']
  #allocation2 [shape = 'bf16[80,512]{1,0:T(8,128)(2,1)}', space=vmem, size = 0x14000, scoped, tag = 'scratch operand']
  %s0 = inlined_call_operand.hbm [shape: bf16[2,64,1024], index: 0, kind: input, shape index: {}]
  %s1 = inlined_call_operand.vmem [shape: bf16[8,64], index: 1, kind: input, shape index: {}]
  %s2 = inlined_call_operand.vmem [shape: f32[8,1], index: 2, kind: input, shape index: {}]
  %s3 = inlined_call_operand.hbm [shape: bf16[256,1280], index: 3, kind: input, shape index: {}]
  %s4 = inlined_call_operand.vmem [shape: bf16[32,80], index: 4, kind: input, shape index: {}]
  %s5 = inlined_call_operand.vmem [shape: f32[32,1], index: 5, kind: input, shape index: {}]
  %s6 = inlined_call_operand.hbm [shape: f32[2,32,512], index: 6, kind: output, shape index: {}]
  %s7 = sld [smem:[#allocation0]]
  $region65: #{tpu_custom_call.1} parent=0
    _
  %s9 = ssub.s32 1, %s7
  %s10 = scalar_select 0, %s9, %s7
  $region1: #{tpu_custom_call.1} parent=0
    #allocation3 [shape = 'u8[262144]{0}', space=vmem, size = 0x40000, scoped, tag = 'input window, operand 0']
    #allocation4 [shape = 's32[2]{0}', space=sflag, size = 0x8, scoped, tag = 'scoped memory for tpu_custom_call.1']
    #allocation5 [shape = 's32[2]{0}', space=sflag, size = 0x8, scoped, tag = 'scoped memory for tpu_custom_call.1']
    #allocation6 [shape = 'u8[655360]{0}', space=vmem, size = 0xa0000, scoped, tag = 'input window, operand 3, single buffered']
    #allocation7 [shape = 's32[1]{0}', space=sflag, size = 0x4, scoped, tag = 'scoped memory for tpu_custom_call.1']
    #allocation8 [shape = 'u8[131072]{0}', space=vmem, size = 0x20000, scoped, tag = 'output window, operand 0']
    %11 = vsyncpa [#allocation4], 0
    %s12 = scalar_lea.sflag [#allocation4], 1
    %13 = vsyncpa %s12, 0
    %14 = vsyncpa [#allocation7], 0
    %15 = vsyncpa [#allocation5], 0
    %s16 = scalar_lea.sflag [#allocation5], 1
    %17 = vsyncpa %s16, 0
    loop: start=0, step=1, limit=4
    $region2: #{tpu_custom_call.1} parent=1 // loop_pre_header
      _
    $region3: #{tpu_custom_call.1} parent=1 // loop_header
      %s19 = sphi 0, %s23
      %p20 = scmp.ge.s32.totalorder %s19, 4
      %s29 = sphi 0, %s31
      %s32 = sphi 0, %s29
      %s33 = sphi 0, %s32
      %s49 = sphi 0, %s33
      %s53 = sphi 0, %s53
      %s55 = sphi 0, %s53
      %s56 = sphi 0, %s55
      %s70 = sphi 0, %s56
      %s74 = sphi 0, %s74
      %s76 = sphi 0, %s74
      %s77 = sphi 0, %s76
      %s91 = sphi 0, %s77
      %s95 = sphi 0, %s95
      %s97 = sphi 0, %s95
      %s98 = sphi 0, %s97
      %s112 = sphi 0, %s98
      %s116 = sphi 0, %s116
      %s118 = sphi 0, %s116
      %s119 = sphi 0, %s118
      %s133 = sphi 0, %s119
      %s137 = sphi 0, %s137
      %s139 = sphi 0, %s137
      %s140 = sphi 0, %s139
      %s154 = sphi 0, %s140
      %s160 = sphi 0, %s162
      %s163 = sphi 0, %s160
      %s164 = sphi 0, %s163
      %s180 = sphi 0, %s164
    $region4: #{tpu_custom_call.1} parent=1 // loop_header_branch
      %22 = sbr.rel (%p20) target = $region8
    $region5: #{tpu_custom_call.1} parent=1 // loop_body
      %s24 = ssub.s32 %s19, 1
      %s25 = ssub.s32 %s19, 2
      %s26 = sadd.s32 %s19, 1
      %s27 = ssub.s32 %s19, %s26
      %p28 = scmp.eq.s32.totalorder %s27, 0
      %s30 = sadd.s32 %s29, 1
      %s31 = scalar_select %p28, %s29, %s30
      %p34 = pneg %p28
      %p35 = scmp.eq.s32.totalorder %s19, 1
      %p36 = por %p34, %p35
      %p37 = scmp.ne.s32.totalorder %s29, %s32
      %p38 = scmp.eq.s32.totalorder %s19, 0
      %p39 = por %p37, %p38
      %p40 = scmp.ne.s32.totalorder %s29, %s32
      %p41 = scmp.eq.s32.totalorder %s24, 1
      %p42 = por %p40, %p41
      %p43 = scmp.ne.s32.totalorder %s32, %s33
      %p44 = scmp.eq.s32.totalorder %s24, 0
      %p45 = por %p43, %p44
      %p46 = scmp.ne.s32.totalorder %s32, %s33
      %p47 = scmp.eq.s32.totalorder %s25, 1
      %p48 = por %p46, %p47
      %p50 = scmp.ne.s32.totalorder %s33, %s49
      %p51 = scmp.eq.s32.totalorder %s25, 0
      %p52 = por %p50, %p51
      %s54 = sadd.s32 %s53, 1
      %p57 = scmp.eq.s32.totalorder %s19, 1
      %p58 = scmp.ne.s32.totalorder %s53, %s55
      %p59 = scmp.eq.s32.totalorder %s19, 0
      %p60 = por %p58, %p59
      %p61 = scmp.ne.s32.totalorder %s53, %s55
      %p62 = scmp.eq.s32.totalorder %s24, 1
      %p63 = por %p61, %p62
      %p64 = scmp.ne.s32.totalorder %s55, %s56
      %p65 = scmp.eq.s32.totalorder %s24, 0
      %p66 = por %p64, %p65
      %p67 = scmp.ne.s32.totalorder %s55, %s56
      %p68 = scmp.eq.s32.totalorder %s25, 1
      %p69 = por %p67, %p68
      %p71 = scmp.ne.s32.totalorder %s56, %s70
      %p72 = scmp.eq.s32.totalorder %s25, 0
      %p73 = por %p71, %p72
      %s75 = sadd.s32 %s74, 1
      %p78 = scmp.eq.s32.totalorder %s19, 1
      %p79 = scmp.ne.s32.totalorder %s74, %s76
      %p80 = scmp.eq.s32.totalorder %s19, 0
      %p81 = por %p79, %p80
      %p82 = scmp.ne.s32.totalorder %s74, %s76
      %p83 = scmp.eq.s32.totalorder %s24, 1
      %p84 = por %p82, %p83
      %p85 = scmp.ne.s32.totalorder %s76, %s77
      %p86 = scmp.eq.s32.totalorder %s24, 0
      %p87 = por %p85, %p86
      %p88 = scmp.ne.s32.totalorder %s76, %s77
      %p89 = scmp.eq.s32.totalorder %s25, 1
      %p90 = por %p88, %p89
      %p92 = scmp.ne.s32.totalorder %s77, %s91
      %p93 = scmp.eq.s32.totalorder %s25, 0
      %p94 = por %p92, %p93
      %s96 = sadd.s32 %s95, 1
      %p99 = scmp.eq.s32.totalorder %s19, 1
      %p100 = scmp.ne.s32.totalorder %s95, %s97
      %p101 = scmp.eq.s32.totalorder %s19, 0
      %p102 = por %p100, %p101
      %p103 = scmp.ne.s32.totalorder %s95, %s97
      %p104 = scmp.eq.s32.totalorder %s24, 1
      %p105 = por %p103, %p104
      %p106 = scmp.ne.s32.totalorder %s97, %s98
      %p107 = scmp.eq.s32.totalorder %s24, 0
      %p108 = por %p106, %p107
      %p109 = scmp.ne.s32.totalorder %s97, %s98
      %p110 = scmp.eq.s32.totalorder %s25, 1
      %p111 = por %p109, %p110
      %p113 = scmp.ne.s32.totalorder %s98, %s112
      %p114 = scmp.eq.s32.totalorder %s25, 0
      %p115 = por %p113, %p114
      %s117 = sadd.s32 %s116, 1
      %p120 = scmp.eq.s32.totalorder %s19, 1
      %p121 = scmp.ne.s32.totalorder %s116, %s118
      %p122 = scmp.eq.s32.totalorder %s19, 0
      %p123 = por %p121, %p122
      %p124 = scmp.ne.s32.totalorder %s116, %s118
      %p125 = scmp.eq.s32.totalorder %s24, 1
      %p126 = por %p124, %p125
      %p127 = scmp.ne.s32.totalorder %s118, %s119
      %p128 = scmp.eq.s32.totalorder %s24, 0
      %p129 = por %p127, %p128
      %p130 = scmp.ne.s32.totalorder %s118, %s119
      %p131 = scmp.eq.s32.totalorder %s25, 1
      %p132 = por %p130, %p131
      %p134 = scmp.ne.s32.totalorder %s119, %s133
      %p135 = scmp.eq.s32.totalorder %s25, 0
      %p136 = por %p134, %p135
      %s138 = sadd.s32 %s137, 1
      %p141 = scmp.eq.s32.totalorder %s19, 1
      %p142 = scmp.ne.s32.totalorder %s137, %s139
      %p143 = scmp.eq.s32.totalorder %s19, 0
      %p144 = por %p142, %p143
      %p145 = scmp.ne.s32.totalorder %s137, %s139
      %p146 = scmp.eq.s32.totalorder %s24, 1
      %p147 = por %p145, %p146
      %p148 = scmp.ne.s32.totalorder %s139, %s140
      %p149 = scmp.eq.s32.totalorder %s24, 0
      %p150 = por %p148, %p149
      %p151 = scmp.ne.s32.totalorder %s139, %s140
      %p152 = scmp.eq.s32.totalorder %s25, 1
      %p153 = por %p151, %p152
      %p155 = scmp.ne.s32.totalorder %s140, %s154
      %p156 = scmp.eq.s32.totalorder %s25, 0
      %p157 = por %p155, %p156
      %s158 = ssub.s32 %s19, %s26
      %p159 = scmp.eq.s32.totalorder %s158, 0
      %s161 = sadd.s32 %s160, 1
      %s162 = scalar_select %p159, %s160, %s161
      %p165 = pneg %p159
      %p166 = scmp.eq.s32.totalorder %s19, 1
      %p167 = por %p165, %p166
      %p168 = scmp.ne.s32.totalorder %s160, %s163
      %p169 = scmp.eq.s32.totalorder %s19, 0
      %p170 = por %p168, %p169
      %p171 = scmp.ne.s32.totalorder %s160, %s163
      %p172 = scmp.eq.s32.totalorder %s24, 1
      %p173 = por %p171, %p172
      %p174 = scmp.ne.s32.totalorder %s163, %s164
      %p175 = scmp.eq.s32.totalorder %s24, 0
      %p176 = por %p174, %p175
      %p177 = scmp.ne.s32.totalorder %s163, %s164
      %p178 = scmp.eq.s32.totalorder %s25, 1
      %p179 = por %p177, %p178
      %p181 = scmp.ne.s32.totalorder %s164, %s180
      %p182 = scmp.eq.s32.totalorder %s25, 0
      %p183 = por %p181, %p182
      %p184 = scmp.le.s32.totalorder 1, %s19
      %p185 = scmp.lt.s32.totalorder %s19, 3
      %p186 = pnand %p184, %p185
      %p187 = pneg %p186
      // Predicated region
      $region9: #{tpu_custom_call.1} parent=5 // pred_check
        _
      $region10: #{tpu_custom_call.1} parent=5 // pred_check_branch
        %189 = sbr.rel (%p186) target = $region12
      $region11: #{tpu_custom_call.1} parent=5 // pred_region
        %s190 = ssub.s32 %s19, 1
        // Predicated region
        $region13: #{tpu_custom_call.1} parent=11 // pred_check
          %p191 = pneg %p66
        $region14: #{tpu_custom_call.1} parent=11 // pred_check_branch
          %193 = sbr.rel (%p191) target = $region16
        $region15: #{tpu_custom_call.1} parent=11 // pred_region
          _
        $region16: #{tpu_custom_call.1} parent=11 // pred_fallthru
          _
        // Predicated region
        $region17: #{tpu_custom_call.1} parent=11 // pred_check
          %p194 = pneg %p87
        $region18: #{tpu_custom_call.1} parent=11 // pred_check_branch
          %196 = sbr.rel (%p194) target = $region20
        $region19: #{tpu_custom_call.1} parent=11 // pred_region
          _
        $region20: #{tpu_custom_call.1} parent=11 // pred_fallthru
          _
        // Predicated region
        $region21: #{tpu_custom_call.1} parent=11 // pred_check
          %p197 = pneg %p108
        $region22: #{tpu_custom_call.1} parent=11 // pred_check_branch
          %199 = sbr.rel (%p197) target = $region24
        $region23: #{tpu_custom_call.1} parent=11 // pred_region
          %s201 = ssub.s32 20480, 20480
          %202 = vsyncadd [#allocation7], %s201
          %s203 = sshll.u32 [#allocation6], 4
          %s204 = int_to_ptr.vmem [resolvable:$true] %s203
          %209 = dma.hbm_to_vmem [thread:$0]  %s3, 20480, %s204, [#allocation7], 640, 640, 40
        $region24: #{tpu_custom_call.1} parent=11 // pred_fallthru
          _
        // Predicated region
        $region25: #{tpu_custom_call.1} parent=11 // pred_check
          %p210 = pneg %p129
        $region26: #{tpu_custom_call.1} parent=11 // pred_check_branch
          %212 = sbr.rel (%p210) target = $region28
        $region27: #{tpu_custom_call.1} parent=11 // pred_region
          _
        $region28: #{tpu_custom_call.1} parent=11 // pred_fallthru
          _
        // Predicated region
        $region29: #{tpu_custom_call.1} parent=11 // pred_check
          %p213 = pneg %p150
        $region30: #{tpu_custom_call.1} parent=11 // pred_check_branch
          %215 = sbr.rel (%p213) target = $region32
        $region31: #{tpu_custom_call.1} parent=11 // pred_region
          _
        $region32: #{tpu_custom_call.1} parent=11 // pred_fallthru
          _
      $region12: #{tpu_custom_call.1} parent=5 // pred_fallthru
        _
      %p216 = scmp.lt.s32.totalorder %s19, 2
      // Predicated region
      $region33: #{tpu_custom_call.1} parent=5 // pred_check
        %p217 = pneg %p216
      $region34: #{tpu_custom_call.1} parent=5 // pred_check_branch
        %219 = sbr.rel (%p217) target = $region36
      $region35: #{tpu_custom_call.1} parent=5 // pred_region
        // Predicated region
        $region37: #{tpu_custom_call.1} parent=35 // pred_check
          %p220 = pneg %p39
        $region38: #{tpu_custom_call.1} parent=35 // pred_check_branch
          %222 = sbr.rel (%p220) target = $region40
        $region39: #{tpu_custom_call.1} parent=35 // pred_region
          %s223 = sand.u32 %s29, 1
          %s224 = scalar_lea.sflag [#allocation4], %s223
          %s225 = sand.u32 %s29, 1
          %s226 = smul.addr %s225, 256
          %s227 = scalar_lea.vmem [#allocation3], %s226
          %s229 = ssub.s32 4096, 4096
          %230 = vsyncadd %s224, %s229
          %s231 = smul.addr %s19, 64
          %s232 = smul.addr %s231, 64
          %s233 = scalar_lea.hbm %s0, %s232
          %s234 = sshll.u32 %s227, 4
          %s235 = int_to_ptr.vmem [resolvable:$true] %s234
          %240 = dma.hbm_to_vmem [thread:$0]  %s233, 4096, %s235, %s224, 512, 512, 32
        $region40: #{tpu_custom_call.1} parent=35 // pred_fallthru
          _
      $region36: #{tpu_custom_call.1} parent=5 // pred_fallthru
        _
      %p241 = scmp.le.s32.totalorder 1, %s19
      %p242 = scmp.lt.s32.totalorder %s19, 3
      %p243 = pnand %p241, %p242
      %p244 = pneg %p243
      // Predicated region
      $region41: #{tpu_custom_call.1} parent=5 // pred_check
        _
      $region42: #{tpu_custom_call.1} parent=5 // pred_check_branch
        %246 = sbr.rel (%p243) target = $region44
      $region43: #{tpu_custom_call.1} parent=5 // pred_region
        %s247 = ssub.s32 %s19, 1
        %s248 = sand.u32 %s32, 1
        %s249 = scalar_lea.sflag [#allocation4], %s248
        %s250 = sand.u32 %s32, 1
        %s251 = smul.addr %s250, 256
        %s252 = scalar_lea.vmem [#allocation3], %s251
        // Predicated region
        $region45: #{tpu_custom_call.1} parent=43 // pred_check
          %p253 = pneg %p45
        $region46: #{tpu_custom_call.1} parent=43 // pred_check_branch
          %255 = sbr.rel (%p253) target = $region48
        $region47: #{tpu_custom_call.1} parent=43 // pred_region
          %256 = dma.done %s249, 4096
        $region48: #{tpu_custom_call.1} parent=43 // pred_fallthru
          _
        // Predicated region
        $region49: #{tpu_custom_call.1} parent=43 // pred_check
          %p257 = pneg %p108
        $region50: #{tpu_custom_call.1} parent=43 // pred_check_branch
          %259 = sbr.rel (%p257) target = $region52
        $region51: #{tpu_custom_call.1} parent=43 // pred_region
          %260 = dma.done [#allocation7], 20480
        $region52: #{tpu_custom_call.1} parent=43 // pred_fallthru
          _
        %s261 = sand.u32 %s32, 1
        %s262 = scalar_lea.sflag [#allocation4], %s261
        %s263 = sand.u32 %s32, 1
        %s264 = smul.addr %s263, 256
        %s265 = scalar_lea.vmem [#allocation3], %s264
        %p266 = pneg %p45
        %p267 = pneg %p42
        %p268 = pneg %p66
        %p269 = pneg %p63
        %p270 = pneg %p87
        %p271 = pneg %p84
        %p272 = pneg %p108
        %p273 = pneg %p105
        %p274 = pneg %p129
        %p275 = pneg %p126
        %p276 = pneg %p150
        %p277 = pneg %p147
        %p278 = pneg %p176
        %p279 = pneg %p173
        %s280 = sand.u32 %s163, 1
        %s281 = scalar_lea.sflag [#allocation5], %s280
        %s282 = sand.u32 %s163, 1
        %s283 = smul.addr %s282, 128
        %s284 = scalar_lea.vmem [#allocation8], %s283
        %v286 = vld [vmem:[%s1] sm:$0xf]
        %v287 = vld [vmem:[%s252] sm:$0xff]
        %v288 = vld [vmem:[%s252 + $0x8] sm:$0xff]
        %v289 = vld [vmem:[%s252 + $0x10] sm:$0xff]
        %v290 = vld [vmem:[%s252 + $0x18] sm:$0xff]
        %v291 = vld [vmem:[%s252 + $0x20] sm:$0xff]
        %v292 = vld [vmem:[%s252 + $0x28] sm:$0xff]
        %v293 = vld [vmem:[%s252 + $0x30] sm:$0xff]
        %v294 = vld [vmem:[%s252 + $0x38] sm:$0xff]
        %v295 = vld [vmem:[%s252 + $0x40] sm:$0xff]
        %v296 = vld [vmem:[%s252 + $0x48] sm:$0xff]
        %v297 = vld [vmem:[%s252 + $0x50] sm:$0xff]
        %v298 = vld [vmem:[%s252 + $0x58] sm:$0xff]
        %v299 = vld [vmem:[%s252 + $0x60] sm:$0xff]
        %v300 = vld [vmem:[%s252 + $0x68] sm:$0xff]
        %v301 = vld [vmem:[%s252 + $0x70] sm:$0xff]
        %v302 = vld [vmem:[%s252 + $0x78] sm:$0xff]
        %v303 = vld [vmem:[%s252 + $0x80] sm:$0xff]
        %v304 = vld [vmem:[%s252 + $0x88] sm:$0xff]
        %v305 = vld [vmem:[%s252 + $0x90] sm:$0xff]
        %v306 = vld [vmem:[%s252 + $0x98] sm:$0xff]
        %v307 = vld [vmem:[%s252 + $0xa0] sm:$0xff]
        %v308 = vld [vmem:[%s252 + $0xa8] sm:$0xff]
        %v309 = vld [vmem:[%s252 + $0xb0] sm:$0xff]
        %v310 = vld [vmem:[%s252 + $0xb8] sm:$0xff]
        %v311 = vld [vmem:[%s252 + $0xc0] sm:$0xff]
        %v312 = vld [vmem:[%s252 + $0xc8] sm:$0xff]
        %v313 = vld [vmem:[%s252 + $0xd0] sm:$0xff]
        %v314 = vld [vmem:[%s252 + $0xd8] sm:$0xff]
        %v315 = vld [vmem:[%s252 + $0xe0] sm:$0xff]
        %v316 = vld [vmem:[%s252 + $0xe8] sm:$0xff]
        %v317 = vld [vmem:[%s252 + $0xf0] sm:$0xff]
        %v318 = vld [vmem:[%s252 + $0xf8] sm:$0xff]
        %v319 = vld [vmem:[%s2] sm:$0xff]
        %321 = vset.pattern.permute.xlu0 0
        %322 = vperm.xlu0 %321, %v319
        %v323 = vpop.permute.xlu0 %322
        %v357 = vunpack.c.l.b16 %v287
        %v358 = vunpack.c.h.b16 %v287
        %v359 = vunpack.c.l.b16 %v288
        %v360 = vunpack.c.h.b16 %v288
        %v361 = vunpack.c.l.b16 %v289
        %v362 = vunpack.c.h.b16 %v289
        %v363 = vunpack.c.l.b16 %v290
        %v364 = vunpack.c.h.b16 %v290
        %v365 = vunpack.c.l.b16 %v291
        %v366 = vunpack.c.h.b16 %v291
        %v367 = vunpack.c.l.b16 %v292
        %v368 = vunpack.c.h.b16 %v292
        %v369 = vunpack.c.l.b16 %v293
        %v370 = vunpack.c.h.b16 %v293
        %v371 = vunpack.c.l.b16 %v294
        %v372 = vunpack.c.h.b16 %v294
        %v373 = vunpack.c.l.b16 %v295
        %v374 = vunpack.c.h.b16 %v295
        %v375 = vunpack.c.l.b16 %v296
        %v376 = vunpack.c.h.b16 %v296
        %v377 = vunpack.c.l.b16 %v297
        %v378 = vunpack.c.h.b16 %v297
        %v379 = vunpack.c.l.b16 %v298
        %v380 = vunpack.c.h.b16 %v298
        %v381 = vunpack.c.l.b16 %v299
        %v382 = vunpack.c.h.b16 %v299
        %v383 = vunpack.c.l.b16 %v300
        %v384 = vunpack.c.h.b16 %v300
        %v385 = vunpack.c.l.b16 %v301
        %v386 = vunpack.c.h.b16 %v301
        %v387 = vunpack.c.l.b16 %v302
        %v388 = vunpack.c.h.b16 %v302
        %v389 = vunpack.c.l.b16 %v303
        %v390 = vunpack.c.h.b16 %v303
        %v391 = vunpack.c.l.b16 %v304
        %v392 = vunpack.c.h.b16 %v304
        %v393 = vunpack.c.l.b16 %v305
        %v394 = vunpack.c.h.b16 %v305
        %v395 = vunpack.c.l.b16 %v306
        %v396 = vunpack.c.h.b16 %v306
        %v397 = vunpack.c.l.b16 %v307
        %v398 = vunpack.c.h.b16 %v307
        %v399 = vunpack.c.l.b16 %v308
        %v400 = vunpack.c.h.b16 %v308
        %v401 = vunpack.c.l.b16 %v309
        %v402 = vunpack.c.h.b16 %v309
        %v403 = vunpack.c.l.b16 %v310
        %v404 = vunpack.c.h.b16 %v310
        %v405 = vunpack.c.l.b16 %v311
        %v406 = vunpack.c.h.b16 %v311
        %v407 = vunpack.c.l.b16 %v312
        %v408 = vunpack.c.h.b16 %v312
        %v409 = vunpack.c.l.b16 %v313
        %v410 = vunpack.c.h.b16 %v313
        %v411 = vunpack.c.l.b16 %v314
        %v412 = vunpack.c.h.b16 %v314
        %v413 = vunpack.c.l.b16 %v315
        %v414 = vunpack.c.h.b16 %v315
        %v415 = vunpack.c.l.b16 %v316
        %v416 = vunpack.c.h.b16 %v316
        %v417 = vunpack.c.l.b16 %v317
        %v418 = vunpack.c.h.b16 %v317
        %v419 = vunpack.c.l.b16 %v318
        %v420 = vunpack.c.h.b16 %v318
        %v421 = vpack.c.b16 %v365, %v357
        %v422 = vpack.c.b16 %v366, %v358
        %v423 = vpack.c.b16 %v367, %v359
        %v424 = vpack.c.b16 %v368, %v360
        %v425 = vpack.c.b16 %v369, %v361
        %v426 = vpack.c.b16 %v370, %v362
        %v427 = vpack.c.b16 %v371, %v363
        %v428 = vpack.c.b16 %v372, %v364
        %v429 = vpack.c.b16 %v381, %v373
        %v430 = vpack.c.b16 %v382, %v374
        %v431 = vpack.c.b16 %v383, %v375
        %v432 = vpack.c.b16 %v384, %v376
        %v433 = vpack.c.b16 %v385, %v377
        %v434 = vpack.c.b16 %v386, %v378
        %v435 = vpack.c.b16 %v387, %v379
        %v436 = vpack.c.b16 %v388, %v380
        %v437 = vpack.c.b16 %v397, %v389
        %v438 = vpack.c.b16 %v398, %v390
        %v439 = vpack.c.b16 %v399, %v391
        %v440 = vpack.c.b16 %v400, %v392
        %v441 = vpack.c.b16 %v401, %v393
        %v442 = vpack.c.b16 %v402, %v394
        %v443 = vpack.c.b16 %v403, %v395
        %v444 = vpack.c.b16 %v404, %v396
        %v445 = vpack.c.b16 %v413, %v405
        %v446 = vpack.c.b16 %v414, %v406
        %v447 = vpack.c.b16 %v415, %v407
        %v448 = vpack.c.b16 %v416, %v408
        %v449 = vpack.c.b16 %v417, %v409
        %v450 = vpack.c.b16 %v418, %v410
        %v451 = vpack.c.b16 %v419, %v411
        %v452 = vpack.c.b16 %v420, %v412
        %vm485 = vcmask 523264
        %v487 = vsel %vm485, %v286, 0
        %489 = vmatprep.subr.bf16.mxu0 0
        %490 = vmatpush1.bf16.msra.mxu0 0
        %491 = vmatprep.subr.bf16.mxu0 0
        %492 = vmatpush1.bf16.msra.mxu0 0
        %493 = vmatprep.subr.bf16.mxu0 0
        %494 = vmatpush1.bf16.msra.mxu0 0
        %495 = vmatprep.subr.bf16.mxu0 0
        %496 = vmatpush1.bf16.msra.mxu0 0
        %497 = vmatprep.subr.bf16.mxu0 %v446
        %498 = vmatpush1.bf16.msra.mxu0 %v445
        %499 = vmatprep.subr.bf16.mxu0 %v438
        %500 = vmatpush1.bf16.msra.mxu0 %v437
        %501 = vmatprep.subr.bf16.mxu0 %v430
        %502 = vmatpush1.bf16.msra.mxu0 %v429
        %503 = vmatprep.subr.bf16.mxu0 %v422
        %504 = vmatpush1.bf16.msra.mxu0 %v421
        %505 = vmatprep.subr.bf16.mxu0 0
        %506 = vmatpush2.bf16.msra.mxu0 0
        %507 = vmatprep.subr.bf16.mxu0 0
        %508 = vmatpush2.bf16.msra.mxu0 0
        %509 = vmatprep.subr.bf16.mxu0 0
        %510 = vmatpush2.bf16.msra.mxu0 0
        %511 = vmatprep.subr.bf16.mxu0 0
        %512 = vmatpush2.bf16.msra.mxu0 0
        %513 = vmatprep.subr.bf16.mxu0 0
        %514 = vmatpush2.bf16.msra.mxu0 0
        %515 = vmatprep.subr.bf16.mxu0 0
        %516 = vmatpush2.bf16.msra.mxu0 0
        %517 = vmatprep.subr.bf16.mxu0 0
        %518 = vmatpush2.bf16.msra.mxu0 0
        %519 = vmatprep.subr.bf16.mxu0 0
        %520 = vmatpush2.bf16.msra.mxu0 0
        %521 = vmatprep.mubr.bf16.mxu0 0
        %522 = vmatmul.mubr.bf16.gmra.mxu0 %v487
        %v523 = vpop.f32.mrf.mxu0
        %v524 = vadd.f32 %v323, %v523
        %v525 = vpop.f32.mrf.mxu0
        %v526 = vadd.f32 %v323, %v525
        %v527 = vpop.f32.mrf.mxu0
        %v528 = vpop.f32.mrf.mxu0
        %529 = vdwg.mxu0
        %530 = vmatprep.subr.bf16.mxu0 0
        %531 = vmatpush1.bf16.msra.mxu0 0
        %532 = vmatprep.subr.bf16.mxu0 0
        %533 = vmatpush1.bf16.msra.mxu0 0
        %534 = vmatprep.subr.bf16.mxu0 0
        %535 = vmatpush1.bf16.msra.mxu0 0
        %536 = vmatprep.subr.bf16.mxu0 0
        %537 = vmatpush1.bf16.msra.mxu0 0
        %538 = vmatprep.subr.bf16.mxu0 %v448
        %539 = vmatpush1.bf16.msra.mxu0 %v447
        %540 = vmatprep.subr.bf16.mxu0 %v440
        %541 = vmatpush1.bf16.msra.mxu0 %v439
        %542 = vmatprep.subr.bf16.mxu0 %v432
        %543 = vmatpush1.bf16.msra.mxu0 %v431
        %544 = vmatprep.subr.bf16.mxu0 %v424
        %545 = vmatpush1.bf16.msra.mxu0 %v423
        %546 = vmatprep.subr.bf16.mxu0 0
        %547 = vmatpush2.bf16.msra.mxu0 0
        %548 = vmatprep.subr.bf16.mxu0 0
        %549 = vmatpush2.bf16.msra.mxu0 0
        %550 = vmatprep.subr.bf16.mxu0 0
        %551 = vmatpush2.bf16.msra.mxu0 0
        %552 = vmatprep.subr.bf16.mxu0 0
        %553 = vmatpush2.bf16.msra.mxu0 0
        %554 = vmatprep.subr.bf16.mxu0 0
        %555 = vmatpush2.bf16.msra.mxu0 0
        %556 = vmatprep.subr.bf16.mxu0 0
        %557 = vmatpush2.bf16.msra.mxu0 0
        %558 = vmatprep.subr.bf16.mxu0 0
        %559 = vmatpush2.bf16.msra.mxu0 0
        %560 = vmatprep.subr.bf16.mxu0 0
        %561 = vmatpush2.bf16.msra.mxu0 0
        %562 = vmatprep.mubr.bf16.mxu0 0
        %563 = vmatmul.mubr.bf16.gmra.mxu0 %v487
        %v564 = vpop.f32.mrf.mxu0
        %v565 = vadd.f32 %v323, %v564
        %v566 = vpop.f32.mrf.mxu0
        %v567 = vadd.f32 %v323, %v566
        %v568 = vpop.f32.mrf.mxu0
        %v569 = vpop.f32.mrf.mxu0
        %570 = vdwg.mxu0
        %571 = vmatprep.subr.bf16.mxu0 0
        %572 = vmatpush1.bf16.msra.mxu0 0
        %573 = vmatprep.subr.bf16.mxu0 0
        %574 = vmatpush1.bf16.msra.mxu0 0
        %575 = vmatprep.subr.bf16.mxu0 0
        %576 = vmatpush1.bf16.msra.mxu0 0
        %577 = vmatprep.subr.bf16.mxu0 0
        %578 = vmatpush1.bf16.msra.mxu0 0
        %579 = vmatprep.subr.bf16.mxu0 %v450
        %580 = vmatpush1.bf16.msra.mxu0 %v449
        %581 = vmatprep.subr.bf16.mxu0 %v442
        %582 = vmatpush1.bf16.msra.mxu0 %v441
        %583 = vmatprep.subr.bf16.mxu0 %v434
        %584 = vmatpush1.bf16.msra.mxu0 %v433
        %585 = vmatprep.subr.bf16.mxu0 %v426
        %586 = vmatpush1.bf16.msra.mxu0 %v425
        %587 = vmatprep.subr.bf16.mxu0 0
        %588 = vmatpush2.bf16.msra.mxu0 0
        %589 = vmatprep.subr.bf16.mxu0 0
        %590 = vmatpush2.bf16.msra.mxu0 0
        %591 = vmatprep.subr.bf16.mxu0 0
        %592 = vmatpush2.bf16.msra.mxu0 0
        %593 = vmatprep.subr.bf16.mxu0 0
        %594 = vmatpush2.bf16.msra.mxu0 0
        %595 = vmatprep.subr.bf16.mxu0 0
        %596 = vmatpush2.bf16.msra.mxu0 0
        %597 = vmatprep.subr.bf16.mxu0 0
        %598 = vmatpush2.bf16.msra.mxu0 0
        %599 = vmatprep.subr.bf16.mxu0 0
        %600 = vmatpush2.bf16.msra.mxu0 0
        %601 = vmatprep.subr.bf16.mxu0 0
        %602 = vmatpush2.bf16.msra.mxu0 0
        %603 = vmatprep.mubr.bf16.mxu0 0
        %604 = vmatmul.mubr.bf16.gmra.mxu0 %v487
        %v605 = vpop.f32.mrf.mxu0
        %v606 = vadd.f32 %v323, %v605
        %v607 = vpop.f32.mrf.mxu0
        %v608 = vadd.f32 %v323, %v607
        %v609 = vpop.f32.mrf.mxu0
        %v610 = vpop.f32.mrf.mxu0
        %611 = vdwg.mxu0
        %612 = vmatprep.subr.bf16.mxu0 0
        %613 = vmatpush1.bf16.msra.mxu0 0
        %614 = vmatprep.subr.bf16.mxu0 0
        %615 = vmatpush1.bf16.msra.mxu0 0
        %616 = vmatprep.subr.bf16.mxu0 0
        %617 = vmatpush1.bf16.msra.mxu0 0
        %618 = vmatprep.subr.bf16.mxu0 0
        %619 = vmatpush1.bf16.msra.mxu0 0
        %620 = vmatprep.subr.bf16.mxu0 %v452
        %621 = vmatpush1.bf16.msra.mxu0 %v451
        %622 = vmatprep.subr.bf16.mxu0 %v444
        %623 = vmatpush1.bf16.msra.mxu0 %v443
        %624 = vmatprep.subr.bf16.mxu0 %v436
        %625 = vmatpush1.bf16.msra.mxu0 %v435
        %626 = vmatprep.subr.bf16.mxu0 %v428
        %627 = vmatpush1.bf16.msra.mxu0 %v427
        %628 = vmatprep.subr.bf16.mxu0 0
        %629 = vmatpush2.bf16.msra.mxu0 0
        %630 = vmatprep.subr.bf16.mxu0 0
        %631 = vmatpush2.bf16.msra.mxu0 0
        %632 = vmatprep.subr.bf16.mxu0 0
        %633 = vmatpush2.bf16.msra.mxu0 0
        %634 = vmatprep.subr.bf16.mxu0 0
        %635 = vmatpush2.bf16.msra.mxu0 0
        %636 = vmatprep.subr.bf16.mxu0 0
        %637 = vmatpush2.bf16.msra.mxu0 0
        %638 = vmatprep.subr.bf16.mxu0 0
        %639 = vmatpush2.bf16.msra.mxu0 0
        %640 = vmatprep.subr.bf16.mxu0 0
        %641 = vmatpush2.bf16.msra.mxu0 0
        %642 = vmatprep.subr.bf16.mxu0 0
        %643 = vmatpush2.bf16.msra.mxu0 0
        %644 = vmatprep.mubr.bf16.mxu0 0
        %645 = vmatmul.mubr.bf16.gmra.mxu0 %v487
        %v646 = vpop.f32.mrf.mxu0
        %v647 = vadd.f32 %v323, %v646
        %v648 = vpop.f32.mrf.mxu0
        %v649 = vadd.f32 %v323, %v648
        %v650 = vpop.f32.mrf.mxu0
        %v651 = vpop.f32.mrf.mxu0
        %652 = vdwg.mxu0
        %v653 = vmax.f32 %v524, 0.0
        %v654 = vmax.f32 %v526, 0.0
        %v655 = vmax.f32 %v565, 0.0
        %v656 = vmax.f32 %v567, 0.0
        %v657 = vmax.f32 %v606, 0.0
        %v658 = vmax.f32 %v608, 0.0
        %v659 = vmax.f32 %v647, 0.0
        %v660 = vmax.f32 %v649, 0.0
        %v661 = vpack.c.bf16 %v653, %v653
        %v662 = vpack.c.bf16 %v654, %v654
        %v663 = vpack.c.bf16 %v655, %v655
        %v664 = vpack.c.bf16 %v656, %v656
        %v665 = vpack.c.bf16 %v657, %v657
        %v666 = vpack.c.bf16 %v658, %v658
        %v667 = vpack.c.bf16 %v659, %v659
        %v668 = vpack.c.bf16 %v660, %v660
        %v669 = vld [vmem:[#allocation6] sm:$0xff]
        %v670 = vld [vmem:[#allocation6 + $0x8] sm:$0xff]
        %v671 = vld [vmem:[#allocation6 + $0x10] sm:$0xff]
        %v672 = vld [vmem:[#allocation6 + $0x18] sm:$0xff]
        %v673 = vld [vmem:[#allocation6 + $0x20] sm:$0xff]
        %v674 = vld [vmem:[#allocation6 + $0x28] sm:$0xff]
        %v675 = vld [vmem:[#allocation6 + $0x30] sm:$0xff]
        %v676 = vld [vmem:[#allocation6 + $0x38] sm:$0xff]
        %v677 = vld [vmem:[#allocation6 + $0x40] sm:$0xff]
        %v678 = vld [vmem:[#allocation6 + $0x48] sm:$0xff]
        %v679 = vld [vmem:[#allocation6 + $0x50] sm:$0xff]
        %v680 = vld [vmem:[#allocation6 + $0x58] sm:$0xff]
        %v681 = vld [vmem:[#allocation6 + $0x60] sm:$0xff]
        %v682 = vld [vmem:[#allocation6 + $0x68] sm:$0xff]
        %v683 = vld [vmem:[#allocation6 + $0x70] sm:$0xff]
        %v684 = vld [vmem:[#allocation6 + $0x78] sm:$0xff]
        %v685 = vld [vmem:[#allocation6 + $0x80] sm:$0xff]
        %v686 = vld [vmem:[#allocation6 + $0x88] sm:$0xff]
        %v687 = vld [vmem:[#allocation6 + $0x90] sm:$0xff]
        %v688 = vld [vmem:[#allocation6 + $0x98] sm:$0xff]
        %v689 = vld [vmem:[#allocation6 + $0xa0] sm:$0xff]
        %v690 = vld [vmem:[#allocation6 + $0xa8] sm:$0xff]
        %v691 = vld [vmem:[#allocation6 + $0xb0] sm:$0xff]
        %v692 = vld [vmem:[#allocation6 + $0xb8] sm:$0xff]
        %v693 = vld [vmem:[#allocation6 + $0xc0] sm:$0xff]
        %v694 = vld [vmem:[#allocation6 + $0xc8] sm:$0xff]
        %v695 = vld [vmem:[#allocation6 + $0xd0] sm:$0xff]
        %v696 = vld [vmem:[#allocation6 + $0xd8] sm:$0xff]
        %v697 = vld [vmem:[#allocation6 + $0xe0] sm:$0xff]
        %v698 = vld [vmem:[#allocation6 + $0xe8] sm:$0xff]
        %v699 = vld [vmem:[#allocation6 + $0xf0] sm:$0xff]
        %v700 = vld [vmem:[#allocation6 + $0xf8] sm:$0xff]
        %v701 = vld [vmem:[#allocation6 + $0x100] sm:$0xff]
        %v702 = vld [vmem:[#allocation6 + $0x108] sm:$0xff]
        %v703 = vld [vmem:[#allocation6 + $0x110] sm:$0xff]
        %v704 = vld [vmem:[#allocation6 + $0x118] sm:$0xff]
        %v705 = vld [vmem:[#allocation6 + $0x120] sm:$0xff]
        %v706 = vld [vmem:[#allocation6 + $0x128] sm:$0xff]
        %v707 = vld [vmem:[#allocation6 + $0x130] sm:$0xff]
        %v708 = vld [vmem:[#allocation6 + $0x138] sm:$0xff]
        %v709 = vld [vmem:[#allocation6 + $0x140] sm:$0xff]
        %v710 = vld [vmem:[#allocation6 + $0x148] sm:$0xff]
        %v711 = vld [vmem:[#allocation6 + $0x150] sm:$0xff]
        %v712 = vld [vmem:[#allocation6 + $0x158] sm:$0xff]
        %v713 = vld [vmem:[#allocation6 + $0x160] sm:$0xff]
        %v714 = vld [vmem:[#allocation6 + $0x168] sm:$0xff]
        %v715 = vld [vmem:[#allocation6 + $0x170] sm:$0xff]
        %v716 = vld [vmem:[#allocation6 + $0x178] sm:$0xff]
        %v717 = vld [vmem:[#allocation6 + $0x180] sm:$0xff]
        %v718 = vld [vmem:[#allocation6 + $0x188] sm:$0xff]
        %v719 = vld [vmem:[#allocation6 + $0x190] sm:$0xff]
        %v720 = vld [vmem:[#allocation6 + $0x198] sm:$0xff]
        %v721 = vld [vmem:[#allocation6 + $0x1a0] sm:$0xff]
        %v722 = vld [vmem:[#allocation6 + $0x1a8] sm:$0xff]
        %v723 = vld [vmem:[#allocation6 + $0x1b0] sm:$0xff]
        %v724 = vld [vmem:[#allocation6 + $0x1b8] sm:$0xff]
        %v725 = vld [vmem:[#allocation6 + $0x1c0] sm:$0xff]
        %v726 = vld [vmem:[#allocation6 + $0x1c8] sm:$0xff]
        %v727 = vld [vmem:[#allocation6 + $0x1d0] sm:$0xff]
        %v728 = vld [vmem:[#allocation6 + $0x1d8] sm:$0xff]
        %v729 = vld [vmem:[#allocation6 + $0x1e0] sm:$0xff]
        %v730 = vld [vmem:[#allocation6 + $0x1e8] sm:$0xff]
        %v731 = vld [vmem:[#allocation6 + $0x1f0] sm:$0xff]
        %v732 = vld [vmem:[#allocation6 + $0x1f8] sm:$0xff]
        %v733 = vld [vmem:[#allocation6 + $0x200] sm:$0xff]
        %v734 = vld [vmem:[#allocation6 + $0x208] sm:$0xff]
        %v735 = vld [vmem:[#allocation6 + $0x210] sm:$0xff]
        %v736 = vld [vmem:[#allocation6 + $0x218] sm:$0xff]
        %v737 = vld [vmem:[#allocation6 + $0x220] sm:$0xff]
        %v738 = vld [vmem:[#allocation6 + $0x228] sm:$0xff]
        %v739 = vld [vmem:[#allocation6 + $0x230] sm:$0xff]
        %v740 = vld [vmem:[#allocation6 + $0x238] sm:$0xff]
        %v741 = vld [vmem:[#allocation6 + $0x240] sm:$0xff]
        %v742 = vld [vmem:[#allocation6 + $0x248] sm:$0xff]
        %v743 = vld [vmem:[#allocation6 + $0x250] sm:$0xff]
        %v744 = vld [vmem:[#allocation6 + $0x258] sm:$0xff]
        %v745 = vld [vmem:[#allocation6 + $0x260] sm:$0xff]
        %v746 = vld [vmem:[#allocation6 + $0x268] sm:$0xff]
        %v747 = vld [vmem:[#allocation6 + $0x270] sm:$0xff]
        %v748 = vld [vmem:[#allocation6 + $0x278] sm:$0xff]
        %v749 = vld [vmem:[#allocation6 + $0x280] sm:$0xff]
        %v750 = vld [vmem:[#allocation6 + $0x288] sm:$0xff]
        %v751 = vld [vmem:[#allocation6 + $0x290] sm:$0xff]
        %v752 = vld [vmem:[#allocation6 + $0x298] sm:$0xff]
        %v753 = vld [vmem:[#allocation6 + $0x2a0] sm:$0xff]
        %v754 = vld [vmem:[#allocation6 + $0x2a8] sm:$0xff]
        %v755 = vld [vmem:[#allocation6 + $0x2b0] sm:$0xff]
        %v756 = vld [vmem:[#allocation6 + $0x2b8] sm:$0xff]
        %v757 = vld [vmem:[#allocation6 + $0x2c0] sm:$0xff]
        %v758 = vld [vmem:[#allocation6 + $0x2c8] sm:$0xff]
        %v759 = vld [vmem:[#allocation6 + $0x2d0] sm:$0xff]
        %v760 = vld [vmem:[#allocation6 + $0x2d8] sm:$0xff]
        %v761 = vld [vmem:[#allocation6 + $0x2e0] sm:$0xff]
        %v762 = vld [vmem:[#allocation6 + $0x2e8] sm:$0xff]
        %v763 = vld [vmem:[#allocation6 + $0x2f0] sm:$0xff]
        %v764 = vld [vmem:[#allocation6 + $0x2f8] sm:$0xff]
        %v765 = vld [vmem:[#allocation6 + $0x300] sm:$0xff]
        %v766 = vld [vmem:[#allocation6 + $0x308] sm:$0xff]
        %v767 = vld [vmem:[#allocation6 + $0x310] sm:$0xff]
        %v768 = vld [vmem:[#allocation6 + $0x318] sm:$0xff]
        %v769 = vld [vmem:[#allocation6 + $0x320] sm:$0xff]
        %v770 = vld [vmem:[#allocation6 + $0x328] sm:$0xff]
        %v771 = vld [vmem:[#allocation6 + $0x330] sm:$0xff]
        %v772 = vld [vmem:[#allocation6 + $0x338] sm:$0xff]
        %v773 = vld [vmem:[#allocation6 + $0x340] sm:$0xff]
        %v774 = vld [vmem:[#allocation6 + $0x348] sm:$0xff]
        %v775 = vld [vmem:[#allocation6 + $0x350] sm:$0xff]
        %v776 = vld [vmem:[#allocation6 + $0x358] sm:$0xff]
        %v777 = vld [vmem:[#allocation6 + $0x360] sm:$0xff]
        %v778 = vld [vmem:[#allocation6 + $0x368] sm:$0xff]
        %v779 = vld [vmem:[#allocation6 + $0x370] sm:$0xff]
        %v780 = vld [vmem:[#allocation6 + $0x378] sm:$0xff]
        %v781 = vld [vmem:[#allocation6 + $0x380] sm:$0xff]
        %v782 = vld [vmem:[#allocation6 + $0x388] sm:$0xff]
        %v783 = vld [vmem:[#allocation6 + $0x390] sm:$0xff]
        %v784 = vld [vmem:[#allocation6 + $0x398] sm:$0xff]
        %v785 = vld [vmem:[#allocation6 + $0x3a0] sm:$0xff]
        %v786 = vld [vmem:[#allocation6 + $0x3a8] sm:$0xff]
        %v787 = vld [vmem:[#allocation6 + $0x3b0] sm:$0xff]
        %v788 = vld [vmem:[#allocation6 + $0x3b8] sm:$0xff]
        %v789 = vld [vmem:[#allocation6 + $0x3c0] sm:$0xff]
        %v790 = vld [vmem:[#allocation6 + $0x3c8] sm:$0xff]
        %v791 = vld [vmem:[#allocation6 + $0x3d0] sm:$0xff]
        %v792 = vld [vmem:[#allocation6 + $0x3d8] sm:$0xff]
        %v793 = vld [vmem:[#allocation6 + $0x3e0] sm:$0xff]
        %v794 = vld [vmem:[#allocation6 + $0x3e8] sm:$0xff]
        %v795 = vld [vmem:[#allocation6 + $0x3f0] sm:$0xff]
        %v796 = vld [vmem:[#allocation6 + $0x3f8] sm:$0xff]
        %v797 = vld [vmem:[#allocation6 + $0x400] sm:$0xff]
        %v798 = vld [vmem:[#allocation6 + $0x408] sm:$0xff]
        %v799 = vld [vmem:[#allocation6 + $0x410] sm:$0xff]
        %v800 = vld [vmem:[#allocation6 + $0x418] sm:$0xff]
        %v801 = vld [vmem:[#allocation6 + $0x420] sm:$0xff]
        %v802 = vld [vmem:[#allocation6 + $0x428] sm:$0xff]
        %v803 = vld [vmem:[#allocation6 + $0x430] sm:$0xff]
        %v804 = vld [vmem:[#allocation6 + $0x438] sm:$0xff]
        %v805 = vld [vmem:[#allocation6 + $0x440] sm:$0xff]
        %v806 = vld [vmem:[#allocation6 + $0x448] sm:$0xff]
        %v807 = vld [vmem:[#allocation6 + $0x450] sm:$0xff]
        %v808 = vld [vmem:[#allocation6 + $0x458] sm:$0xff]
        %v809 = vld [vmem:[#allocation6 + $0x460] sm:$0xff]
        %v810 = vld [vmem:[#allocation6 + $0x468] sm:$0xff]
        %v811 = vld [vmem:[#allocation6 + $0x470] sm:$0xff]
        %v812 = vld [vmem:[#allocation6 + $0x478] sm:$0xff]
        %v813 = vld [vmem:[#allocation6 + $0x480] sm:$0xff]
        %v814 = vld [vmem:[#allocation6 + $0x488] sm:$0xff]
        %v815 = vld [vmem:[#allocation6 + $0x490] sm:$0xff]
        %v816 = vld [vmem:[#allocation6 + $0x498] sm:$0xff]
        %v817 = vld [vmem:[#allocation6 + $0x4a0] sm:$0xff]
        %v818 = vld [vmem:[#allocation6 + $0x4a8] sm:$0xff]
        %v819 = vld [vmem:[#allocation6 + $0x4b0] sm:$0xff]
        %v820 = vld [vmem:[#allocation6 + $0x4b8] sm:$0xff]
        %v821 = vld [vmem:[#allocation6 + $0x4c0] sm:$0xff]
        %v822 = vld [vmem:[#allocation6 + $0x4c8] sm:$0xff]
        %v823 = vld [vmem:[#allocation6 + $0x4d0] sm:$0xff]
        %v824 = vld [vmem:[#allocation6 + $0x4d8] sm:$0xff]
        %v825 = vld [vmem:[#allocation6 + $0x4e0] sm:$0xff]
        %v826 = vld [vmem:[#allocation6 + $0x4e8] sm:$0xff]
        %v827 = vld [vmem:[#allocation6 + $0x4f0] sm:$0xff]
        %v828 = vld [vmem:[#allocation6 + $0x4f8] sm:$0xff]
        %v989 = vunpack.c.l.b16 %v669
        %v990 = vunpack.c.h.b16 %v669
        %v991 = vunpack.c.l.b16 %v670
        %v992 = vunpack.c.h.b16 %v670
        %v993 = vunpack.c.l.b16 %v671
        %v994 = vunpack.c.h.b16 %v671
        %v995 = vunpack.c.l.b16 %v672
        %v996 = vunpack.c.h.b16 %v672
        %v997 = vunpack.c.l.b16 %v673
        %v998 = vunpack.c.h.b16 %v673
        %v999 = vunpack.c.l.b16 %v674
        %v1000 = vunpack.c.h.b16 %v674
        %v1001 = vunpack.c.l.b16 %v675
        %v1002 = vunpack.c.h.b16 %v675
        %v1003 = vunpack.c.l.b16 %v676
        %v1004 = vunpack.c.h.b16 %v676
        %v1005 = vunpack.c.l.b16 %v677
        %v1006 = vunpack.c.h.b16 %v677
        %v1007 = vunpack.c.l.b16 %v678
        %v1008 = vunpack.c.h.b16 %v678
        %v1009 = vunpack.c.l.b16 %v679
        %v1010 = vunpack.c.h.b16 %v679
        %v1011 = vunpack.c.l.b16 %v680
        %v1012 = vunpack.c.h.b16 %v680
        %v1013 = vunpack.c.l.b16 %v681
        %v1014 = vunpack.c.h.b16 %v681
        %v1015 = vunpack.c.l.b16 %v682
        %v1016 = vunpack.c.h.b16 %v682
        %v1017 = vunpack.c.l.b16 %v683
        %v1018 = vunpack.c.h.b16 %v683
        %v1019 = vunpack.c.l.b16 %v684
        %v1020 = vunpack.c.h.b16 %v684
        %v1021 = vunpack.c.l.b16 %v685
        %v1022 = vunpack.c.h.b16 %v685
        %v1023 = vunpack.c.l.b16 %v686
        %v1024 = vunpack.c.h.b16 %v686
        %v1025 = vunpack.c.l.b16 %v687
        %v1026 = vunpack.c.h.b16 %v687
        %v1027 = vunpack.c.l.b16 %v688
        %v1028 = vunpack.c.h.b16 %v688
        %v1029 = vunpack.c.l.b16 %v689
        %v1030 = vunpack.c.h.b16 %v689
        %v1031 = vunpack.c.l.b16 %v690
        %v1032 = vunpack.c.h.b16 %v690
        %v1033 = vunpack.c.l.b16 %v691
        %v1034 = vunpack.c.h.b16 %v691
        %v1035 = vunpack.c.l.b16 %v692
        %v1036 = vunpack.c.h.b16 %v692
        %v1037 = vunpack.c.l.b16 %v693
        %v1038 = vunpack.c.h.b16 %v693
        %v1039 = vunpack.c.l.b16 %v694
        %v1040 = vunpack.c.h.b16 %v694
        %v1041 = vunpack.c.l.b16 %v695
        %v1042 = vunpack.c.h.b16 %v695
        %v1043 = vunpack.c.l.b16 %v696
        %v1044 = vunpack.c.h.b16 %v696
        %v1045 = vunpack.c.l.b16 %v697
        %v1046 = vunpack.c.h.b16 %v697
        %v1047 = vunpack.c.l.b16 %v698
        %v1048 = vunpack.c.h.b16 %v698
        %v1049 = vunpack.c.l.b16 %v699
        %v1050 = vunpack.c.h.b16 %v699
        %v1051 = vunpack.c.l.b16 %v700
        %v1052 = vunpack.c.h.b16 %v700
        %v1053 = vunpack.c.l.b16 %v701
        %v1054 = vunpack.c.h.b16 %v701
        %v1055 = vunpack.c.l.b16 %v702
        %v1056 = vunpack.c.h.b16 %v702
        %v1057 = vunpack.c.l.b16 %v703
        %v1058 = vunpack.c.h.b16 %v703
        %v1059 = vunpack.c.l.b16 %v704
        %v1060 = vunpack.c.h.b16 %v704
        %v1061 = vunpack.c.l.b16 %v705
        %v1062 = vunpack.c.h.b16 %v705
        %v1063 = vunpack.c.l.b16 %v706
        %v1064 = vunpack.c.h.b16 %v706
        %v1065 = vunpack.c.l.b16 %v707
        %v1066 = vunpack.c.h.b16 %v707
        %v1067 = vunpack.c.l.b16 %v708
        %v1068 = vunpack.c.h.b16 %v708
        %v1069 = vunpack.c.l.b16 %v709
        %v1070 = vunpack.c.h.b16 %v709
        %v1071 = vunpack.c.l.b16 %v710
        %v1072 = vunpack.c.h.b16 %v710
        %v1073 = vunpack.c.l.b16 %v711
        %v1074 = vunpack.c.h.b16 %v711
        %v1075 = vunpack.c.l.b16 %v712
        %v1076 = vunpack.c.h.b16 %v712
        %v1077 = vunpack.c.l.b16 %v713
        %v1078 = vunpack.c.h.b16 %v713
        %v1079 = vunpack.c.l.b16 %v714
        %v1080 = vunpack.c.h.b16 %v714
        %v1081 = vunpack.c.l.b16 %v715
        %v1082 = vunpack.c.h.b16 %v715
        %v1083 = vunpack.c.l.b16 %v716
        %v1084 = vunpack.c.h.b16 %v716
        %v1085 = vunpack.c.l.b16 %v717
        %v1086 = vunpack.c.h.b16 %v717
        %v1087 = vunpack.c.l.b16 %v718
        %v1088 = vunpack.c.h.b16 %v718
        %v1089 = vunpack.c.l.b16 %v719
        %v1090 = vunpack.c.h.b16 %v719
        %v1091 = vunpack.c.l.b16 %v720
        %v1092 = vunpack.c.h.b16 %v720
        %v1093 = vunpack.c.l.b16 %v721
        %v1094 = vunpack.c.h.b16 %v721
        %v1095 = vunpack.c.l.b16 %v722
        %v1096 = vunpack.c.h.b16 %v722
        %v1097 = vunpack.c.l.b16 %v723
        %v1098 = vunpack.c.h.b16 %v723
        %v1099 = vunpack.c.l.b16 %v724
        %v1100 = vunpack.c.h.b16 %v724
        %v1101 = vunpack.c.l.b16 %v725
        %v1102 = vunpack.c.h.b16 %v725
        %v1103 = vunpack.c.l.b16 %v726
        %v1104 = vunpack.c.h.b16 %v726
        %v1105 = vunpack.c.l.b16 %v727
        %v1106 = vunpack.c.h.b16 %v727
        %v1107 = vunpack.c.l.b16 %v728
        %v1108 = vunpack.c.h.b16 %v728
        %v1109 = vunpack.c.l.b16 %v729
        %v1110 = vunpack.c.h.b16 %v729
        %v1111 = vunpack.c.l.b16 %v730
        %v1112 = vunpack.c.h.b16 %v730
        %v1113 = vunpack.c.l.b16 %v731
        %v1114 = vunpack.c.h.b16 %v731
        %v1115 = vunpack.c.l.b16 %v732
        %v1116 = vunpack.c.h.b16 %v732
        %v1117 = vunpack.c.l.b16 %v733
        %v1118 = vunpack.c.h.b16 %v733
        %v1119 = vunpack.c.l.b16 %v734
        %v1120 = vunpack.c.h.b16 %v734
        %v1121 = vunpack.c.l.b16 %v735
        %v1122 = vunpack.c.h.b16 %v735
        %v1123 = vunpack.c.l.b16 %v736
        %v1124 = vunpack.c.h.b16 %v736
        %v1125 = vunpack.c.l.b16 %v737
        %v1126 = vunpack.c.h.b16 %v737
        %v1127 = vunpack.c.l.b16 %v738
        %v1128 = vunpack.c.h.b16 %v738
        %v1129 = vunpack.c.l.b16 %v739
        %v1130 = vunpack.c.h.b16 %v739
        %v1131 = vunpack.c.l.b16 %v740
        %v1132 = vunpack.c.h.b16 %v740
        %v1133 = vunpack.c.l.b16 %v741
        %v1134 = vunpack.c.h.b16 %v741
        %v1135 = vunpack.c.l.b16 %v742
        %v1136 = vunpack.c.h.b16 %v742
        %v1137 = vunpack.c.l.b16 %v743
        %v1138 = vunpack.c.h.b16 %v743
        %v1139 = vunpack.c.l.b16 %v744
        %v1140 = vunpack.c.h.b16 %v744
        %v1141 = vunpack.c.l.b16 %v745
        %v1142 = vunpack.c.h.b16 %v745
        %v1143 = vunpack.c.l.b16 %v746
        %v1144 = vunpack.c.h.b16 %v746
        %v1145 = vunpack.c.l.b16 %v747
        %v1146 = vunpack.c.h.b16 %v747
        %v1147 = vunpack.c.l.b16 %v748
        %v1148 = vunpack.c.h.b16 %v748
        %v1149 = vunpack.c.l.b16 %v749
        %v1150 = vunpack.c.h.b16 %v749
        %v1151 = vunpack.c.l.b16 %v750
        %v1152 = vunpack.c.h.b16 %v750
        %v1153 = vunpack.c.l.b16 %v751
        %v1154 = vunpack.c.h.b16 %v751
        %v1155 = vunpack.c.l.b16 %v752
        %v1156 = vunpack.c.h.b16 %v752
        %v1157 = vunpack.c.l.b16 %v753
        %v1158 = vunpack.c.h.b16 %v753
        %v1159 = vunpack.c.l.b16 %v754
        %v1160 = vunpack.c.h.b16 %v754
        %v1161 = vunpack.c.l.b16 %v755
        %v1162 = vunpack.c.h.b16 %v755
        %v1163 = vunpack.c.l.b16 %v756
        %v1164 = vunpack.c.h.b16 %v756
        %v1165 = vunpack.c.l.b16 %v757
        %v1166 = vunpack.c.h.b16 %v757
        %v1167 = vunpack.c.l.b16 %v758
        %v1168 = vunpack.c.h.b16 %v758
        %v1169 = vunpack.c.l.b16 %v759
        %v1170 = vunpack.c.h.b16 %v759
        %v1171 = vunpack.c.l.b16 %v760
        %v1172 = vunpack.c.h.b16 %v760
        %v1173 = vunpack.c.l.b16 %v761
        %v1174 = vunpack.c.h.b16 %v761
        %v1175 = vunpack.c.l.b16 %v762
        %v1176 = vunpack.c.h.b16 %v762
        %v1177 = vunpack.c.l.b16 %v763
        %v1178 = vunpack.c.h.b16 %v763
        %v1179 = vunpack.c.l.b16 %v764
        %v1180 = vunpack.c.h.b16 %v764
        %v1181 = vunpack.c.l.b16 %v765
        %v1182 = vunpack.c.h.b16 %v765
        %v1183 = vunpack.c.l.b16 %v766
        %v1184 = vunpack.c.h.b16 %v766
        %v1185 = vunpack.c.l.b16 %v767
        %v1186 = vunpack.c.h.b16 %v767
        %v1187 = vunpack.c.l.b16 %v768
        %v1188 = vunpack.c.h.b16 %v768
        %v1189 = vunpack.c.l.b16 %v769
        %v1190 = vunpack.c.h.b16 %v769
        %v1191 = vunpack.c.l.b16 %v770
        %v1192 = vunpack.c.h.b16 %v770
        %v1193 = vunpack.c.l.b16 %v771
        %v1194 = vunpack.c.h.b16 %v771
        %v1195 = vunpack.c.l.b16 %v772
        %v1196 = vunpack.c.h.b16 %v772
        %v1197 = vunpack.c.l.b16 %v773
        %v1198 = vunpack.c.h.b16 %v773
        %v1199 = vunpack.c.l.b16 %v774
        %v1200 = vunpack.c.h.b16 %v774
        %v1201 = vunpack.c.l.b16 %v775
        %v1202 = vunpack.c.h.b16 %v775
        %v1203 = vunpack.c.l.b16 %v776
        %v1204 = vunpack.c.h.b16 %v776
        %v1205 = vunpack.c.l.b16 %v777
        %v1206 = vunpack.c.h.b16 %v777
        %v1207 = vunpack.c.l.b16 %v778
        %v1208 = vunpack.c.h.b16 %v778
        %v1209 = vunpack.c.l.b16 %v779
        %v1210 = vunpack.c.h.b16 %v779
        %v1211 = vunpack.c.l.b16 %v780
        %v1212 = vunpack.c.h.b16 %v780
        %v1213 = vunpack.c.l.b16 %v781
        %v1214 = vunpack.c.h.b16 %v781
        %v1215 = vunpack.c.l.b16 %v782
        %v1216 = vunpack.c.h.b16 %v782
        %v1217 = vunpack.c.l.b16 %v783
        %v1218 = vunpack.c.h.b16 %v783
        %v1219 = vunpack.c.l.b16 %v784
        %v1220 = vunpack.c.h.b16 %v784
        %v1221 = vunpack.c.l.b16 %v785
        %v1222 = vunpack.c.h.b16 %v785
        %v1223 = vunpack.c.l.b16 %v786
        %v1224 = vunpack.c.h.b16 %v786
        %v1225 = vunpack.c.l.b16 %v787
        %v1226 = vunpack.c.h.b16 %v787
        %v1227 = vunpack.c.l.b16 %v788
        %v1228 = vunpack.c.h.b16 %v788
        %v1229 = vunpack.c.l.b16 %v789
        %v1230 = vunpack.c.h.b16 %v789
        %v1231 = vunpack.c.l.b16 %v790
        %v1232 = vunpack.c.h.b16 %v790
        %v1233 = vunpack.c.l.b16 %v791
        %v1234 = vunpack.c.h.b16 %v791
        %v1235 = vunpack.c.l.b16 %v792
        %v1236 = vunpack.c.h.b16 %v792
        %v1237 = vunpack.c.l.b16 %v793
        %v1238 = vunpack.c.h.b16 %v793
        %v1239 = vunpack.c.l.b16 %v794
        %v1240 = vunpack.c.h.b16 %v794
        %v1241 = vunpack.c.l.b16 %v795
        %v1242 = vunpack.c.h.b16 %v795
        %v1243 = vunpack.c.l.b16 %v796
        %v1244 = vunpack.c.h.b16 %v796
        %v1245 = vunpack.c.l.b16 %v797
        %v1246 = vunpack.c.h.b16 %v797
        %v1247 = vunpack.c.l.b16 %v798
        %v1248 = vunpack.c.h.b16 %v798
        %v1249 = vunpack.c.l.b16 %v799
        %v1250 = vunpack.c.h.b16 %v799
        %v1251 = vunpack.c.l.b16 %v800
        %v1252 = vunpack.c.h.b16 %v800
        %v1253 = vunpack.c.l.b16 %v801
        %v1254 = vunpack.c.h.b16 %v801
        %v1255 = vunpack.c.l.b16 %v802
        %v1256 = vunpack.c.h.b16 %v802
        %v1257 = vunpack.c.l.b16 %v803
        %v1258 = vunpack.c.h.b16 %v803
        %v1259 = vunpack.c.l.b16 %v804
        %v1260 = vunpack.c.h.b16 %v804
        %v1261 = vunpack.c.l.b16 %v805
        %v1262 = vunpack.c.h.b16 %v805
        %v1263 = vunpack.c.l.b16 %v806
        %v1264 = vunpack.c.h.b16 %v806
        %v1265 = vunpack.c.l.b16 %v807
        %v1266 = vunpack.c.h.b16 %v807
        %v1267 = vunpack.c.l.b16 %v808
        %v1268 = vunpack.c.h.b16 %v808
        %v1269 = vunpack.c.l.b16 %v809
        %v1270 = vunpack.c.h.b16 %v809
        %v1271 = vunpack.c.l.b16 %v810
        %v1272 = vunpack.c.h.b16 %v810
        %v1273 = vunpack.c.l.b16 %v811
        %v1274 = vunpack.c.h.b16 %v811
        %v1275 = vunpack.c.l.b16 %v812
        %v1276 = vunpack.c.h.b16 %v812
        %v1277 = vunpack.c.l.b16 %v813
        %v1278 = vunpack.c.h.b16 %v813
        %v1279 = vunpack.c.l.b16 %v814
        %v1280 = vunpack.c.h.b16 %v814
        %v1281 = vunpack.c.l.b16 %v815
        %v1282 = vunpack.c.h.b16 %v815
        %v1283 = vunpack.c.l.b16 %v816
        %v1284 = vunpack.c.h.b16 %v816
        %v1285 = vunpack.c.l.b16 %v817
        %v1286 = vunpack.c.h.b16 %v817
        %v1287 = vunpack.c.l.b16 %v818
        %v1288 = vunpack.c.h.b16 %v818
        %v1289 = vunpack.c.l.b16 %v819
        %v1290 = vunpack.c.h.b16 %v819
        %v1291 = vunpack.c.l.b16 %v820
        %v1292 = vunpack.c.h.b16 %v820
        %v1293 = vunpack.c.l.b16 %v821
        %v1294 = vunpack.c.h.b16 %v821
        %v1295 = vunpack.c.l.b16 %v822
        %v1296 = vunpack.c.h.b16 %v822
        %v1297 = vunpack.c.l.b16 %v823
        %v1298 = vunpack.c.h.b16 %v823
        %v1299 = vunpack.c.l.b16 %v824
        %v1300 = vunpack.c.h.b16 %v824
        %v1301 = vunpack.c.l.b16 %v825
        %v1302 = vunpack.c.h.b16 %v825
        %v1303 = vunpack.c.l.b16 %v826
        %v1304 = vunpack.c.h.b16 %v826
        %v1305 = vunpack.c.l.b16 %v827
        %v1306 = vunpack.c.h.b16 %v827
        %v1307 = vunpack.c.l.b16 %v828
        %v1308 = vunpack.c.h.b16 %v828
        %v1309 = vpack.c.b16 %v999, %v989
        %v1310 = vpack.c.b16 %v1000, %v990
        %v1311 = vpack.c.b16 %v1001, %v991
        %v1312 = vpack.c.b16 %v1002, %v992
        %v1313 = vpack.c.b16 %v1003, %v993
        %v1314 = vpack.c.b16 %v1004, %v994
        %v1315 = vpack.c.b16 %v1005, %v995
        %v1316 = vpack.c.b16 %v1006, %v996
        %v1317 = vpack.c.b16 %v1007, %v997
        %v1318 = vpack.c.b16 %v1008, %v998
        %v1319 = vpack.c.b16 %v1019, %v1009
        %v1320 = vpack.c.b16 %v1020, %v1010
        %v1321 = vpack.c.b16 %v1021, %v1011
        %v1322 = vpack.c.b16 %v1022, %v1012
        %v1323 = vpack.c.b16 %v1023, %v1013
        %v1324 = vpack.c.b16 %v1024, %v1014
        %v1325 = vpack.c.b16 %v1025, %v1015
        %v1326 = vpack.c.b16 %v1026, %v1016
        %v1327 = vpack.c.b16 %v1027, %v1017
        %v1328 = vpack.c.b16 %v1028, %v1018
        %v1329 = vpack.c.b16 %v1039, %v1029
        %v1330 = vpack.c.b16 %v1040, %v1030
        %v1331 = vpack.c.b16 %v1041, %v1031
        %v1332 = vpack.c.b16 %v1042, %v1032
        %v1333 = vpack.c.b16 %v1043, %v1033
        %v1334 = vpack.c.b16 %v1044, %v1034
        %v1335 = vpack.c.b16 %v1045, %v1035
        %v1336 = vpack.c.b16 %v1046, %v1036
        %v1337 = vpack.c.b16 %v1047, %v1037
        %v1338 = vpack.c.b16 %v1048, %v1038
        %v1339 = vpack.c.b16 %v1059, %v1049
        %v1340 = vpack.c.b16 %v1060, %v1050
        %v1341 = vpack.c.b16 %v1061, %v1051
        %v1342 = vpack.c.b16 %v1062, %v1052
        %v1343 = vpack.c.b16 %v1063, %v1053
        %v1344 = vpack.c.b16 %v1064, %v1054
        %v1345 = vpack.c.b16 %v1065, %v1055
        %v1346 = vpack.c.b16 %v1066, %v1056
        %v1347 = vpack.c.b16 %v1067, %v1057
        %v1348 = vpack.c.b16 %v1068, %v1058
        %v1349 = vpack.c.b16 %v1079, %v1069
        %v1350 = vpack.c.b16 %v1080, %v1070
        %v1351 = vpack.c.b16 %v1081, %v1071
        %v1352 = vpack.c.b16 %v1082, %v1072
        %v1353 = vpack.c.b16 %v1083, %v1073
        %v1354 = vpack.c.b16 %v1084, %v1074
        %v1355 = vpack.c.b16 %v1085, %v1075
        %v1356 = vpack.c.b16 %v1086, %v1076
        %v1357 = vpack.c.b16 %v1087, %v1077
        %v1358 = vpack.c.b16 %v1088, %v1078
        %v1359 = vpack.c.b16 %v1099, %v1089
        %v1360 = vpack.c.b16 %v1100, %v1090
        %v1361 = vpack.c.b16 %v1101, %v1091
        %v1362 = vpack.c.b16 %v1102, %v1092
        %v1363 = vpack.c.b16 %v1103, %v1093
        %v1364 = vpack.c.b16 %v1104, %v1094
        %v1365 = vpack.c.b16 %v1105, %v1095
        %v1366 = vpack.c.b16 %v1106, %v1096
        %v1367 = vpack.c.b16 %v1107, %v1097
        %v1368 = vpack.c.b16 %v1108, %v1098
        %v1369 = vpack.c.b16 %v1119, %v1109
        %v1370 = vpack.c.b16 %v1120, %v1110
        %v1371 = vpack.c.b16 %v1121, %v1111
        %v1372 = vpack.c.b16 %v1122, %v1112
        %v1373 = vpack.c.b16 %v1123, %v1113
        %v1374 = vpack.c.b16 %v1124, %v1114
        %v1375 = vpack.c.b16 %v1125, %v1115
        %v1376 = vpack.c.b16 %v1126, %v1116
        %v1377 = vpack.c.b16 %v1127, %v1117
        %v1378 = vpack.c.b16 %v1128, %v1118
        %v1379 = vpack.c.b16 %v1139, %v1129
        %v1380 = vpack.c.b16 %v1140, %v1130
        %v1381 = vpack.c.b16 %v1141, %v1131
        %v1382 = vpack.c.b16 %v1142, %v1132
        %v1383 = vpack.c.b16 %v1143, %v1133
        %v1384 = vpack.c.b16 %v1144, %v1134
        %v1385 = vpack.c.b16 %v1145, %v1135
        %v1386 = vpack.c.b16 %v1146, %v1136
        %v1387 = vpack.c.b16 %v1147, %v1137
        %v1388 = vpack.c.b16 %v1148, %v1138
        %v1389 = vpack.c.b16 %v1159, %v1149
        %v1390 = vpack.c.b16 %v1160, %v1150
        %v1391 = vpack.c.b16 %v1161, %v1151
        %v1392 = vpack.c.b16 %v1162, %v1152
        %v1393 = vpack.c.b16 %v1163, %v1153
        %v1394 = vpack.c.b16 %v1164, %v1154
        %v1395 = vpack.c.b16 %v1165, %v1155
        %v1396 = vpack.c.b16 %v1166, %v1156
        %v1397 = vpack.c.b16 %v1167, %v1157
        %v1398 = vpack.c.b16 %v1168, %v1158
        %v1399 = vpack.c.b16 %v1179, %v1169
        %v1400 = vpack.c.b16 %v1180, %v1170
        %v1401 = vpack.c.b16 %v1181, %v1171
        %v1402 = vpack.c.b16 %v1182, %v1172
        %v1403 = vpack.c.b16 %v1183, %v1173
        %v1404 = vpack.c.b16 %v1184, %v1174
        %v1405 = vpack.c.b16 %v1185, %v1175
        %v1406 = vpack.c.b16 %v1186, %v1176
        %v1407 = vpack.c.b16 %v1187, %v1177
        %v1408 = vpack.c.b16 %v1188, %v1178
        %v1409 = vpack.c.b16 %v1199, %v1189
        %v1410 = vpack.c.b16 %v1200, %v1190
        %v1411 = vpack.c.b16 %v1201, %v1191
        %v1412 = vpack.c.b16 %v1202, %v1192
        %v1413 = vpack.c.b16 %v1203, %v1193
        %v1414 = vpack.c.b16 %v1204, %v1194
        %v1415 = vpack.c.b16 %v1205, %v1195
        %v1416 = vpack.c.b16 %v1206, %v1196
        %v1417 = vpack.c.b16 %v1207, %v1197
        %v1418 = vpack.c.b16 %v1208, %v1198
        %v1419 = vpack.c.b16 %v1219, %v1209
        %v1420 = vpack.c.b16 %v1220, %v1210
        %v1421 = vpack.c.b16 %v1221, %v1211
        %v1422 = vpack.c.b16 %v1222, %v1212
        %v1423 = vpack.c.b16 %v1223, %v1213
        %v1424 = vpack.c.b16 %v1224, %v1214
        %v1425 = vpack.c.b16 %v1225, %v1215
        %v1426 = vpack.c.b16 %v1226, %v1216
        %v1427 = vpack.c.b16 %v1227, %v1217
        %v1428 = vpack.c.b16 %v1228, %v1218
        %v1429 = vpack.c.b16 %v1239, %v1229
        %v1430 = vpack.c.b16 %v1240, %v1230
        %v1431 = vpack.c.b16 %v1241, %v1231
        %v1432 = vpack.c.b16 %v1242, %v1232
        %v1433 = vpack.c.b16 %v1243, %v1233
        %v1434 = vpack.c.b16 %v1244, %v1234
        %v1435 = vpack.c.b16 %v1245, %v1235
        %v1436 = vpack.c.b16 %v1246, %v1236
        %v1437 = vpack.c.b16 %v1247, %v1237
        %v1438 = vpack.c.b16 %v1248, %v1238
        %v1439 = vpack.c.b16 %v1259, %v1249
        %v1440 = vpack.c.b16 %v1260, %v1250
        %v1441 = vpack.c.b16 %v1261, %v1251
        %v1442 = vpack.c.b16 %v1262, %v1252
        %v1443 = vpack.c.b16 %v1263, %v1253
        %v1444 = vpack.c.b16 %v1264, %v1254
        %v1445 = vpack.c.b16 %v1265, %v1255
        %v1446 = vpack.c.b16 %v1266, %v1256
        %v1447 = vpack.c.b16 %v1267, %v1257
        %v1448 = vpack.c.b16 %v1268, %v1258
        %v1449 = vpack.c.b16 %v1279, %v1269
        %v1450 = vpack.c.b16 %v1280, %v1270
        %v1451 = vpack.c.b16 %v1281, %v1271
        %v1452 = vpack.c.b16 %v1282, %v1272
        %v1453 = vpack.c.b16 %v1283, %v1273
        %v1454 = vpack.c.b16 %v1284, %v1274
        %v1455 = vpack.c.b16 %v1285, %v1275
        %v1456 = vpack.c.b16 %v1286, %v1276
        %v1457 = vpack.c.b16 %v1287, %v1277
        %v1458 = vpack.c.b16 %v1288, %v1278
        %v1459 = vpack.c.b16 %v1299, %v1289
        %v1460 = vpack.c.b16 %v1300, %v1290
        %v1461 = vpack.c.b16 %v1301, %v1291
        %v1462 = vpack.c.b16 %v1302, %v1292
        %v1463 = vpack.c.b16 %v1303, %v1293
        %v1464 = vpack.c.b16 %v1304, %v1294
        %v1465 = vpack.c.b16 %v1305, %v1295
        %v1466 = vpack.c.b16 %v1306, %v1296
        %v1467 = vpack.c.b16 %v1307, %v1297
        %v1468 = vpack.c.b16 %v1308, %v1298
        %1629 = vmatprep.subr.bf16.mxu0 %v1380
        %1630 = vmatpush1.bf16.msra.mxu0 %v1379
        %1631 = vmatprep.subr.bf16.mxu0 %v1370
        %1632 = vmatpush1.bf16.msra.mxu0 %v1369
        %1633 = vmatprep.subr.bf16.mxu0 %v1360
        %1634 = vmatpush1.bf16.msra.mxu0 %v1359
        %1635 = vmatprep.subr.bf16.mxu0 %v1350
        %1636 = vmatpush1.bf16.msra.mxu0 %v1349
        %1637 = vmatprep.subr.bf16.mxu0 %v1340
        %1638 = vmatpush1.bf16.msra.mxu0 %v1339
        %1639 = vmatprep.subr.bf16.mxu0 %v1330
        %1640 = vmatpush1.bf16.msra.mxu0 %v1329
        %1641 = vmatprep.subr.bf16.mxu0 %v1320
        %1642 = vmatpush1.bf16.msra.mxu0 %v1319
        %1643 = vmatprep.subr.bf16.mxu0 %v1310
        %1644 = vmatpush1.bf16.msra.mxu0 %v1309
        %1645 = vmatprep.subr.bf16.mxu0 %v1460
        %1646 = vmatpush2.bf16.msra.mxu0 %v1459
        %1647 = vmatprep.subr.bf16.mxu0 %v1450
        %1648 = vmatpush2.bf16.msra.mxu0 %v1449
        %1649 = vmatprep.subr.bf16.mxu0 %v1440
        %1650 = vmatpush2.bf16.msra.mxu0 %v1439
        %1651 = vmatprep.subr.bf16.mxu0 %v1430
        %1652 = vmatpush2.bf16.msra.mxu0 %v1429
        %1653 = vmatprep.subr.bf16.mxu0 %v1420
        %1654 = vmatpush2.bf16.msra.mxu0 %v1419
        %1655 = vmatprep.subr.bf16.mxu0 %v1410
        %1656 = vmatpush2.bf16.msra.mxu0 %v1409
        %1657 = vmatprep.subr.bf16.mxu0 %v1400
        %1658 = vmatpush2.bf16.msra.mxu0 %v1399
        %1659 = vmatprep.subr.bf16.mxu0 %v1390
        %1660 = vmatpush2.bf16.msra.mxu0 %v1389
        %1661 = vmatprep.mubr.bf16.mxu0 %v662
        %1662 = vmatmul.mubr.bf16.gmra.mxu0 %v661
        %v1663 = vpop.f32.mrf.mxu0
        %v1664 = vadd.f32 0.0, %v1663
        %v1665 = vpop.f32.mrf.mxu0
        %v1666 = vadd.f32 0.0, %v1665
        %v1667 = vpop.f32.mrf.mxu0
        %v1668 = vpop.f32.mrf.mxu0
        %1669 = vdwg.mxu0
        %1670 = vmatprep.subr.bf16.mxu0 %v1382
        %1671 = vmatpush1.bf16.msra.mxu0 %v1381
        %1672 = vmatprep.subr.bf16.mxu0 %v1372
        %1673 = vmatpush1.bf16.msra.mxu0 %v1371
        %1674 = vmatprep.subr.bf16.mxu0 %v1362
        %1675 = vmatpush1.bf16.msra.mxu0 %v1361
        %1676 = vmatprep.subr.bf16.mxu0 %v1352
        %1677 = vmatpush1.bf16.msra.mxu0 %v1351
        %1678 = vmatprep.subr.bf16.mxu0 %v1342
        %1679 = vmatpush1.bf16.msra.mxu0 %v1341
        %1680 = vmatprep.subr.bf16.mxu0 %v1332
        %1681 = vmatpush1.bf16.msra.mxu0 %v1331
        %1682 = vmatprep.subr.bf16.mxu0 %v1322
        %1683 = vmatpush1.bf16.msra.mxu0 %v1321
        %1684 = vmatprep.subr.bf16.mxu0 %v1312
        %1685 = vmatpush1.bf16.msra.mxu0 %v1311
        %1686 = vmatprep.subr.bf16.mxu0 %v1462
        %1687 = vmatpush2.bf16.msra.mxu0 %v1461
        %1688 = vmatprep.subr.bf16.mxu0 %v1452
        %1689 = vmatpush2.bf16.msra.mxu0 %v1451
        %1690 = vmatprep.subr.bf16.mxu0 %v1442
        %1691 = vmatpush2.bf16.msra.mxu0 %v1441
        %1692 = vmatprep.subr.bf16.mxu0 %v1432
        %1693 = vmatpush2.bf16.msra.mxu0 %v1431
        %1694 = vmatprep.subr.bf16.mxu0 %v1422
        %1695 = vmatpush2.bf16.msra.mxu0 %v1421
        %1696 = vmatprep.subr.bf16.mxu0 %v1412
        %1697 = vmatpush2.bf16.msra.mxu0 %v1411
        %1698 = vmatprep.subr.bf16.mxu0 %v1402
        %1699 = vmatpush2.bf16.msra.mxu0 %v1401
        %1700 = vmatprep.subr.bf16.mxu0 %v1392
        %1701 = vmatpush2.bf16.msra.mxu0 %v1391
        %1702 = vmatprep.mubr.bf16.mxu0 %v662
        %1703 = vmatmul.mubr.bf16.gmra.mxu0 %v661
        %v1704 = vpop.f32.mrf.mxu0
        %v1705 = vadd.f32 0.0, %v1704
        %v1706 = vpop.f32.mrf.mxu0
        %v1707 = vadd.f32 0.0, %v1706
        %v1708 = vpop.f32.mrf.mxu0
        %v1709 = vpop.f32.mrf.mxu0
        %1710 = vdwg.mxu0
        %1711 = vmatprep.subr.bf16.mxu0 %v1384
        %1712 = vmatpush1.bf16.msra.mxu0 %v1383
        %1713 = vmatprep.subr.bf16.mxu0 %v1374
        %1714 = vmatpush1.bf16.msra.mxu0 %v1373
        %1715 = vmatprep.subr.bf16.mxu0 %v1364
        %1716 = vmatpush1.bf16.msra.mxu0 %v1363
        %1717 = vmatprep.subr.bf16.mxu0 %v1354
        %1718 = vmatpush1.bf16.msra.mxu0 %v1353
        %1719 = vmatprep.subr.bf16.mxu0 %v1344
        %1720 = vmatpush1.bf16.msra.mxu0 %v1343
        %1721 = vmatprep.subr.bf16.mxu0 %v1334
        %1722 = vmatpush1.bf16.msra.mxu0 %v1333
        %1723 = vmatprep.subr.bf16.mxu0 %v1324
        %1724 = vmatpush1.bf16.msra.mxu0 %v1323
        %1725 = vmatprep.subr.bf16.mxu0 %v1314
        %1726 = vmatpush1.bf16.msra.mxu0 %v1313
        %1727 = vmatprep.subr.bf16.mxu0 %v1464
        %1728 = vmatpush2.bf16.msra.mxu0 %v1463
        %1729 = vmatprep.subr.bf16.mxu0 %v1454
        %1730 = vmatpush2.bf16.msra.mxu0 %v1453
        %1731 = vmatprep.subr.bf16.mxu0 %v1444
        %1732 = vmatpush2.bf16.msra.mxu0 %v1443
        %1733 = vmatprep.subr.bf16.mxu0 %v1434
        %1734 = vmatpush2.bf16.msra.mxu0 %v1433
        %1735 = vmatprep.subr.bf16.mxu0 %v1424
        %1736 = vmatpush2.bf16.msra.mxu0 %v1423
        %1737 = vmatprep.subr.bf16.mxu0 %v1414
        %1738 = vmatpush2.bf16.msra.mxu0 %v1413
        %1739 = vmatprep.subr.bf16.mxu0 %v1404
        %1740 = vmatpush2.bf16.msra.mxu0 %v1403
        %1741 = vmatprep.subr.bf16.mxu0 %v1394
        %1742 = vmatpush2.bf16.msra.mxu0 %v1393
        %1743 = vmatprep.mubr.bf16.mxu0 %v662
        %1744 = vmatmul.mubr.bf16.gmra.mxu0 %v661
        %v1745 = vpop.f32.mrf.mxu0
        %v1746 = vadd.f32 0.0, %v1745
        %v1747 = vpop.f32.mrf.mxu0
        %v1748 = vadd.f32 0.0, %v1747
        %v1749 = vpop.f32.mrf.mxu0
        %v1750 = vpop.f32.mrf.mxu0
        %1751 = vdwg.mxu0
        %1752 = vmatprep.subr.bf16.mxu0 %v1386
        %1753 = vmatpush1.bf16.msra.mxu0 %v1385
        %1754 = vmatprep.subr.bf16.mxu0 %v1376
        %1755 = vmatpush1.bf16.msra.mxu0 %v1375
        %1756 = vmatprep.subr.bf16.mxu0 %v1366
        %1757 = vmatpush1.bf16.msra.mxu0 %v1365
        %1758 = vmatprep.subr.bf16.mxu0 %v1356
        %1759 = vmatpush1.bf16.msra.mxu0 %v1355
        %1760 = vmatprep.subr.bf16.mxu0 %v1346
        %1761 = vmatpush1.bf16.msra.mxu0 %v1345
        %1762 = vmatprep.subr.bf16.mxu0 %v1336
        %1763 = vmatpush1.bf16.msra.mxu0 %v1335
        %1764 = vmatprep.subr.bf16.mxu0 %v1326
        %1765 = vmatpush1.bf16.msra.mxu0 %v1325
        %1766 = vmatprep.subr.bf16.mxu0 %v1316
        %1767 = vmatpush1.bf16.msra.mxu0 %v1315
        %1768 = vmatprep.subr.bf16.mxu0 %v1466
        %1769 = vmatpush2.bf16.msra.mxu0 %v1465
        %1770 = vmatprep.subr.bf16.mxu0 %v1456
        %1771 = vmatpush2.bf16.msra.mxu0 %v1455
        %1772 = vmatprep.subr.bf16.mxu0 %v1446
        %1773 = vmatpush2.bf16.msra.mxu0 %v1445
        %1774 = vmatprep.subr.bf16.mxu0 %v1436
        %1775 = vmatpush2.bf16.msra.mxu0 %v1435
        %1776 = vmatprep.subr.bf16.mxu0 %v1426
        %1777 = vmatpush2.bf16.msra.mxu0 %v1425
        %1778 = vmatprep.subr.bf16.mxu0 %v1416
        %1779 = vmatpush2.bf16.msra.mxu0 %v1415
        %1780 = vmatprep.subr.bf16.mxu0 %v1406
        %1781 = vmatpush2.bf16.msra.mxu0 %v1405
        %1782 = vmatprep.subr.bf16.mxu0 %v1396
        %1783 = vmatpush2.bf16.msra.mxu0 %v1395
        %1784 = vmatprep.mubr.bf16.mxu0 %v662
        %1785 = vmatmul.mubr.bf16.gmra.mxu0 %v661
        %v1786 = vpop.f32.mrf.mxu0
        %v1787 = vadd.f32 0.0, %v1786
        %v1788 = vpop.f32.mrf.mxu0
        %v1789 = vadd.f32 0.0, %v1788
        %v1790 = vpop.f32.mrf.mxu0
        %v1791 = vpop.f32.mrf.mxu0
        %1792 = vdwg.mxu0
        %1793 = vmatprep.subr.bf16.mxu0 %v1388
        %1794 = vmatpush1.bf16.msra.mxu0 %v1387
        %1795 = vmatprep.subr.bf16.mxu0 %v1378
        %1796 = vmatpush1.bf16.msra.mxu0 %v1377
        %1797 = vmatprep.subr.bf16.mxu0 %v1368
        %1798 = vmatpush1.bf16.msra.mxu0 %v1367
        %1799 = vmatprep.subr.bf16.mxu0 %v1358
        %1800 = vmatpush1.bf16.msra.mxu0 %v1357
        %1801 = vmatprep.subr.bf16.mxu0 %v1348
        %1802 = vmatpush1.bf16.msra.mxu0 %v1347
        %1803 = vmatprep.subr.bf16.mxu0 %v1338
        %1804 = vmatpush1.bf16.msra.mxu0 %v1337
        %1805 = vmatprep.subr.bf16.mxu0 %v1328
        %1806 = vmatpush1.bf16.msra.mxu0 %v1327
        %1807 = vmatprep.subr.bf16.mxu0 %v1318
        %1808 = vmatpush1.bf16.msra.mxu0 %v1317
        %1809 = vmatprep.subr.bf16.mxu0 %v1468
        %1810 = vmatpush2.bf16.msra.mxu0 %v1467
        %1811 = vmatprep.subr.bf16.mxu0 %v1458
        %1812 = vmatpush2.bf16.msra.mxu0 %v1457
        %1813 = vmatprep.subr.bf16.mxu0 %v1448
        %1814 = vmatpush2.bf16.msra.mxu0 %v1447
        %1815 = vmatprep.subr.bf16.mxu0 %v1438
        %1816 = vmatpush2.bf16.msra.mxu0 %v1437
        %1817 = vmatprep.subr.bf16.mxu0 %v1428
        %1818 = vmatpush2.bf16.msra.mxu0 %v1427
        %1819 = vmatprep.subr.bf16.mxu0 %v1418
        %1820 = vmatpush2.bf16.msra.mxu0 %v1417
        %1821 = vmatprep.subr.bf16.mxu0 %v1408
        %1822 = vmatpush2.bf16.msra.mxu0 %v1407
        %1823 = vmatprep.subr.bf16.mxu0 %v1398
        %1824 = vmatpush2.bf16.msra.mxu0 %v1397
        %1825 = vmatprep.mubr.bf16.mxu0 %v662
        %1826 = vmatmul.mubr.bf16.gmra.mxu0 %v661
        %v1827 = vpop.f32.mrf.mxu0
        %v1828 = vadd.f32 0.0, %v1827
        %v1829 = vpop.f32.mrf.mxu0
        %v1830 = vadd.f32 0.0, %v1829
        %v1831 = vpop.f32.mrf.mxu0
        %v1832 = vpop.f32.mrf.mxu0
        %1833 = vdwg.mxu0
        %v1834 = vpack.c.bf16 %v1666, %v1664
        %v1836 = vunpack.c.l.b16 %v1834
        %v1837 = vunpack.c.h.b16 %v1834
        %v1838 = vpack.c.b16 %v1836, %v1836
        %v1839 = vpack.c.b16 %v1837, %v1837
        %1842 = vst [vmem:[#allocation2] sm:$0xf] %v1838
        %1843 = vst [vmem:[#allocation2 + $0x10] sm:$0xf] %v1839
        %v1844 = vpack.c.bf16 %v1707, %v1705
        %v1846 = vunpack.c.l.b16 %v1844
        %v1847 = vunpack.c.h.b16 %v1844
        %v1848 = vpack.c.b16 %v1846, %v1846
        %v1849 = vpack.c.b16 %v1847, %v1847
        %1852 = vst [vmem:[#allocation2 + $0x20] sm:$0xf] %v1848
        %1853 = vst [vmem:[#allocation2 + $0x30] sm:$0xf] %v1849
        %v1854 = vpack.c.bf16 %v1748, %v1746
        %v1856 = vunpack.c.l.b16 %v1854
        %v1857 = vunpack.c.h.b16 %v1854
        %v1858 = vpack.c.b16 %v1856, %v1856
        %v1859 = vpack.c.b16 %v1857, %v1857
        %1862 = vst [vmem:[#allocation2 + $0x40] sm:$0xf] %v1858
        %1863 = vst [vmem:[#allocation2 + $0x50] sm:$0xf] %v1859
        %v1864 = vpack.c.bf16 %v1789, %v1787
        %v1866 = vunpack.c.l.b16 %v1864
        %v1867 = vunpack.c.h.b16 %v1864
        %v1868 = vpack.c.b16 %v1866, %v1866
        %v1869 = vpack.c.b16 %v1867, %v1867
        %1872 = vst [vmem:[#allocation2 + $0x60] sm:$0xf] %v1868
        %1873 = vst [vmem:[#allocation2 + $0x70] sm:$0xf] %v1869
        %v1874 = vpack.c.bf16 %v1830, %v1828
        %v1876 = vunpack.c.l.b16 %v1874
        %v1877 = vunpack.c.h.b16 %v1874
        %v1878 = vpack.c.b16 %v1876, %v1876
        %v1879 = vpack.c.b16 %v1877, %v1877
        %1882 = vst [vmem:[#allocation2 + $0x80] sm:$0xf] %v1878
        %1883 = vst [vmem:[#allocation2 + $0x90] sm:$0xf] %v1879
        %1884 = vmatprep.subr.bf16.mxu0 %v1380
        %1885 = vmatpush1.bf16.msra.mxu0 %v1379
        %1886 = vmatprep.subr.bf16.mxu0 %v1370
        %1887 = vmatpush1.bf16.msra.mxu0 %v1369
        %1888 = vmatprep.subr.bf16.mxu0 %v1360
        %1889 = vmatpush1.bf16.msra.mxu0 %v1359
        %1890 = vmatprep.subr.bf16.mxu0 %v1350
        %1891 = vmatpush1.bf16.msra.mxu0 %v1349
        %1892 = vmatprep.subr.bf16.mxu0 %v1340
        %1893 = vmatpush1.bf16.msra.mxu0 %v1339
        %1894 = vmatprep.subr.bf16.mxu0 %v1330
        %1895 = vmatpush1.bf16.msra.mxu0 %v1329
        %1896 = vmatprep.subr.bf16.mxu0 %v1320
        %1897 = vmatpush1.bf16.msra.mxu0 %v1319
        %1898 = vmatprep.subr.bf16.mxu0 %v1310
        %1899 = vmatpush1.bf16.msra.mxu0 %v1309
        %1900 = vmatprep.subr.bf16.mxu0 %v1460
        %1901 = vmatpush2.bf16.msra.mxu0 %v1459
        %1902 = vmatprep.subr.bf16.mxu0 %v1450
        %1903 = vmatpush2.bf16.msra.mxu0 %v1449
        %1904 = vmatprep.subr.bf16.mxu0 %v1440
        %1905 = vmatpush2.bf16.msra.mxu0 %v1439
        %1906 = vmatprep.subr.bf16.mxu0 %v1430
        %1907 = vmatpush2.bf16.msra.mxu0 %v1429
        %1908 = vmatprep.subr.bf16.mxu0 %v1420
        %1909 = vmatpush2.bf16.msra.mxu0 %v1419
        %1910 = vmatprep.subr.bf16.mxu0 %v1410
        %1911 = vmatpush2.bf16.msra.mxu0 %v1409
        %1912 = vmatprep.subr.bf16.mxu0 %v1400
        %1913 = vmatpush2.bf16.msra.mxu0 %v1399
        %1914 = vmatprep.subr.bf16.mxu0 %v1390
        %1915 = vmatpush2.bf16.msra.mxu0 %v1389
        %1916 = vmatprep.mubr.bf16.mxu0 %v664
        %1917 = vmatmul.mubr.bf16.gmra.mxu0 %v663
        %v1918 = vpop.f32.mrf.mxu0
        %v1919 = vadd.f32 0.0, %v1918
        %v1920 = vpop.f32.mrf.mxu0
        %v1921 = vadd.f32 0.0, %v1920
        %v1922 = vpop.f32.mrf.mxu0
        %v1923 = vpop.f32.mrf.mxu0
        %1924 = vdwg.mxu0
        %1925 = vmatprep.subr.bf16.mxu0 %v1382
        %1926 = vmatpush1.bf16.msra.mxu0 %v1381
        %1927 = vmatprep.subr.bf16.mxu0 %v1372
        %1928 = vmatpush1.bf16.msra.mxu0 %v1371
        %1929 = vmatprep.subr.bf16.mxu0 %v1362
        %1930 = vmatpush1.bf16.msra.mxu0 %v1361
        %1931 = vmatprep.subr.bf16.mxu0 %v1352
        %1932 = vmatpush1.bf16.msra.mxu0 %v1351
        %1933 = vmatprep.subr.bf16.mxu0 %v1342
        %1934 = vmatpush1.bf16.msra.mxu0 %v1341
        %1935 = vmatprep.subr.bf16.mxu0 %v1332
        %1936 = vmatpush1.bf16.msra.mxu0 %v1331
        %1937 = vmatprep.subr.bf16.mxu0 %v1322
        %1938 = vmatpush1.bf16.msra.mxu0 %v1321
        %1939 = vmatprep.subr.bf16.mxu0 %v1312
        %1940 = vmatpush1.bf16.msra.mxu0 %v1311
        %1941 = vmatprep.subr.bf16.mxu0 %v1462
        %1942 = vmatpush2.bf16.msra.mxu0 %v1461
        %1943 = vmatprep.subr.bf16.mxu0 %v1452
        %1944 = vmatpush2.bf16.msra.mxu0 %v1451
        %1945 = vmatprep.subr.bf16.mxu0 %v1442
        %1946 = vmatpush2.bf16.msra.mxu0 %v1441
        %1947 = vmatprep.subr.bf16.mxu0 %v1432
        %1948 = vmatpush2.bf16.msra.mxu0 %v1431
        %1949 = vmatprep.subr.bf16.mxu0 %v1422
        %1950 = vmatpush2.bf16.msra.mxu0 %v1421
        %1951 = vmatprep.subr.bf16.mxu0 %v1412
        %1952 = vmatpush2.bf16.msra.mxu0 %v1411
        %1953 = vmatprep.subr.bf16.mxu0 %v1402
        %1954 = vmatpush2.bf16.msra.mxu0 %v1401
        %1955 = vmatprep.subr.bf16.mxu0 %v1392
        %1956 = vmatpush2.bf16.msra.mxu0 %v1391
        %1957 = vmatprep.mubr.bf16.mxu0 %v664
        %1958 = vmatmul.mubr.bf16.gmra.mxu0 %v663
        %v1959 = vpop.f32.mrf.mxu0
        %v1960 = vadd.f32 0.0, %v1959
        %v1961 = vpop.f32.mrf.mxu0
        %v1962 = vadd.f32 0.0, %v1961
        %v1963 = vpop.f32.mrf.mxu0
        %v1964 = vpop.f32.mrf.mxu0
        %1965 = vdwg.mxu0
        %1966 = vmatprep.subr.bf16.mxu0 %v1384
        %1967 = vmatpush1.bf16.msra.mxu0 %v1383
        %1968 = vmatprep.subr.bf16.mxu0 %v1374
        %1969 = vmatpush1.bf16.msra.mxu0 %v1373
        %1970 = vmatprep.subr.bf16.mxu0 %v1364
        %1971 = vmatpush1.bf16.msra.mxu0 %v1363
        %1972 = vmatprep.subr.bf16.mxu0 %v1354
        %1973 = vmatpush1.bf16.msra.mxu0 %v1353
        %1974 = vmatprep.subr.bf16.mxu0 %v1344
        %1975 = vmatpush1.bf16.msra.mxu0 %v1343
        %1976 = vmatprep.subr.bf16.mxu0 %v1334
        %1977 = vmatpush1.bf16.msra.mxu0 %v1333
        %1978 = vmatprep.subr.bf16.mxu0 %v1324
        %1979 = vmatpush1.bf16.msra.mxu0 %v1323
        %1980 = vmatprep.subr.bf16.mxu0 %v1314
        %1981 = vmatpush1.bf16.msra.mxu0 %v1313
        %1982 = vmatprep.subr.bf16.mxu0 %v1464
        %1983 = vmatpush2.bf16.msra.mxu0 %v1463
        %1984 = vmatprep.subr.bf16.mxu0 %v1454
        %1985 = vmatpush2.bf16.msra.mxu0 %v1453
        %1986 = vmatprep.subr.bf16.mxu0 %v1444
        %1987 = vmatpush2.bf16.msra.mxu0 %v1443
        %1988 = vmatprep.subr.bf16.mxu0 %v1434
        %1989 = vmatpush2.bf16.msra.mxu0 %v1433
        %1990 = vmatprep.subr.bf16.mxu0 %v1424
        %1991 = vmatpush2.bf16.msra.mxu0 %v1423
        %1992 = vmatprep.subr.bf16.mxu0 %v1414
        %1993 = vmatpush2.bf16.msra.mxu0 %v1413
        %1994 = vmatprep.subr.bf16.mxu0 %v1404
        %1995 = vmatpush2.bf16.msra.mxu0 %v1403
        %1996 = vmatprep.subr.bf16.mxu0 %v1394
        %1997 = vmatpush2.bf16.msra.mxu0 %v1393
        %1998 = vmatprep.mubr.bf16.mxu0 %v664
        %1999 = vmatmul.mubr.bf16.gmra.mxu0 %v663
        %v2000 = vpop.f32.mrf.mxu0
        %v2001 = vadd.f32 0.0, %v2000
        %v2002 = vpop.f32.mrf.mxu0
        %v2003 = vadd.f32 0.0, %v2002
        %v2004 = vpop.f32.mrf.mxu0
        %v2005 = vpop.f32.mrf.mxu0
        %2006 = vdwg.mxu0
        %2007 = vmatprep.subr.bf16.mxu0 %v1386
        %2008 = vmatpush1.bf16.msra.mxu0 %v1385
        %2009 = vmatprep.subr.bf16.mxu0 %v1376
        %2010 = vmatpush1.bf16.msra.mxu0 %v1375
        %2011 = vmatprep.subr.bf16.mxu0 %v1366
        %2012 = vmatpush1.bf16.msra.mxu0 %v1365
        %2013 = vmatprep.subr.bf16.mxu0 %v1356
        %2014 = vmatpush1.bf16.msra.mxu0 %v1355
        %2015 = vmatprep.subr.bf16.mxu0 %v1346
        %2016 = vmatpush1.bf16.msra.mxu0 %v1345
        %2017 = vmatprep.subr.bf16.mxu0 %v1336
        %2018 = vmatpush1.bf16.msra.mxu0 %v1335
        %2019 = vmatprep.subr.bf16.mxu0 %v1326
        %2020 = vmatpush1.bf16.msra.mxu0 %v1325
        %2021 = vmatprep.subr.bf16.mxu0 %v1316
        %2022 = vmatpush1.bf16.msra.mxu0 %v1315
        %2023 = vmatprep.subr.bf16.mxu0 %v1466
        %2024 = vmatpush2.bf16.msra.mxu0 %v1465
        %2025 = vmatprep.subr.bf16.mxu0 %v1456
        %2026 = vmatpush2.bf16.msra.mxu0 %v1455
        %2027 = vmatprep.subr.bf16.mxu0 %v1446
        %2028 = vmatpush2.bf16.msra.mxu0 %v1445
        %2029 = vmatprep.subr.bf16.mxu0 %v1436
        %2030 = vmatpush2.bf16.msra.mxu0 %v1435
        %2031 = vmatprep.subr.bf16.mxu0 %v1426
        %2032 = vmatpush2.bf16.msra.mxu0 %v1425
        %2033 = vmatprep.subr.bf16.mxu0 %v1416
        %2034 = vmatpush2.bf16.msra.mxu0 %v1415
        %2035 = vmatprep.subr.bf16.mxu0 %v1406
        %2036 = vmatpush2.bf16.msra.mxu0 %v1405
        %2037 = vmatprep.subr.bf16.mxu0 %v1396
        %2038 = vmatpush2.bf16.msra.mxu0 %v1395
        %2039 = vmatprep.mubr.bf16.mxu0 %v664
        %2040 = vmatmul.mubr.bf16.gmra.mxu0 %v663
        %v2041 = vpop.f32.mrf.mxu0
        %v2042 = vadd.f32 0.0, %v2041
        %v2043 = vpop.f32.mrf.mxu0
        %v2044 = vadd.f32 0.0, %v2043
        %v2045 = vpop.f32.mrf.mxu0
        %v2046 = vpop.f32.mrf.mxu0
        %2047 = vdwg.mxu0
        %2048 = vmatprep.subr.bf16.mxu0 %v1388
        %2049 = vmatpush1.bf16.msra.mxu0 %v1387
        %2050 = vmatprep.subr.bf16.mxu0 %v1378
        %2051 = vmatpush1.bf16.msra.mxu0 %v1377
        %2052 = vmatprep.subr.bf16.mxu0 %v1368
        %2053 = vmatpush1.bf16.msra.mxu0 %v1367
        %2054 = vmatprep.subr.bf16.mxu0 %v1358
        %2055 = vmatpush1.bf16.msra.mxu0 %v1357
        %2056 = vmatprep.subr.bf16.mxu0 %v1348
        %2057 = vmatpush1.bf16.msra.mxu0 %v1347
        %2058 = vmatprep.subr.bf16.mxu0 %v1338
        %2059 = vmatpush1.bf16.msra.mxu0 %v1337
        %2060 = vmatprep.subr.bf16.mxu0 %v1328
        %2061 = vmatpush1.bf16.msra.mxu0 %v1327
        %2062 = vmatprep.subr.bf16.mxu0 %v1318
        %2063 = vmatpush1.bf16.msra.mxu0 %v1317
        %2064 = vmatprep.subr.bf16.mxu0 %v1468
        %2065 = vmatpush2.bf16.msra.mxu0 %v1467
        %2066 = vmatprep.subr.bf16.mxu0 %v1458
        %2067 = vmatpush2.bf16.msra.mxu0 %v1457
        %2068 = vmatprep.subr.bf16.mxu0 %v1448
        %2069 = vmatpush2.bf16.msra.mxu0 %v1447
        %2070 = vmatprep.subr.bf16.mxu0 %v1438
        %2071 = vmatpush2.bf16.msra.mxu0 %v1437
        %2072 = vmatprep.subr.bf16.mxu0 %v1428
        %2073 = vmatpush2.bf16.msra.mxu0 %v1427
        %2074 = vmatprep.subr.bf16.mxu0 %v1418
        %2075 = vmatpush2.bf16.msra.mxu0 %v1417
        %2076 = vmatprep.subr.bf16.mxu0 %v1408
        %2077 = vmatpush2.bf16.msra.mxu0 %v1407
        %2078 = vmatprep.subr.bf16.mxu0 %v1398
        %2079 = vmatpush2.bf16.msra.mxu0 %v1397
        %2080 = vmatprep.mubr.bf16.mxu0 %v664
        %2081 = vmatmul.mubr.bf16.gmra.mxu0 %v663
        %v2082 = vpop.f32.mrf.mxu0
        %v2083 = vadd.f32 0.0, %v2082
        %v2084 = vpop.f32.mrf.mxu0
        %v2085 = vadd.f32 0.0, %v2084
        %v2086 = vpop.f32.mrf.mxu0
        %v2087 = vpop.f32.mrf.mxu0
        %2088 = vdwg.mxu0
        %v2089 = vpack.c.bf16 %v1921, %v1919
        %v2091 = vunpack.c.l.b16 %v2089
        %v2092 = vunpack.c.h.b16 %v2089
        %v2093 = vpack.c.b16 %v2091, %v2091
        %v2094 = vpack.c.b16 %v2092, %v2092
        %2097 = vst [vmem:[#allocation2 + $0x4] sm:$0xf] %v2093
        %2098 = vst [vmem:[#allocation2 + $0x14] sm:$0xf] %v2094
        %v2099 = vpack.c.bf16 %v1962, %v1960
        %v2101 = vunpack.c.l.b16 %v2099
        %v2102 = vunpack.c.h.b16 %v2099
        %v2103 = vpack.c.b16 %v2101, %v2101
        %v2104 = vpack.c.b16 %v2102, %v2102
        %2107 = vst [vmem:[#allocation2 + $0x24] sm:$0xf] %v2103
        %2108 = vst [vmem:[#allocation2 + $0x34] sm:$0xf] %v2104
        %v2109 = vpack.c.bf16 %v2003, %v2001
        %v2111 = vunpack.c.l.b16 %v2109
        %v2112 = vunpack.c.h.b16 %v2109
        %v2113 = vpack.c.b16 %v2111, %v2111
        %v2114 = vpack.c.b16 %v2112, %v2112
        %2117 = vst [vmem:[#allocation2 + $0x44] sm:$0xf] %v2113
        %2118 = vst [vmem:[#allocation2 + $0x54] sm:$0xf] %v2114
        %v2119 = vpack.c.bf16 %v2044, %v2042
        %v2121 = vunpack.c.l.b16 %v2119
        %v2122 = vunpack.c.h.b16 %v2119
        %v2123 = vpack.c.b16 %v2121, %v2121
        %v2124 = vpack.c.b16 %v2122, %v2122
        %2127 = vst [vmem:[#allocation2 + $0x64] sm:$0xf] %v2123
        %2128 = vst [vmem:[#allocation2 + $0x74] sm:$0xf] %v2124
        %v2129 = vpack.c.bf16 %v2085, %v2083
        %v2131 = vunpack.c.l.b16 %v2129
        %v2132 = vunpack.c.h.b16 %v2129
        %v2133 = vpack.c.b16 %v2131, %v2131
        %v2134 = vpack.c.b16 %v2132, %v2132
        %2137 = vst [vmem:[#allocation2 + $0x84] sm:$0xf] %v2133
        %2138 = vst [vmem:[#allocation2 + $0x94] sm:$0xf] %v2134
        %2139 = vmatprep.subr.bf16.mxu0 %v1380
        %2140 = vmatpush1.bf16.msra.mxu0 %v1379
        %2141 = vmatprep.subr.bf16.mxu0 %v1370
        %2142 = vmatpush1.bf16.msra.mxu0 %v1369
        %2143 = vmatprep.subr.bf16.mxu0 %v1360
        %2144 = vmatpush1.bf16.msra.mxu0 %v1359
        %2145 = vmatprep.subr.bf16.mxu0 %v1350
        %2146 = vmatpush1.bf16.msra.mxu0 %v1349
        %2147 = vmatprep.subr.bf16.mxu0 %v1340
        %2148 = vmatpush1.bf16.msra.mxu0 %v1339
        %2149 = vmatprep.subr.bf16.mxu0 %v1330
        %2150 = vmatpush1.bf16.msra.mxu0 %v1329
        %2151 = vmatprep.subr.bf16.mxu0 %v1320
        %2152 = vmatpush1.bf16.msra.mxu0 %v1319
        %2153 = vmatprep.subr.bf16.mxu0 %v1310
        %2154 = vmatpush1.bf16.msra.mxu0 %v1309
        %2155 = vmatprep.subr.bf16.mxu0 %v1460
        %2156 = vmatpush2.bf16.msra.mxu0 %v1459
        %2157 = vmatprep.subr.bf16.mxu0 %v1450
        %2158 = vmatpush2.bf16.msra.mxu0 %v1449
        %2159 = vmatprep.subr.bf16.mxu0 %v1440
        %2160 = vmatpush2.bf16.msra.mxu0 %v1439
        %2161 = vmatprep.subr.bf16.mxu0 %v1430
        %2162 = vmatpush2.bf16.msra.mxu0 %v1429
        %2163 = vmatprep.subr.bf16.mxu0 %v1420
        %2164 = vmatpush2.bf16.msra.mxu0 %v1419
        %2165 = vmatprep.subr.bf16.mxu0 %v1410
        %2166 = vmatpush2.bf16.msra.mxu0 %v1409
        %2167 = vmatprep.subr.bf16.mxu0 %v1400
        %2168 = vmatpush2.bf16.msra.mxu0 %v1399
        %2169 = vmatprep.subr.bf16.mxu0 %v1390
        %2170 = vmatpush2.bf16.msra.mxu0 %v1389
        %2171 = vmatprep.mubr.bf16.mxu0 %v666
        %2172 = vmatmul.mubr.bf16.gmra.mxu0 %v665
        %v2173 = vpop.f32.mrf.mxu0
        %v2174 = vadd.f32 0.0, %v2173
        %v2175 = vpop.f32.mrf.mxu0
        %v2176 = vadd.f32 0.0, %v2175
        %v2177 = vpop.f32.mrf.mxu0
        %v2178 = vpop.f32.mrf.mxu0
        %2179 = vdwg.mxu0
        %2180 = vmatprep.subr.bf16.mxu0 %v1382
        %2181 = vmatpush1.bf16.msra.mxu0 %v1381
        %2182 = vmatprep.subr.bf16.mxu0 %v1372
        %2183 = vmatpush1.bf16.msra.mxu0 %v1371
        %2184 = vmatprep.subr.bf16.mxu0 %v1362
        %2185 = vmatpush1.bf16.msra.mxu0 %v1361
        %2186 = vmatprep.subr.bf16.mxu0 %v1352
        %2187 = vmatpush1.bf16.msra.mxu0 %v1351
        %2188 = vmatprep.subr.bf16.mxu0 %v1342
        %2189 = vmatpush1.bf16.msra.mxu0 %v1341
        %2190 = vmatprep.subr.bf16.mxu0 %v1332
        %2191 = vmatpush1.bf16.msra.mxu0 %v1331
        %2192 = vmatprep.subr.bf16.mxu0 %v1322
        %2193 = vmatpush1.bf16.msra.mxu0 %v1321
        %2194 = vmatprep.subr.bf16.mxu0 %v1312
        %2195 = vmatpush1.bf16.msra.mxu0 %v1311
        %2196 = vmatprep.subr.bf16.mxu0 %v1462
        %2197 = vmatpush2.bf16.msra.mxu0 %v1461
        %2198 = vmatprep.subr.bf16.mxu0 %v1452
        %2199 = vmatpush2.bf16.msra.mxu0 %v1451
        %2200 = vmatprep.subr.bf16.mxu0 %v1442
        %2201 = vmatpush2.bf16.msra.mxu0 %v1441
        %2202 = vmatprep.subr.bf16.mxu0 %v1432
        %2203 = vmatpush2.bf16.msra.mxu0 %v1431
        %2204 = vmatprep.subr.bf16.mxu0 %v1422
        %2205 = vmatpush2.bf16.msra.mxu0 %v1421
        %2206 = vmatprep.subr.bf16.mxu0 %v1412
        %2207 = vmatpush2.bf16.msra.mxu0 %v1411
        %2208 = vmatprep.subr.bf16.mxu0 %v1402
        %2209 = vmatpush2.bf16.msra.mxu0 %v1401
        %2210 = vmatprep.subr.bf16.mxu0 %v1392
        %2211 = vmatpush2.bf16.msra.mxu0 %v1391
        %2212 = vmatprep.mubr.bf16.mxu0 %v666
        %2213 = vmatmul.mubr.bf16.gmra.mxu0 %v665
        %v2214 = vpop.f32.mrf.mxu0
        %v2215 = vadd.f32 0.0, %v2214
        %v2216 = vpop.f32.mrf.mxu0
        %v2217 = vadd.f32 0.0, %v2216
        %v2218 = vpop.f32.mrf.mxu0
        %v2219 = vpop.f32.mrf.mxu0
        %2220 = vdwg.mxu0
        %2221 = vmatprep.subr.bf16.mxu0 %v1384
        %2222 = vmatpush1.bf16.msra.mxu0 %v1383
        %2223 = vmatprep.subr.bf16.mxu0 %v1374
        %2224 = vmatpush1.bf16.msra.mxu0 %v1373
        %2225 = vmatprep.subr.bf16.mxu0 %v1364
        %2226 = vmatpush1.bf16.msra.mxu0 %v1363
        %2227 = vmatprep.subr.bf16.mxu0 %v1354
        %2228 = vmatpush1.bf16.msra.mxu0 %v1353
        %2229 = vmatprep.subr.bf16.mxu0 %v1344
        %2230 = vmatpush1.bf16.msra.mxu0 %v1343
        %2231 = vmatprep.subr.bf16.mxu0 %v1334
        %2232 = vmatpush1.bf16.msra.mxu0 %v1333
        %2233 = vmatprep.subr.bf16.mxu0 %v1324
        %2234 = vmatpush1.bf16.msra.mxu0 %v1323
        %2235 = vmatprep.subr.bf16.mxu0 %v1314
        %2236 = vmatpush1.bf16.msra.mxu0 %v1313
        %2237 = vmatprep.subr.bf16.mxu0 %v1464
        %2238 = vmatpush2.bf16.msra.mxu0 %v1463
        %2239 = vmatprep.subr.bf16.mxu0 %v1454
        %2240 = vmatpush2.bf16.msra.mxu0 %v1453
        %2241 = vmatprep.subr.bf16.mxu0 %v1444
        %2242 = vmatpush2.bf16.msra.mxu0 %v1443
        %2243 = vmatprep.subr.bf16.mxu0 %v1434
        %2244 = vmatpush2.bf16.msra.mxu0 %v1433
        %2245 = vmatprep.subr.bf16.mxu0 %v1424
        %2246 = vmatpush2.bf16.msra.mxu0 %v1423
        %2247 = vmatprep.subr.bf16.mxu0 %v1414
        %2248 = vmatpush2.bf16.msra.mxu0 %v1413
        %2249 = vmatprep.subr.bf16.mxu0 %v1404
        %2250 = vmatpush2.bf16.msra.mxu0 %v1403
        %2251 = vmatprep.subr.bf16.mxu0 %v1394
        %2252 = vmatpush2.bf16.msra.mxu0 %v1393
        %2253 = vmatprep.mubr.bf16.mxu0 %v666
        %2254 = vmatmul.mubr.bf16.gmra.mxu0 %v665
        %v2255 = vpop.f32.mrf.mxu0
        %v2256 = vadd.f32 0.0, %v2255
        %v2257 = vpop.f32.mrf.mxu0
        %v2258 = vadd.f32 0.0, %v2257
        %v2259 = vpop.f32.mrf.mxu0
        %v2260 = vpop.f32.mrf.mxu0
        %2261 = vdwg.mxu0
        %2262 = vmatprep.subr.bf16.mxu0 %v1386
        %2263 = vmatpush1.bf16.msra.mxu0 %v1385
        %2264 = vmatprep.subr.bf16.mxu0 %v1376
        %2265 = vmatpush1.bf16.msra.mxu0 %v1375
        %2266 = vmatprep.subr.bf16.mxu0 %v1366
        %2267 = vmatpush1.bf16.msra.mxu0 %v1365
        %2268 = vmatprep.subr.bf16.mxu0 %v1356
        %2269 = vmatpush1.bf16.msra.mxu0 %v1355
        %2270 = vmatprep.subr.bf16.mxu0 %v1346
        %2271 = vmatpush1.bf16.msra.mxu0 %v1345
        %2272 = vmatprep.subr.bf16.mxu0 %v1336
        %2273 = vmatpush1.bf16.msra.mxu0 %v1335
        %2274 = vmatprep.subr.bf16.mxu0 %v1326
        %2275 = vmatpush1.bf16.msra.mxu0 %v1325
        %2276 = vmatprep.subr.bf16.mxu0 %v1316
        %2277 = vmatpush1.bf16.msra.mxu0 %v1315
        %2278 = vmatprep.subr.bf16.mxu0 %v1466
        %2279 = vmatpush2.bf16.msra.mxu0 %v1465
        %2280 = vmatprep.subr.bf16.mxu0 %v1456
        %2281 = vmatpush2.bf16.msra.mxu0 %v1455
        %2282 = vmatprep.subr.bf16.mxu0 %v1446
        %2283 = vmatpush2.bf16.msra.mxu0 %v1445
        %2284 = vmatprep.subr.bf16.mxu0 %v1436
        %2285 = vmatpush2.bf16.msra.mxu0 %v1435
        %2286 = vmatprep.subr.bf16.mxu0 %v1426
        %2287 = vmatpush2.bf16.msra.mxu0 %v1425
        %2288 = vmatprep.subr.bf16.mxu0 %v1416
        %2289 = vmatpush2.bf16.msra.mxu0 %v1415
        %2290 = vmatprep.subr.bf16.mxu0 %v1406
        %2291 = vmatpush2.bf16.msra.mxu0 %v1405
        %2292 = vmatprep.subr.bf16.mxu0 %v1396
        %2293 = vmatpush2.bf16.msra.mxu0 %v1395
        %2294 = vmatprep.mubr.bf16.mxu0 %v666
        %2295 = vmatmul.mubr.bf16.gmra.mxu0 %v665
        %v2296 = vpop.f32.mrf.mxu0
        %v2297 = vadd.f32 0.0, %v2296
        %v2298 = vpop.f32.mrf.mxu0
        %v2299 = vadd.f32 0.0, %v2298
        %v2300 = vpop.f32.mrf.mxu0
        %v2301 = vpop.f32.mrf.mxu0
        %2302 = vdwg.mxu0
        %2303 = vmatprep.subr.bf16.mxu0 %v1388
        %2304 = vmatpush1.bf16.msra.mxu0 %v1387
        %2305 = vmatprep.subr.bf16.mxu0 %v1378
        %2306 = vmatpush1.bf16.msra.mxu0 %v1377
        %2307 = vmatprep.subr.bf16.mxu0 %v1368
        %2308 = vmatpush1.bf16.msra.mxu0 %v1367
        %2309 = vmatprep.subr.bf16.mxu0 %v1358
        %2310 = vmatpush1.bf16.msra.mxu0 %v1357
        %2311 = vmatprep.subr.bf16.mxu0 %v1348
        %2312 = vmatpush1.bf16.msra.mxu0 %v1347
        %2313 = vmatprep.subr.bf16.mxu0 %v1338
        %2314 = vmatpush1.bf16.msra.mxu0 %v1337
        %2315 = vmatprep.subr.bf16.mxu0 %v1328
        %2316 = vmatpush1.bf16.msra.mxu0 %v1327
        %2317 = vmatprep.subr.bf16.mxu0 %v1318
        %2318 = vmatpush1.bf16.msra.mxu0 %v1317
        %2319 = vmatprep.subr.bf16.mxu0 %v1468
        %2320 = vmatpush2.bf16.msra.mxu0 %v1467
        %2321 = vmatprep.subr.bf16.mxu0 %v1458
        %2322 = vmatpush2.bf16.msra.mxu0 %v1457
        %2323 = vmatprep.subr.bf16.mxu0 %v1448
        %2324 = vmatpush2.bf16.msra.mxu0 %v1447
        %2325 = vmatprep.subr.bf16.mxu0 %v1438
        %2326 = vmatpush2.bf16.msra.mxu0 %v1437
        %2327 = vmatprep.subr.bf16.mxu0 %v1428
        %2328 = vmatpush2.bf16.msra.mxu0 %v1427
        %2329 = vmatprep.subr.bf16.mxu0 %v1418
        %2330 = vmatpush2.bf16.msra.mxu0 %v1417
        %2331 = vmatprep.subr.bf16.mxu0 %v1408
        %2332 = vmatpush2.bf16.msra.mxu0 %v1407
        %2333 = vmatprep.subr.bf16.mxu0 %v1398
        %2334 = vmatpush2.bf16.msra.mxu0 %v1397
        %2335 = vmatprep.mubr.bf16.mxu0 %v666
        %2336 = vmatmul.mubr.bf16.gmra.mxu0 %v665
        %v2337 = vpop.f32.mrf.mxu0
        %v2338 = vadd.f32 0.0, %v2337
        %v2339 = vpop.f32.mrf.mxu0
        %v2340 = vadd.f32 0.0, %v2339
        %v2341 = vpop.f32.mrf.mxu0
        %v2342 = vpop.f32.mrf.mxu0
        %2343 = vdwg.mxu0
        %v2344 = vpack.c.bf16 %v2176, %v2174
        %v2346 = vunpack.c.l.b16 %v2344
        %v2347 = vunpack.c.h.b16 %v2344
        %v2348 = vpack.c.b16 %v2346, %v2346
        %v2349 = vpack.c.b16 %v2347, %v2347
        %2352 = vst [vmem:[#allocation2 + $0x8] sm:$0xf] %v2348
        %2353 = vst [vmem:[#allocation2 + $0x18] sm:$0xf] %v2349
        %v2354 = vpack.c.bf16 %v2217, %v2215
        %v2356 = vunpack.c.l.b16 %v2354
        %v2357 = vunpack.c.h.b16 %v2354
        %v2358 = vpack.c.b16 %v2356, %v2356
        %v2359 = vpack.c.b16 %v2357, %v2357
        %2362 = vst [vmem:[#allocation2 + $0x28] sm:$0xf] %v2358
        %2363 = vst [vmem:[#allocation2 + $0x38] sm:$0xf] %v2359
        %v2364 = vpack.c.bf16 %v2258, %v2256
        %v2366 = vunpack.c.l.b16 %v2364
        %v2367 = vunpack.c.h.b16 %v2364
        %v2368 = vpack.c.b16 %v2366, %v2366
        %v2369 = vpack.c.b16 %v2367, %v2367
        %2372 = vst [vmem:[#allocation2 + $0x48] sm:$0xf] %v2368
        %2373 = vst [vmem:[#allocation2 + $0x58] sm:$0xf] %v2369
        %v2374 = vpack.c.bf16 %v2299, %v2297
        %v2376 = vunpack.c.l.b16 %v2374
        %v2377 = vunpack.c.h.b16 %v2374
        %v2378 = vpack.c.b16 %v2376, %v2376
        %v2379 = vpack.c.b16 %v2377, %v2377
        %2382 = vst [vmem:[#allocation2 + $0x68] sm:$0xf] %v2378
        %2383 = vst [vmem:[#allocation2 + $0x78] sm:$0xf] %v2379
        %v2384 = vpack.c.bf16 %v2340, %v2338
        %v2386 = vunpack.c.l.b16 %v2384
        %v2387 = vunpack.c.h.b16 %v2384
        %v2388 = vpack.c.b16 %v2386, %v2386
        %v2389 = vpack.c.b16 %v2387, %v2387
        %2392 = vst [vmem:[#allocation2 + $0x88] sm:$0xf] %v2388
        %2393 = vst [vmem:[#allocation2 + $0x98] sm:$0xf] %v2389
        %2394 = vmatprep.subr.bf16.mxu0 %v1380
        %2395 = vmatpush1.bf16.msra.mxu0 %v1379
        %2396 = vmatprep.subr.bf16.mxu0 %v1370
        %2397 = vmatpush1.bf16.msra.mxu0 %v1369
        %2398 = vmatprep.subr.bf16.mxu0 %v1360
        %2399 = vmatpush1.bf16.msra.mxu0 %v1359
        %2400 = vmatprep.subr.bf16.mxu0 %v1350
        %2401 = vmatpush1.bf16.msra.mxu0 %v1349
        %2402 = vmatprep.subr.bf16.mxu0 %v1340
        %2403 = vmatpush1.bf16.msra.mxu0 %v1339
        %2404 = vmatprep.subr.bf16.mxu0 %v1330
        %2405 = vmatpush1.bf16.msra.mxu0 %v1329
        %2406 = vmatprep.subr.bf16.mxu0 %v1320
        %2407 = vmatpush1.bf16.msra.mxu0 %v1319
        %2408 = vmatprep.subr.bf16.mxu0 %v1310
        %2409 = vmatpush1.bf16.msra.mxu0 %v1309
        %2410 = vmatprep.subr.bf16.mxu0 %v1460
        %2411 = vmatpush2.bf16.msra.mxu0 %v1459
        %2412 = vmatprep.subr.bf16.mxu0 %v1450
        %2413 = vmatpush2.bf16.msra.mxu0 %v1449
        %2414 = vmatprep.subr.bf16.mxu0 %v1440
        %2415 = vmatpush2.bf16.msra.mxu0 %v1439
        %2416 = vmatprep.subr.bf16.mxu0 %v1430
        %2417 = vmatpush2.bf16.msra.mxu0 %v1429
        %2418 = vmatprep.subr.bf16.mxu0 %v1420
        %2419 = vmatpush2.bf16.msra.mxu0 %v1419
        %2420 = vmatprep.subr.bf16.mxu0 %v1410
        %2421 = vmatpush2.bf16.msra.mxu0 %v1409
        %2422 = vmatprep.subr.bf16.mxu0 %v1400
        %2423 = vmatpush2.bf16.msra.mxu0 %v1399
        %2424 = vmatprep.subr.bf16.mxu0 %v1390
        %2425 = vmatpush2.bf16.msra.mxu0 %v1389
        %2426 = vmatprep.mubr.bf16.mxu0 %v668
        %2427 = vmatmul.mubr.bf16.gmra.mxu0 %v667
        %v2428 = vpop.f32.mrf.mxu0
        %v2429 = vadd.f32 0.0, %v2428
        %v2430 = vpop.f32.mrf.mxu0
        %v2431 = vadd.f32 0.0, %v2430
        %v2432 = vpop.f32.mrf.mxu0
        %v2433 = vpop.f32.mrf.mxu0
        %2434 = vdwg.mxu0
        %2435 = vmatprep.subr.bf16.mxu0 %v1382
        %2436 = vmatpush1.bf16.msra.mxu0 %v1381
        %2437 = vmatprep.subr.bf16.mxu0 %v1372
        %2438 = vmatpush1.bf16.msra.mxu0 %v1371
        %2439 = vmatprep.subr.bf16.mxu0 %v1362
        %2440 = vmatpush1.bf16.msra.mxu0 %v1361
        %2441 = vmatprep.subr.bf16.mxu0 %v1352
        %2442 = vmatpush1.bf16.msra.mxu0 %v1351
        %2443 = vmatprep.subr.bf16.mxu0 %v1342
        %2444 = vmatpush1.bf16.msra.mxu0 %v1341
        %2445 = vmatprep.subr.bf16.mxu0 %v1332
        %2446 = vmatpush1.bf16.msra.mxu0 %v1331
        %2447 = vmatprep.subr.bf16.mxu0 %v1322
        %2448 = vmatpush1.bf16.msra.mxu0 %v1321
        %2449 = vmatprep.subr.bf16.mxu0 %v1312
        %2450 = vmatpush1.bf16.msra.mxu0 %v1311
        %2451 = vmatprep.subr.bf16.mxu0 %v1462
        %2452 = vmatpush2.bf16.msra.mxu0 %v1461
        %2453 = vmatprep.subr.bf16.mxu0 %v1452
        %2454 = vmatpush2.bf16.msra.mxu0 %v1451
        %2455 = vmatprep.subr.bf16.mxu0 %v1442
        %2456 = vmatpush2.bf16.msra.mxu0 %v1441
        %2457 = vmatprep.subr.bf16.mxu0 %v1432
        %2458 = vmatpush2.bf16.msra.mxu0 %v1431
        %2459 = vmatprep.subr.bf16.mxu0 %v1422
        %2460 = vmatpush2.bf16.msra.mxu0 %v1421
        %2461 = vmatprep.subr.bf16.mxu0 %v1412
        %2462 = vmatpush2.bf16.msra.mxu0 %v1411
        %2463 = vmatprep.subr.bf16.mxu0 %v1402
        %2464 = vmatpush2.bf16.msra.mxu0 %v1401
        %2465 = vmatprep.subr.bf16.mxu0 %v1392
        %2466 = vmatpush2.bf16.msra.mxu0 %v1391
        %2467 = vmatprep.mubr.bf16.mxu0 %v668
        %2468 = vmatmul.mubr.bf16.gmra.mxu0 %v667
        %v2469 = vpop.f32.mrf.mxu0
        %v2470 = vadd.f32 0.0, %v2469
        %v2471 = vpop.f32.mrf.mxu0
        %v2472 = vadd.f32 0.0, %v2471
        %v2473 = vpop.f32.mrf.mxu0
        %v2474 = vpop.f32.mrf.mxu0
        %2475 = vdwg.mxu0
        %2476 = vmatprep.subr.bf16.mxu0 %v1384
        %2477 = vmatpush1.bf16.msra.mxu0 %v1383
        %2478 = vmatprep.subr.bf16.mxu0 %v1374
        %2479 = vmatpush1.bf16.msra.mxu0 %v1373
        %2480 = vmatprep.subr.bf16.mxu0 %v1364
        %2481 = vmatpush1.bf16.msra.mxu0 %v1363
        %2482 = vmatprep.subr.bf16.mxu0 %v1354
        %2483 = vmatpush1.bf16.msra.mxu0 %v1353
        %2484 = vmatprep.subr.bf16.mxu0 %v1344
        %2485 = vmatpush1.bf16.msra.mxu0 %v1343
        %2486 = vmatprep.subr.bf16.mxu0 %v1334
        %2487 = vmatpush1.bf16.msra.mxu0 %v1333
        %2488 = vmatprep.subr.bf16.mxu0 %v1324
        %2489 = vmatpush1.bf16.msra.mxu0 %v1323
        %2490 = vmatprep.subr.bf16.mxu0 %v1314
        %2491 = vmatpush1.bf16.msra.mxu0 %v1313
        %2492 = vmatprep.subr.bf16.mxu0 %v1464
        %2493 = vmatpush2.bf16.msra.mxu0 %v1463
        %2494 = vmatprep.subr.bf16.mxu0 %v1454
        %2495 = vmatpush2.bf16.msra.mxu0 %v1453
        %2496 = vmatprep.subr.bf16.mxu0 %v1444
        %2497 = vmatpush2.bf16.msra.mxu0 %v1443
        %2498 = vmatprep.subr.bf16.mxu0 %v1434
        %2499 = vmatpush2.bf16.msra.mxu0 %v1433
        %2500 = vmatprep.subr.bf16.mxu0 %v1424
        %2501 = vmatpush2.bf16.msra.mxu0 %v1423
        %2502 = vmatprep.subr.bf16.mxu0 %v1414
        %2503 = vmatpush2.bf16.msra.mxu0 %v1413
        %2504 = vmatprep.subr.bf16.mxu0 %v1404
        %2505 = vmatpush2.bf16.msra.mxu0 %v1403
        %2506 = vmatprep.subr.bf16.mxu0 %v1394
        %2507 = vmatpush2.bf16.msra.mxu0 %v1393
        %2508 = vmatprep.mubr.bf16.mxu0 %v668
        %2509 = vmatmul.mubr.bf16.gmra.mxu0 %v667
        %v2510 = vpop.f32.mrf.mxu0
        %v2511 = vadd.f32 0.0, %v2510
        %v2512 = vpop.f32.mrf.mxu0
        %v2513 = vadd.f32 0.0, %v2512
        %v2514 = vpop.f32.mrf.mxu0
        %v2515 = vpop.f32.mrf.mxu0
        %2516 = vdwg.mxu0
        %2517 = vmatprep.subr.bf16.mxu0 %v1386
        %2518 = vmatpush1.bf16.msra.mxu0 %v1385
        %2519 = vmatprep.subr.bf16.mxu0 %v1376
        %2520 = vmatpush1.bf16.msra.mxu0 %v1375
        %2521 = vmatprep.subr.bf16.mxu0 %v1366
        %2522 = vmatpush1.bf16.msra.mxu0 %v1365
        %2523 = vmatprep.subr.bf16.mxu0 %v1356
        %2524 = vmatpush1.bf16.msra.mxu0 %v1355
        %2525 = vmatprep.subr.bf16.mxu0 %v1346
        %2526 = vmatpush1.bf16.msra.mxu0 %v1345
        %2527 = vmatprep.subr.bf16.mxu0 %v1336
        %2528 = vmatpush1.bf16.msra.mxu0 %v1335
        %2529 = vmatprep.subr.bf16.mxu0 %v1326
        %2530 = vmatpush1.bf16.msra.mxu0 %v1325
        %2531 = vmatprep.subr.bf16.mxu0 %v1316
        %2532 = vmatpush1.bf16.msra.mxu0 %v1315
        %2533 = vmatprep.subr.bf16.mxu0 %v1466
        %2534 = vmatpush2.bf16.msra.mxu0 %v1465
        %2535 = vmatprep.subr.bf16.mxu0 %v1456
        %2536 = vmatpush2.bf16.msra.mxu0 %v1455
        %2537 = vmatprep.subr.bf16.mxu0 %v1446
        %2538 = vmatpush2.bf16.msra.mxu0 %v1445
        %2539 = vmatprep.subr.bf16.mxu0 %v1436
        %2540 = vmatpush2.bf16.msra.mxu0 %v1435
        %2541 = vmatprep.subr.bf16.mxu0 %v1426
        %2542 = vmatpush2.bf16.msra.mxu0 %v1425
        %2543 = vmatprep.subr.bf16.mxu0 %v1416
        %2544 = vmatpush2.bf16.msra.mxu0 %v1415
        %2545 = vmatprep.subr.bf16.mxu0 %v1406
        %2546 = vmatpush2.bf16.msra.mxu0 %v1405
        %2547 = vmatprep.subr.bf16.mxu0 %v1396
        %2548 = vmatpush2.bf16.msra.mxu0 %v1395
        %2549 = vmatprep.mubr.bf16.mxu0 %v668
        %2550 = vmatmul.mubr.bf16.gmra.mxu0 %v667
        %v2551 = vpop.f32.mrf.mxu0
        %v2552 = vadd.f32 0.0, %v2551
        %v2553 = vpop.f32.mrf.mxu0
        %v2554 = vadd.f32 0.0, %v2553
        %v2555 = vpop.f32.mrf.mxu0
        %v2556 = vpop.f32.mrf.mxu0
        %2557 = vdwg.mxu0
        %2558 = vmatprep.subr.bf16.mxu0 %v1388
        %2559 = vmatpush1.bf16.msra.mxu0 %v1387
        %2560 = vmatprep.subr.bf16.mxu0 %v1378
        %2561 = vmatpush1.bf16.msra.mxu0 %v1377
        %2562 = vmatprep.subr.bf16.mxu0 %v1368
        %2563 = vmatpush1.bf16.msra.mxu0 %v1367
        %2564 = vmatprep.subr.bf16.mxu0 %v1358
        %2565 = vmatpush1.bf16.msra.mxu0 %v1357
        %2566 = vmatprep.subr.bf16.mxu0 %v1348
        %2567 = vmatpush1.bf16.msra.mxu0 %v1347
        %2568 = vmatprep.subr.bf16.mxu0 %v1338
        %2569 = vmatpush1.bf16.msra.mxu0 %v1337
        %2570 = vmatprep.subr.bf16.mxu0 %v1328
        %2571 = vmatpush1.bf16.msra.mxu0 %v1327
        %2572 = vmatprep.subr.bf16.mxu0 %v1318
        %2573 = vmatpush1.bf16.msra.mxu0 %v1317
        %2574 = vmatprep.subr.bf16.mxu0 %v1468
        %2575 = vmatpush2.bf16.msra.mxu0 %v1467
        %2576 = vmatprep.subr.bf16.mxu0 %v1458
        %2577 = vmatpush2.bf16.msra.mxu0 %v1457
        %2578 = vmatprep.subr.bf16.mxu0 %v1448
        %2579 = vmatpush2.bf16.msra.mxu0 %v1447
        %2580 = vmatprep.subr.bf16.mxu0 %v1438
        %2581 = vmatpush2.bf16.msra.mxu0 %v1437
        %2582 = vmatprep.subr.bf16.mxu0 %v1428
        %2583 = vmatpush2.bf16.msra.mxu0 %v1427
        %2584 = vmatprep.subr.bf16.mxu0 %v1418
        %2585 = vmatpush2.bf16.msra.mxu0 %v1417
        %2586 = vmatprep.subr.bf16.mxu0 %v1408
        %2587 = vmatpush2.bf16.msra.mxu0 %v1407
        %2588 = vmatprep.subr.bf16.mxu0 %v1398
        %2589 = vmatpush2.bf16.msra.mxu0 %v1397
        %2590 = vmatprep.mubr.bf16.mxu0 %v668
        %2591 = vmatmul.mubr.bf16.gmra.mxu0 %v667
        %v2592 = vpop.f32.mrf.mxu0
        %v2593 = vadd.f32 0.0, %v2592
        %v2594 = vpop.f32.mrf.mxu0
        %v2595 = vadd.f32 0.0, %v2594
        %v2596 = vpop.f32.mrf.mxu0
        %v2597 = vpop.f32.mrf.mxu0
        %2598 = vdwg.mxu0
        %v2599 = vpack.c.bf16 %v2431, %v2429
        %v2601 = vunpack.c.l.b16 %v2599
        %v2602 = vunpack.c.h.b16 %v2599
        %v2603 = vpack.c.b16 %v2601, %v2601
        %v2604 = vpack.c.b16 %v2602, %v2602
        %2607 = vst [vmem:[#allocation2 + $0xc] sm:$0xf] %v2603
        %2608 = vst [vmem:[#allocation2 + $0x1c] sm:$0xf] %v2604
        %v2609 = vpack.c.bf16 %v2472, %v2470
        %v2611 = vunpack.c.l.b16 %v2609
        %v2612 = vunpack.c.h.b16 %v2609
        %v2613 = vpack.c.b16 %v2611, %v2611
        %v2614 = vpack.c.b16 %v2612, %v2612
        %2617 = vst [vmem:[#allocation2 + $0x2c] sm:$0xf] %v2613
        %2618 = vst [vmem:[#allocation2 + $0x3c] sm:$0xf] %v2614
        %v2619 = vpack.c.bf16 %v2513, %v2511
        %v2621 = vunpack.c.l.b16 %v2619
        %v2622 = vunpack.c.h.b16 %v2619
        %v2623 = vpack.c.b16 %v2621, %v2621
        %v2624 = vpack.c.b16 %v2622, %v2622
        %2627 = vst [vmem:[#allocation2 + $0x4c] sm:$0xf] %v2623
        %2628 = vst [vmem:[#allocation2 + $0x5c] sm:$0xf] %v2624
        %v2629 = vpack.c.bf16 %v2554, %v2552
        %v2631 = vunpack.c.l.b16 %v2629
        %v2632 = vunpack.c.h.b16 %v2629
        %v2633 = vpack.c.b16 %v2631, %v2631
        %v2634 = vpack.c.b16 %v2632, %v2632
        %2637 = vst [vmem:[#allocation2 + $0x6c] sm:$0xf] %v2633
        %2638 = vst [vmem:[#allocation2 + $0x7c] sm:$0xf] %v2634
        %v2639 = vpack.c.bf16 %v2595, %v2593
        %v2641 = vunpack.c.l.b16 %v2639
        %v2642 = vunpack.c.h.b16 %v2639
        %v2643 = vpack.c.b16 %v2641, %v2641
        %v2644 = vpack.c.b16 %v2642, %v2642
        %2647 = vst [vmem:[#allocation2 + $0x8c] sm:$0xf] %v2643
        %2648 = vst [vmem:[#allocation2 + $0x9c] sm:$0xf] %v2644
        %v2649 = vld [vmem:[%s4] sm:$0xf]
        %v2650 = vld [vmem:[%s4 + $0x4] sm:$0xf]
        %v2651 = vld [vmem:[%s4 + $0x8] sm:$0xf]
        %v2652 = vld [vmem:[%s4 + $0xc] sm:$0xf]
        %v2653 = vld [vmem:[#allocation2] sm:$0xff]
        %v2654 = vld [vmem:[#allocation2 + $0x8] sm:$0xff]
        %v2655 = vld [vmem:[#allocation2 + $0x10] sm:$0xff]
        %v2656 = vld [vmem:[#allocation2 + $0x18] sm:$0xff]
        %v2657 = vld [vmem:[#allocation2 + $0x20] sm:$0xff]
        %v2658 = vld [vmem:[#allocation2 + $0x28] sm:$0xff]
        %v2659 = vld [vmem:[#allocation2 + $0x30] sm:$0xff]
        %v2660 = vld [vmem:[#allocation2 + $0x38] sm:$0xff]
        %v2661 = vld [vmem:[#allocation2 + $0x40] sm:$0xff]
        %v2662 = vld [vmem:[#allocation2 + $0x48] sm:$0xff]
        %v2663 = vld [vmem:[#allocation2 + $0x50] sm:$0xff]
        %v2664 = vld [vmem:[#allocation2 + $0x58] sm:$0xff]
        %v2665 = vld [vmem:[#allocation2 + $0x60] sm:$0xff]
        %v2666 = vld [vmem:[#allocation2 + $0x68] sm:$0xff]
        %v2667 = vld [vmem:[#allocation2 + $0x70] sm:$0xff]
        %v2668 = vld [vmem:[#allocation2 + $0x78] sm:$0xff]
        %v2669 = vld [vmem:[#allocation2 + $0x80] sm:$0xff]
        %v2670 = vld [vmem:[#allocation2 + $0x88] sm:$0xff]
        %v2671 = vld [vmem:[#allocation2 + $0x90] sm:$0xff]
        %v2672 = vld [vmem:[#allocation2 + $0x98] sm:$0xff]
        %v2673 = vld [vmem:[%s5] sm:$0xff]
        %v2674 = vld [vmem:[%s5 + $0x8] sm:$0xff]
        %v2675 = vld [vmem:[%s5 + $0x10] sm:$0xff]
        %v2676 = vld [vmem:[%s5 + $0x18] sm:$0xff]
        %2678 = vset.pattern.permute.xlu0 0
        %2679 = vperm.xlu0 %2678, %v2673
        %v2680 = vpop.permute.xlu0 %2679
        %2683 = vset.pattern.permute.xlu0 0
        %2684 = vperm.xlu0 %2683, %v2674
        %v2685 = vpop.permute.xlu0 %2684
        %2688 = vset.pattern.permute.xlu0 0
        %2689 = vperm.xlu0 %2688, %v2675
        %v2690 = vpop.permute.xlu0 %2689
        %2693 = vset.pattern.permute.xlu0 0
        %2694 = vperm.xlu0 %2693, %v2676
        %v2695 = vpop.permute.xlu0 %2694
        %v2701 = vunpack.c.l.b16 %v2649
        %v2702 = vunpack.c.l.b16 %v2650
        %v2703 = vunpack.c.l.b16 %v2651
        %v2704 = vunpack.c.l.b16 %v2652
        %v2705 = vpack.c.b16 %v2702, %v2701
        %v2706 = vpack.c.b16 %v2704, %v2703
        %v2727 = vunpack.c.l.b16 %v2653
        %v2728 = vunpack.c.h.b16 %v2653
        %v2729 = vunpack.c.l.b16 %v2654
        %v2730 = vunpack.c.h.b16 %v2654
        %v2731 = vunpack.c.l.b16 %v2655
        %v2732 = vunpack.c.h.b16 %v2655
        %v2733 = vunpack.c.l.b16 %v2656
        %v2734 = vunpack.c.h.b16 %v2656
        %v2735 = vunpack.c.l.b16 %v2657
        %v2736 = vunpack.c.h.b16 %v2657
        %v2737 = vunpack.c.l.b16 %v2658
        %v2738 = vunpack.c.h.b16 %v2658
        %v2739 = vunpack.c.l.b16 %v2659
        %v2740 = vunpack.c.h.b16 %v2659
        %v2741 = vunpack.c.l.b16 %v2660
        %v2742 = vunpack.c.h.b16 %v2660
        %v2743 = vunpack.c.l.b16 %v2661
        %v2744 = vunpack.c.h.b16 %v2661
        %v2745 = vunpack.c.l.b16 %v2662
        %v2746 = vunpack.c.h.b16 %v2662
        %v2747 = vunpack.c.l.b16 %v2663
        %v2748 = vunpack.c.h.b16 %v2663
        %v2749 = vunpack.c.l.b16 %v2664
        %v2750 = vunpack.c.h.b16 %v2664
        %v2751 = vunpack.c.l.b16 %v2665
        %v2752 = vunpack.c.h.b16 %v2665
        %v2753 = vunpack.c.l.b16 %v2666
        %v2754 = vunpack.c.h.b16 %v2666
        %v2755 = vunpack.c.l.b16 %v2667
        %v2756 = vunpack.c.h.b16 %v2667
        %v2757 = vunpack.c.l.b16 %v2668
        %v2758 = vunpack.c.h.b16 %v2668
        %v2759 = vunpack.c.l.b16 %v2669
        %v2760 = vunpack.c.h.b16 %v2669
        %v2761 = vunpack.c.l.b16 %v2670
        %v2762 = vunpack.c.h.b16 %v2670
        %v2763 = vunpack.c.l.b16 %v2671
        %v2764 = vunpack.c.h.b16 %v2671
        %v2765 = vunpack.c.l.b16 %v2672
        %v2766 = vunpack.c.h.b16 %v2672
        %v2767 = vpack.c.b16 %v2731, %v2727
        %v2768 = vpack.c.b16 %v2732, %v2728
        %v2769 = vpack.c.b16 %v2733, %v2729
        %v2770 = vpack.c.b16 %v2734, %v2730
        %v2771 = vpack.c.b16 %v2739, %v2735
        %v2772 = vpack.c.b16 %v2740, %v2736
        %v2773 = vpack.c.b16 %v2741, %v2737
        %v2774 = vpack.c.b16 %v2742, %v2738
        %v2775 = vpack.c.b16 %v2747, %v2743
        %v2776 = vpack.c.b16 %v2748, %v2744
        %v2777 = vpack.c.b16 %v2749, %v2745
        %v2778 = vpack.c.b16 %v2750, %v2746
        %v2779 = vpack.c.b16 %v2755, %v2751
        %v2780 = vpack.c.b16 %v2756, %v2752
        %v2781 = vpack.c.b16 %v2757, %v2753
        %v2782 = vpack.c.b16 %v2758, %v2754
        %v2783 = vpack.c.b16 %v2763, %v2759
        %v2784 = vpack.c.b16 %v2764, %v2760
        %v2785 = vpack.c.b16 %v2765, %v2761
        %v2786 = vpack.c.b16 %v2766, %v2762
        %vm2807 = vcmask 654336
        %v2809 = vsel %vm2807, %v2705, 0
        %v2812 = vsel %vm2807, %v2706, 0
        %2814 = vmatprep.subr.bf16.mxu0 0
        %2815 = vmatpush1.bf16.msra.mxu0 0
        %2816 = vmatprep.subr.bf16.mxu0 0
        %2817 = vmatpush1.bf16.msra.mxu0 0
        %2818 = vmatprep.subr.bf16.mxu0 0
        %2819 = vmatpush1.bf16.msra.mxu0 0
        %2820 = vmatprep.subr.bf16.mxu0 %v2784
        %2821 = vmatpush1.bf16.msra.mxu0 %v2783
        %2822 = vmatprep.subr.bf16.mxu0 %v2780
        %2823 = vmatpush1.bf16.msra.mxu0 %v2779
        %2824 = vmatprep.subr.bf16.mxu0 %v2776
        %2825 = vmatpush1.bf16.msra.mxu0 %v2775
        %2826 = vmatprep.subr.bf16.mxu0 %v2772
        %2827 = vmatpush1.bf16.msra.mxu0 %v2771
        %2828 = vmatprep.subr.bf16.mxu0 %v2768
        %2829 = vmatpush1.bf16.msra.mxu0 %v2767
        %2830 = vmatprep.subr.bf16.mxu0 0
        %2831 = vmatpush2.bf16.msra.mxu0 0
        %2832 = vmatprep.subr.bf16.mxu0 0
        %2833 = vmatpush2.bf16.msra.mxu0 0
        %2834 = vmatprep.subr.bf16.mxu0 0
        %2835 = vmatpush2.bf16.msra.mxu0 0
        %2836 = vmatprep.subr.bf16.mxu0 0
        %2837 = vmatpush2.bf16.msra.mxu0 0
        %2838 = vmatprep.subr.bf16.mxu0 0
        %2839 = vmatpush2.bf16.msra.mxu0 0
        %2840 = vmatprep.subr.bf16.mxu0 0
        %2841 = vmatpush2.bf16.msra.mxu0 0
        %2842 = vmatprep.subr.bf16.mxu0 0
        %2843 = vmatpush2.bf16.msra.mxu0 0
        %2844 = vmatprep.subr.bf16.mxu0 0
        %2845 = vmatpush2.bf16.msra.mxu0 0
        %2846 = vmatprep.mubr.bf16.mxu0 0
        %2847 = vmatmul.mubr.bf16.gmra.mxu0 %v2809
        %v2848 = vpop.f32.mrf.mxu0
        %v2849 = vadd.f32 %v2680, %v2848
        %v2850 = vpop.f32.mrf.mxu0
        %v2851 = vadd.f32 %v2680, %v2850
        %v2852 = vpop.f32.mrf.mxu0
        %v2853 = vadd.f32 %v2685, %v2852
        %v2854 = vpop.f32.mrf.mxu0
        %v2855 = vadd.f32 %v2685, %v2854
        %2856 = vmatprep.mubr.bf16.mxu0 0
        %2857 = vmatmul.mubr.bf16.gmra.mxu0 %v2812
        %v2858 = vpop.f32.mrf.mxu0
        %v2859 = vadd.f32 %v2690, %v2858
        %v2860 = vpop.f32.mrf.mxu0
        %v2861 = vadd.f32 %v2690, %v2860
        %v2862 = vpop.f32.mrf.mxu0
        %v2863 = vadd.f32 %v2695, %v2862
        %v2864 = vpop.f32.mrf.mxu0
        %v2865 = vadd.f32 %v2695, %v2864
        %2866 = vdwg.mxu0
        %2867 = vmatprep.subr.bf16.mxu0 0
        %2868 = vmatpush1.bf16.msra.mxu0 0
        %2869 = vmatprep.subr.bf16.mxu0 0
        %2870 = vmatpush1.bf16.msra.mxu0 0
        %2871 = vmatprep.subr.bf16.mxu0 0
        %2872 = vmatpush1.bf16.msra.mxu0 0
        %2873 = vmatprep.subr.bf16.mxu0 %v2786
        %2874 = vmatpush1.bf16.msra.mxu0 %v2785
        %2875 = vmatprep.subr.bf16.mxu0 %v2782
        %2876 = vmatpush1.bf16.msra.mxu0 %v2781
        %2877 = vmatprep.subr.bf16.mxu0 %v2778
        %2878 = vmatpush1.bf16.msra.mxu0 %v2777
        %2879 = vmatprep.subr.bf16.mxu0 %v2774
        %2880 = vmatpush1.bf16.msra.mxu0 %v2773
        %2881 = vmatprep.subr.bf16.mxu0 %v2770
        %2882 = vmatpush1.bf16.msra.mxu0 %v2769
        %2883 = vmatprep.subr.bf16.mxu0 0
        %2884 = vmatpush2.bf16.msra.mxu0 0
        %2885 = vmatprep.subr.bf16.mxu0 0
        %2886 = vmatpush2.bf16.msra.mxu0 0
        %2887 = vmatprep.subr.bf16.mxu0 0
        %2888 = vmatpush2.bf16.msra.mxu0 0
        %2889 = vmatprep.subr.bf16.mxu0 0
        %2890 = vmatpush2.bf16.msra.mxu0 0
        %2891 = vmatprep.subr.bf16.mxu0 0
        %2892 = vmatpush2.bf16.msra.mxu0 0
        %2893 = vmatprep.subr.bf16.mxu0 0
        %2894 = vmatpush2.bf16.msra.mxu0 0
        %2895 = vmatprep.subr.bf16.mxu0 0
        %2896 = vmatpush2.bf16.msra.mxu0 0
        %2897 = vmatprep.subr.bf16.mxu0 0
        %2898 = vmatpush2.bf16.msra.mxu0 0
        %2899 = vmatprep.mubr.bf16.mxu0 0
        %2900 = vmatmul.mubr.bf16.gmra.mxu0 %v2809
        %v2901 = vpop.f32.mrf.mxu0
        %v2902 = vadd.f32 %v2680, %v2901
        %v2903 = vpop.f32.mrf.mxu0
        %v2904 = vadd.f32 %v2680, %v2903
        %v2905 = vpop.f32.mrf.mxu0
        %v2906 = vadd.f32 %v2685, %v2905
        %v2907 = vpop.f32.mrf.mxu0
        %v2908 = vadd.f32 %v2685, %v2907
        %2909 = vmatprep.mubr.bf16.mxu0 0
        %2910 = vmatmul.mubr.bf16.gmra.mxu0 %v2812
        %v2911 = vpop.f32.mrf.mxu0
        %v2912 = vadd.f32 %v2690, %v2911
        %v2913 = vpop.f32.mrf.mxu0
        %v2914 = vadd.f32 %v2690, %v2913
        %v2915 = vpop.f32.mrf.mxu0
        %v2916 = vadd.f32 %v2695, %v2915
        %v2917 = vpop.f32.mrf.mxu0
        %v2918 = vadd.f32 %v2695, %v2917
        %2919 = vdwg.mxu0
        %v2920 = vmax.f32 %v2849, 0.0
        %v2921 = vmax.f32 %v2851, 0.0
        %v2922 = vmax.f32 %v2902, 0.0
        %v2923 = vmax.f32 %v2904, 0.0
        %v2924 = vmax.f32 %v2853, 0.0
        %v2925 = vmax.f32 %v2855, 0.0
        %v2926 = vmax.f32 %v2906, 0.0
        %v2927 = vmax.f32 %v2908, 0.0
        %v2928 = vmax.f32 %v2859, 0.0
        %v2929 = vmax.f32 %v2861, 0.0
        %v2930 = vmax.f32 %v2912, 0.0
        %v2931 = vmax.f32 %v2914, 0.0
        %v2932 = vmax.f32 %v2863, 0.0
        %v2933 = vmax.f32 %v2865, 0.0
        %v2934 = vmax.f32 %v2916, 0.0
        %v2935 = vmax.f32 %v2918, 0.0
        %2936 = vst [vmem:[%s284] sm:$0xff] %v2920
        %2937 = vst [vmem:[%s284 + $0x8] sm:$0xff] %v2921
        %2938 = vst [vmem:[%s284 + $0x10] sm:$0xff] %v2922
        %2939 = vst [vmem:[%s284 + $0x18] sm:$0xff] %v2923
        %2940 = vst [vmem:[%s284 + $0x20] sm:$0xff] %v2924
        %2941 = vst [vmem:[%s284 + $0x28] sm:$0xff] %v2925
        %2942 = vst [vmem:[%s284 + $0x30] sm:$0xff] %v2926
        %2943 = vst [vmem:[%s284 + $0x38] sm:$0xff] %v2927
        %2944 = vst [vmem:[%s284 + $0x40] sm:$0xff] %v2928
        %2945 = vst [vmem:[%s284 + $0x48] sm:$0xff] %v2929
        %2946 = vst [vmem:[%s284 + $0x50] sm:$0xff] %v2930
        %2947 = vst [vmem:[%s284 + $0x58] sm:$0xff] %v2931
        %2948 = vst [vmem:[%s284 + $0x60] sm:$0xff] %v2932
        %2949 = vst [vmem:[%s284 + $0x68] sm:$0xff] %v2933
        %2950 = vst [vmem:[%s284 + $0x70] sm:$0xff] %v2934
        %2951 = vst [vmem:[%s284 + $0x78] sm:$0xff] %v2935
        %s2952 = sand.u32 %s163, 1
        %s2953 = scalar_lea.sflag [#allocation5], %s2952
        %s2954 = sand.u32 %s163, 1
        %s2955 = smul.addr %s2954, 128
        %s2956 = scalar_lea.vmem [#allocation8], %s2955
        // Predicated region
        $region53: #{tpu_custom_call.1} parent=43 // pred_check
          %p2957 = pneg %p173
        $region54: #{tpu_custom_call.1} parent=43 // pred_check_branch
          %2959 = sbr.rel (%p2957) target = $region56
        $region55: #{tpu_custom_call.1} parent=43 // pred_region
          %s2961 = ssub.s32 2048, 2048
          %2962 = vsyncadd %s2953, %s2961
          %s2963 = smul.addr %s24, 16
          %s2964 = smul.addr %s2963, 128
          %s2965 = scalar_lea.hbm %s6, %s2964
          %s2966 = sshll.u32 %s2956, 4
          %s2967 = int_to_ptr.vmem [resolvable:$true] %s2966
          %2972 = dma.vmem_to_hbm [thread:$0]  %s2967, 2048, %s2965, %s2953, 512, 512, 32
        $region56: #{tpu_custom_call.1} parent=43 // pred_fallthru
          _
      $region44: #{tpu_custom_call.1} parent=5 // pred_fallthru
        _
      %p2973 = scmp.le.s32.totalorder 2, %s19
      // Predicated region
      $region57: #{tpu_custom_call.1} parent=5 // pred_check
        %p2974 = pneg %p2973
      $region58: #{tpu_custom_call.1} parent=5 // pred_check_branch
        %2976 = sbr.rel (%p2974) target = $region60
      $region59: #{tpu_custom_call.1} parent=5 // pred_region
        %s2977 = ssub.s32 %s19, 2
        // Predicated region
        $region61: #{tpu_custom_call.1} parent=59 // pred_check
          %p2978 = pneg %p179
        $region62: #{tpu_custom_call.1} parent=59 // pred_check_branch
          %2980 = sbr.rel (%p2978) target = $region64
        $region63: #{tpu_custom_call.1} parent=59 // pred_region
          %s2981 = sand.u32 %s164, 1
          %s2982 = scalar_lea.sflag [#allocation5], %s2981
          %s2983 = sand.u32 %s164, 1
          %s2984 = smul.addr %s2983, 128
          %s2985 = scalar_lea.vmem [#allocation8], %s2984
          %2986 = dma.done %s2982, 2048
        $region64: #{tpu_custom_call.1} parent=59 // pred_fallthru
          _
      $region60: #{tpu_custom_call.1} parent=5 // pred_fallthru
        _
    $region6: #{tpu_custom_call.1} parent=1 // loop_footer
      %s23 = sadd.s32 1, %s19
    $region7: #{tpu_custom_call.1} parent=1 // loop_footer_branch
      %18 = sbr.rel target = $region3
    $region8: #{tpu_custom_call.1} parent=1 // loop_exit
      _
    %2987 = vsyncpa [#allocation4], 1
    %s2988 = scalar_lea.sflag [#allocation4], 1
    %2989 = vsyncpa %s2988, 1
    %2990 = vsyncpa [#allocation7], 1
    %2991 = vsyncpa [#allocation5], 1
    %s2992 = scalar_lea.sflag [#allocation5], 1
    %2993 = vsyncpa %s2992, 1

</llo_original>
